<compile_context>
chip_gen: v7x
topology: tpu7x:2x2x1
jax: 0.10.0
libtpu: 0.0.40
codegen_flags: <defaults>
</compile_context>

<pallas_src>
import numpy as np
import jax
import jax.numpy as jnp
from jax.experimental import pallas as pl
from jax.experimental.pallas import tpu as pltpu


# ----------------------------------------------------------------------------
# In-kernel helpers
# ----------------------------------------------------------------------------
def _erf_approx(x):
    # Abramowitz & Stegun 7.1.26 (|error| <= 1.5e-7); uses only exp (EUP path).
    ax = jnp.abs(x)
    t = 1.0 / (1.0 + 0.3275911 * ax)
    poly = ((((1.061405429 * t - 1.453152027) * t + 1.421413741) * t
             - 0.284496736) * t + 0.254829592) * t
    y = 1.0 - poly * jnp.exp(-ax * ax)
    return jnp.where(x >= 0.0, y, -y)


def _gelu(x):
    # exact (erf) GELU, matching torch.nn.GELU() default
    return 0.5 * x * (1.0 + _erf_approx(x * 0.7071067811865476))


def _group_norm_2d(x, P, gamma, beta, n_spatial, eps=1e-5):
    """GroupNorm(8, C) on an (HW, C) activation. P is the (C, C) group-average matrix."""
    inv_n = 1.0 / float(n_spatial)
    s = jnp.sum(x, axis=0, keepdims=True)        # (1, C) per-channel sum
    q = jnp.sum(x * x, axis=0, keepdims=True)    # (1, C) per-channel sum of squares
    m = jnp.dot(s, P, preferred_element_type=jnp.float32) * inv_n    # group mean / channel
    m2 = jnp.dot(q, P, preferred_element_type=jnp.float32) * inv_n   # group E[x^2] / channel
    var = m2 - m * m
    return (x - m) * jax.lax.rsqrt(var + eps) * gamma + beta


def _conv3x3_from_pad(pad_ref, w_taps_ref, height, width, c_in, c_out):
    """3x3 conv as 9 shifted-window matmuls. pad_ref: (H+2, W+2, Cin) zero-padded image,
    w_taps_ref: (9, Cin, Cout) with tap index dy*3+dx."""
    acc = jnp.zeros((height * width, c_out), jnp.float32)
    for t in range(9):
        dy, dx = t // 3, t % 3
        win = pad_ref[dy:dy + height, dx:dx + width, :].reshape(height * width, c_in)
        acc = acc + jnp.dot(win, w_taps_ref[t], preferred_element_type=jnp.float32)
    return acc


# ----------------------------------------------------------------------------
# Kernel A: stem = lay0 (3x3 conv) + gn0, once per image
# ----------------------------------------------------------------------------
def _stem_kernel(x_ref, w_ref, b_ref, g_ref, beta_ref, P_ref, o_ref, pad_ref):
    _, H, W, Ci = x_ref.shape
    Co = w_ref.shape[2]
    pad_ref[...] = jnp.zeros(pad_ref.shape, jnp.float32)
    pad_ref[1:H + 1, 1:W + 1, :] = x_ref[0]
    acc = _conv3x3_from_pad(pad_ref, w_ref, H, W, Ci, Co) + b_ref[...]
    y = _group_norm_2d(acc, P_ref[...], g_ref[...], beta_ref[...], H * W)
    o_ref[0] = y.reshape(H, W, Co)


# ----------------------------------------------------------------------------
# Kernel B: cat + lay1/gn1/relu + lay2/gn2/relu + full output_upscaling stack
# (per image/query).  Output is the 16 sub-pixel branches at coarse resolution.
# ----------------------------------------------------------------------------
def _main_kernel(y0_ref, mask_ref,
                 w1a_ref, w1b_ref, b1_ref, g1_ref, be1_ref, P1_ref,
                 w2_ref, b2_ref, g2_ref, be2_ref, P2_ref,
                 wt1_ref, bt1_ref, lnw_ref, lnb_ref, wt2_ref, bt2_ref,
                 o_ref, padc_ref, pad_ref):
    _, H, W, Ch = y0_ref.shape
    Cd = w2_ref.shape[1]
    HW = H * W

    # ---- torch.cat([expand(stem), bbox_mask], 1) -> lay1 -> gn1 -> relu -----
    # the concat is handled by splitting lay1's input channels into two halves
    # (stem / mask) so no lane-offset stores or in-kernel concatenation needed.
    padc_ref[...] = jnp.zeros(padc_ref.shape, jnp.float32)
    padc_ref[0, 1:H + 1, 1:W + 1, :] = y0_ref[0]
    padc_ref[1, 1:H + 1, 1:W + 1, :] = mask_ref[0]
    a1 = (_conv3x3_from_pad(padc_ref.at[0], w1a_ref, H, W, Ch, Cd) +
          _conv3x3_from_pad(padc_ref.at[1], w1b_ref, H, W, Ch, Cd) + b1_ref[...])
    a1 = _group_norm_2d(a1, P1_ref[...], g1_ref[...], be1_ref[...], HW)
    a1 = jnp.maximum(a1, 0.0)

    # ---- lay2 -> gn2 -> relu -------------------------------------------------
    pad_ref[...] = jnp.zeros(pad_ref.shape, jnp.float32)
    pad_ref[1:H + 1, 1:W + 1, :] = a1.reshape(H, W, Cd)
    a2 = _conv3x3_from_pad(pad_ref, w2_ref, H, W, Cd, Ch) + b2_ref[...]
    a2 = _group_norm_2d(a2, P2_ref[...], g2_ref[...], be2_ref[...], HW)
    a2 = jnp.maximum(a2, 0.0)

    # ---- output_upscaling: ConvT(2,2) -> LayerNorm2d -> GELU -> ConvT(2,2) -> GELU
    # stride-2 / kernel-2 transposed convs are per-coarse-pixel linear maps, so
    # every op is evaluated per (di,dj,ei,ej) sub-pixel branch at coarse
    # resolution; the single depth-to-space happens outside the kernel.
    for di in range(2):
        for dj in range(2):
            u = jnp.dot(a2, wt1_ref[di * 2 + dj],
                        preferred_element_type=jnp.float32) + bt1_ref[...]
            mu = jnp.mean(u, axis=-1, keepdims=True)
            var = jnp.mean((u - mu) * (u - mu), axis=-1, keepdims=True)
            v = (u - mu) * jax.lax.rsqrt(var + 1e-6) * lnw_ref[...] + lnb_ref[...]
            v = _gelu(v)
            for ei in range(2):
                for ej in range(2):
                    g = _gelu(jnp.dot(v, wt2_ref[ei * 2 + ej],
                                      preferred_element_type=jnp.float32) + bt2_ref[...])
                    o_ref[0, (2 * di + ei) * 4 + (2 * dj + ej)] = g


# ----------------------------------------------------------------------------
# Kernel C: out_lay = 3x3 conv (Cin small -> 1 channel) at the 4x resolution
# ----------------------------------------------------------------------------
def _out_lay_kernel(z_ref, wb_ref, o_ref, pad_ref):
    _, Cin, Hf, Wf = z_ref.shape
    pad_ref[...] = jnp.zeros(pad_ref.shape, jnp.float32)
    for c in range(Cin):
        pad_ref[c, 1:Hf + 1, 1:Wf + 1] = z_ref[0, c]
    acc = jnp.zeros((Hf, Wf), jnp.float32)
    for c in range(Cin):
        for t in range(9):
            dy, dx = t // 3, t % 3
            acc = acc + pad_ref[c, dy:dy + Hf, dx:dx + Wf] * wb_ref[c * 9 + t]
    o_ref[0] = acc + wb_ref[Cin * 9]


# ----------------------------------------------------------------------------
# Host-side helpers
# ----------------------------------------------------------------------------
def _group_avg_matrix(num_channels, groups):
    gs = num_channels // groups
    g = np.arange(num_channels) // gs
    P = (g[:, None] == g[None, :]).astype(np.float32) / float(gs)
    return jnp.asarray(P)


# ----------------------------------------------------------------------------
# Full forward
# ----------------------------------------------------------------------------
def mask_head_as_sam_forward(params, x, bbox_mask):
    f32 = jnp.float32
    B, Cc, H, W = x.shape
    Q = bbox_mask.shape[1]
    Ch = params["w0"].shape[0]          # nheads (= new context_dim)
    Cd = params["w1"].shape[0]          # 2 * nheads (= new dim)
    C4 = params["wt1"].shape[1]
    C8 = params["wt2"].shape[1]
    HW = H * W
    assert bbox_mask.shape[2] == Ch and Cd == 2 * Ch

    row = lambda v: jnp.asarray(v, f32).reshape(1, -1)
    # conv weight (O, I, 3, 3) -> (9, I, O) taps, tap index = dy*3+dx
    taps3 = lambda w: jnp.transpose(w, (2, 3, 1, 0)).reshape(9, w.shape[1], w.shape[0]).astype(f32)
    # convT weight (I, O, 2, 2) -> (4, I, O) taps, tap index = di*2+dj
    taps2 = lambda w: jnp.transpose(w, (2, 3, 0, 1)).reshape(4, w.shape[0], w.shape[1]).astype(f32)

    w0_t = taps3(params["w0"])
    w1_t = taps3(params["w1"])
    w1_a, w1_b = w1_t[:, :Ch, :], w1_t[:, Ch:, :]     # stem-half / mask-half of lay1
    w2_t = taps3(params["w2"])
    wt1_t = taps2(params["wt1"])
    wt2_t = taps2(params["wt2"])
    w3b = jnp.concatenate([params["w3"][0].reshape(-1),
                           params["b3"].reshape(-1)]).astype(f32)   # (C8*9 + 1,)

    P0 = _group_avg_matrix(Ch, 8)
    P1 = _group_avg_matrix(Cd, 8)
    P2 = _group_avg_matrix(Ch, 8)

    x_nhwc = jnp.transpose(x, (0, 2, 3, 1)).astype(f32)                          # (B, H, W, Cc)
    mask_flat = jnp.transpose(bbox_mask, (0, 1, 3, 4, 2)).reshape(B * Q, H, W, Ch).astype(f32)

    # ---------------- Kernel A: stem (lay0 + gn0), once per image ------------
    y0 = pl.pallas_call(
        _stem_kernel,
        out_shape=jax.ShapeDtypeStruct((B, H, W, Ch), f32),
        grid_spec=pltpu.PrefetchScalarGridSpec(
            num_scalar_prefetch=0, grid=(B,),
            in_specs=[
                pl.BlockSpec((1, H, W, Cc), lambda b: (b, 0, 0, 0)),
                pl.BlockSpec((9, Cc, Ch), lambda b: (0, 0, 0)),
                pl.BlockSpec((1, Ch), lambda b: (0, 0)),
                pl.BlockSpec((1, Ch), lambda b: (0, 0)),
                pl.BlockSpec((1, Ch), lambda b: (0, 0)),
                pl.BlockSpec((Ch, Ch), lambda b: (0, 0)),
            ],
            out_specs=pl.BlockSpec((1, H, W, Ch), lambda b: (b, 0, 0, 0)),
            scratch_shapes=[pltpu.VMEM((H + 2, W + 2, Cc), f32)]),
        compiler_params=pltpu.CompilerParams(dimension_semantics=("parallel",)),
    )(x_nhwc, w0_t, row(params["b0"]), row(params["g0"]), row(params["be0"]), P0)

    # ---------------- Kernel B: fused main body, per (image, query) ----------
    feat = pl.pallas_call(
        _main_kernel,
        out_shape=jax.ShapeDtypeStruct((B * Q, 16, HW, C8), f32),
        grid_spec=pltpu.PrefetchScalarGridSpec(
            num_scalar_prefetch=0, grid=(B, Q),
            in_specs=[
                pl.BlockSpec((1, H, W, Ch), lambda b, q: (b, 0, 0, 0)),
                pl.BlockSpec((1, H, W, Ch), lambda b, q: (b * Q + q, 0, 0, 0)),
                pl.BlockSpec((9, Ch, Cd), lambda b, q: (0, 0, 0)),
                pl.BlockSpec((9, Ch, Cd), lambda b, q: (0, 0, 0)),
                pl.BlockSpec((1, Cd), lambda b, q: (0, 0)),
                pl.BlockSpec((1, Cd), lambda b, q: (0, 0)),
                pl.BlockSpec((1, Cd), lambda b, q: (0, 0)),
                pl.BlockSpec((Cd, Cd), lambda b, q: (0, 0)),
                pl.BlockSpec((9, Cd, Ch), lambda b, q: (0, 0, 0)),
                pl.BlockSpec((1, Ch), lambda b, q: (0, 0)),
                pl.BlockSpec((1, Ch), lambda b, q: (0, 0)),
                pl.BlockSpec((1, Ch), lambda b, q: (0, 0)),
                pl.BlockSpec((Ch, Ch), lambda b, q: (0, 0)),
                pl.BlockSpec((4, Ch, C4), lambda b, q: (0, 0, 0)),
                pl.BlockSpec((1, C4), lambda b, q: (0, 0)),
                pl.BlockSpec((1, C4), lambda b, q: (0, 0)),
                pl.BlockSpec((1, C4), lambda b, q: (0, 0)),
                pl.BlockSpec((4, C4, C8), lambda b, q: (0, 0, 0)),
                pl.BlockSpec((1, C8), lambda b, q: (0, 0)),
            ],
            out_specs=pl.BlockSpec((1, 16, HW, C8), lambda b, q: (b * Q + q, 0, 0, 0)),
            scratch_shapes=[pltpu.VMEM((2, H + 2, W + 2, Ch), f32),
                            pltpu.VMEM((H + 2, W + 2, Cd), f32)]),
        compiler_params=pltpu.CompilerParams(
            dimension_semantics=("parallel", "parallel")),
    )(y0, mask_flat, w1_a, w1_b, row(params["b1"]), row(params["g1"]), row(params["be1"]), P1,
      w2_t, row(params["b2"]), row(params["g2"]), row(params["be2"]), P2,
      wt1_t, row(params["bt1"]), row(params["lnw"]), row(params["lnb"]),
      wt2_t, row(params["bt2"]))

    # ---------------- depth-to-space (pure data movement, XLA) ---------------
    fine = feat.reshape(B * Q, 4, 4, H, W, C8)
    fine = jnp.transpose(fine, (0, 5, 3, 1, 4, 2)).reshape(B * Q, C8, 4 * H, 4 * W)

    # ---------------- Kernel C: out_lay 3x3 conv at 4x resolution ------------
    out_flat = pl.pallas_call(
        _out_lay_kernel,
        out_shape=jax.ShapeDtypeStruct((B * Q, 4 * H, 4 * W), f32),
        grid_spec=pltpu.PrefetchScalarGridSpec(
            num_scalar_prefetch=0, grid=(B * Q,),
            in_specs=[
                pl.BlockSpec((1, C8, 4 * H, 4 * W), lambda n: (n, 0, 0, 0)),
                pl.BlockSpec(memory_space=pltpu.MemorySpace.SMEM),
            ],
            out_specs=pl.BlockSpec((1, 4 * H, 4 * W), lambda n: (n, 0, 0)),
            scratch_shapes=[pltpu.VMEM((C8, 4 * H + 2, 4 * W + 2), f32)]),
        compiler_params=pltpu.CompilerParams(dimension_semantics=("parallel",)),
    )(fine, w3b)

    return out_flat.reshape(B * Q, 1, 4 * H, 4 * W)


# ----------------------------------------------------------------------------
# Pure-JAX reference (mirrors the PyTorch forward) for a sanity check
# ----------------------------------------------------------------------------
def _ref_forward(params, x, bbox_mask):
    p = params
    B, Cc, H, W = x.shape
    Q = bbox_mask.shape[1]

    def conv3(t, w, b):
        y = jax.lax.conv_general_dilated(
            t, w, window_strides=(1, 1), padding=((1, 1), (1, 1)),
            dimension_numbers=("NCHW", "OIHW", "NCHW"))
        return y + b[None, :, None, None]

    def gn(t, gamma, beta, groups=8, eps=1e-5):
        Bn, C, Hh, Ww = t.shape
        tg = t.reshape(Bn, groups, C // groups, Hh, Ww)
        m = tg.mean(axis=(2, 3, 4), keepdims=True)
        v = ((tg - m) ** 2).mean(axis=(2, 3, 4), keepdims=True)
        tn = ((tg - m) / jnp.sqrt(v + eps)).reshape(Bn, C, Hh, Ww)
        return tn * gamma[None, :, None, None] + beta[None, :, None, None]

    def ln2d(t, gamma, beta, eps=1e-6):
        m = t.mean(axis=1, keepdims=True)
        v = ((t - m) ** 2).mean(axis=1, keepdims=True)
        return ((t - m) / jnp.sqrt(v + eps)) * gamma[None, :, None, None] \
               + beta[None, :, None, None]

    def convt2(t, w, b):  # w: (Ci, Co, 2, 2), stride 2
        Bn, Ci, Hh, Ww = t.shape
        Co = w.shape[1]
        y = jnp.einsum("bchw,codk->bohdwk", t, w)
        return y.reshape(Bn, Co, 2 * Hh, 2 * Ww) + b[None, :, None, None]

    gelu = lambda t: jax.nn.gelu(t, approximate=False)

    h = gn(conv3(x, p["w0"], p["b0"]), p["g0"], p["be0"])
    hq = jnp.repeat(h[:, None], Q, axis=1).reshape(B * Q, h.shape[1], H, W)
    h = jnp.concatenate([hq, bbox_mask.reshape(B * Q, bbox_mask.shape[2], H, W)], axis=1)
    h = jax.nn.relu(gn(conv3(h, p["w1"], p["b1"]), p["g1"], p["be1"]))
    h = jax.nn.relu(gn(conv3(h, p["w2"], p["b2"]), p["g2"], p["be2"]))
    u = convt2(h, p["wt1"], p["bt1"])
    u = gelu(ln2d(u, p["lnw"], p["lnb"]))
    u = gelu(convt2(u, p["wt2"], p["bt2"]))
    return conv3(u, p["w3"], p["b3"])


# ----------------------------------------------------------------------------
# Main
# ----------------------------------------------------------------------------
if __name__ == "__main__":
    key = jax.random.PRNGKey(0)
    B, Q, H, W = 2, 4, 16, 16
    dim, context_dim = 32, 16
    nheads = dim - context_dim          # 16
    Cc, Ch = context_dim, nheads
    Cd = 2 * nheads                     # "dim" after the in-__init__ re-assignment
    C4, C8 = Ch // 4, Ch // 8           # 4, 2

    ks = jax.random.split(key, 10)

    def kaiming_u(k, shape):            # kaiming_uniform_(a=1): bound = sqrt(3/fan_in)
        fan_in = int(np.prod(shape[1:]))
        bound = float(np.sqrt(3.0 / fan_in))
        return jax.random.uniform(k, shape, jnp.float32, -bound, bound)

    params = dict(
        w0=kaiming_u(ks[0], (Ch, Cc, 3, 3)), b0=jnp.zeros((Ch,), jnp.float32),
        g0=jnp.ones((Ch,), jnp.float32), be0=jnp.zeros((Ch,), jnp.float32),
        w1=kaiming_u(ks[1], (Cd, Cd, 3, 3)), b1=jnp.zeros((Cd,), jnp.float32),
        g1=jnp.ones((Cd,), jnp.float32), be1=jnp.zeros((Cd,), jnp.float32),
        w2=kaiming_u(ks[2], (Ch, Cd, 3, 3)), b2=jnp.zeros((Ch,), jnp.float32),
        g2=jnp.ones((Ch,), jnp.float32), be2=jnp.zeros((Ch,), jnp.float32),
        wt1=0.3 * jax.random.normal(ks[3], (Ch, C4, 2, 2), jnp.float32),
        bt1=0.1 * jax.random.normal(ks[4], (C4,), jnp.float32),
        lnw=jnp.ones((C4,), jnp.float32), lnb=jnp.zeros((C4,), jnp.float32),
        wt2=0.3 * jax.random.normal(ks[5], (C4, C8, 2, 2), jnp.float32),
        bt2=0.1 * jax.random.normal(ks[6], (C8,), jnp.float32),
        w3=kaiming_u(ks[7], (1, C8, 3, 3)), b3=jnp.zeros((1,), jnp.float32),
    )

    x = jax.random.normal(ks[8], (B, Cc, H, W), jnp.float32)
    bbox_mask = jax.random.normal(ks[9], (B, Q, Ch, H, W), jnp.float32)

    out = mask_head_as_sam_forward(params, x, bbox_mask)
    out = jax.block_until_ready(out)

    ref = _ref_forward(params, x, bbox_mask)
    assert out.shape == (B * Q, 1, 4 * H, 4 * W), out.shape
    if not np.allclose(np.asarray(out), np.asarray(ref), rtol=1e-2, atol=1e-2):
        err = float(np.max(np.abs(np.asarray(out) - np.asarray(ref))))
        raise AssertionError(f"Pallas output mismatches JAX reference (max abs err {err})")

    print("KERNEL_OK")
</pallas_src>

<mosaic_0001>
module attributes {stable_mosaic.version = 11 : i64} {
  func.func @_stem_kernel(%arg0: i32, %arg1: memref<1x16x16x16xf32, #tpu.memory_space<vmem>>, %arg2: memref<9x16x16xf32, #tpu.memory_space<vmem>>, %arg3: memref<1x16xf32, #tpu.memory_space<vmem>>, %arg4: memref<1x16xf32, #tpu.memory_space<vmem>>, %arg5: memref<1x16xf32, #tpu.memory_space<vmem>>, %arg6: memref<16x16xf32, #tpu.memory_space<vmem>>, %arg7: memref<1x16x16x16xf32, #tpu.memory_space<vmem>>, %arg8: memref<18x18x16xf32, #tpu.memory_space<vmem>>) attributes {dimension_semantics = [#tpu.dimension_semantics<parallel>], iteration_bounds = array<i64: 2>, scalar_prefetch = 0 : i64, scratch_operands = 1 : i64, tpu.core_type = #tpu.core_type<tc>, window_params = [{transform_indices = @transform_0, window_bounds = array<i64: 1, 16, 16, 16>}, {pipeline_mode = #tpu.pipeline_mode<synchronous>, transform_indices = @transform_1, window_bounds = array<i64: 9, 16, 16>}, {pipeline_mode = #tpu.pipeline_mode<synchronous>, transform_indices = @transform_2, window_bounds = array<i64: 1, 16>}, {pipeline_mode = #tpu.pipeline_mode<synchronous>, transform_indices = @transform_3, window_bounds = array<i64: 1, 16>}, {pipeline_mode = #tpu.pipeline_mode<synchronous>, transform_indices = @transform_4, window_bounds = array<i64: 1, 16>}, {pipeline_mode = #tpu.pipeline_mode<synchronous>, transform_indices = @transform_5, window_bounds = array<i64: 16, 16>}, {transform_indices = @transform_6, window_bounds = array<i64: 1, 16, 16, 16>}]} {
    %cst = arith.constant 0.000000e+00 : f32
    %0 = vector.broadcast %cst : f32 to vector<18x18x16xf32>
    %c0 = arith.constant 0 : index
    %c0_0 = arith.constant 0 : index
    %c0_1 = arith.constant 0 : index
    %1 = vector.load %arg8[%c0, %c0_0, %c0_1] : memref<18x18x16xf32, #tpu.memory_space<vmem>>, vector<18x18x16xf32>
    tpu.vector_store %arg8[%c0, %c0_0, %c0_1], %0 {strides = array<i32>} : memref<18x18x16xf32, #tpu.memory_space<vmem>>, vector<18x18x16xf32>,
    %c0_2 = arith.constant 0 : index
    %c0_3 = arith.constant 0 : index
    %c0_4 = arith.constant 0 : index
    %c0_5 = arith.constant 0 : index
    %2 = vector.load %arg1[%c0_2, %c0_3, %c0_4, %c0_5] : memref<1x16x16x16xf32, #tpu.memory_space<vmem>>, vector<1x16x16x16xf32>
    %3 = vector.shape_cast %2 : vector<1x16x16x16xf32> to vector<16x16x16xf32>
    %c1 = arith.constant 1 : index
    %c1_6 = arith.constant 1 : index
    %c0_7 = arith.constant 0 : index
    %4 = vector.load %arg8[%c1, %c1_6, %c0_7] : memref<18x18x16xf32, #tpu.memory_space<vmem>>, vector<16x16x16xf32>
    tpu.vector_store %arg8[%c1, %c1_6, %c0_7], %3 {strides = array<i32>} : memref<18x18x16xf32, #tpu.memory_space<vmem>>, vector<16x16x16xf32>,
    %cst_8 = arith.constant 0.000000e+00 : f32
    %5 = vector.broadcast %cst_8 : f32 to vector<256x16xf32>
    %c0_9 = arith.constant 0 : index
    %c0_10 = arith.constant 0 : index
    %c0_11 = arith.constant 0 : index
    %6 = vector.load %arg8[%c0_9, %c0_10, %c0_11] : memref<18x18x16xf32, #tpu.memory_space<vmem>>, vector<16x16x16xf32>
    %7 = vector.shape_cast %6 : vector<16x16x16xf32> to vector<256x16xf32>
    %c0_12 = arith.constant 0 : index
    %c0_13 = arith.constant 0 : index
    %c0_14 = arith.constant 0 : index
    %8 = vector.load %arg2[%c0_12, %c0_13, %c0_14] : memref<9x16x16xf32, #tpu.memory_space<vmem>>, vector<1x16x16xf32>
    %9 = vector.shape_cast %8 : vector<1x16x16xf32> to vector<16x16xf32>
    %cst_15 = arith.constant dense<0.000000e+00> : vector<256x16xf32>
    %10 = tpu.matmul %7, %9, %cst_15 {dimension_numbers = #tpu.dot_dimension_numbers<[1], [0], [0], [1], [0, 0, 1, 1], [], []>} : vector<256x16xf32>, vector<16x16xf32>, vector<256x16xf32> -> vector<256x16xf32>
    %11 = arith.addf %5, %10 : vector<256x16xf32>
    %c0_16 = arith.constant 0 : index
    %c1_17 = arith.constant 1 : index
    %c0_18 = arith.constant 0 : index
    %12 = vector.load %arg8[%c0_16, %c1_17, %c0_18] : memref<18x18x16xf32, #tpu.memory_space<vmem>>, vector<16x16x16xf32>
    %13 = vector.shape_cast %12 : vector<16x16x16xf32> to vector<256x16xf32>
    %c1_19 = arith.constant 1 : index
    %c0_20 = arith.constant 0 : index
    %c0_21 = arith.constant 0 : index
    %14 = vector.load %arg2[%c1_19, %c0_20, %c0_21] : memref<9x16x16xf32, #tpu.memory_space<vmem>>, vector<1x16x16xf32>
    %15 = vector.shape_cast %14 : vector<1x16x16xf32> to vector<16x16xf32>
    %cst_22 = arith.constant dense<0.000000e+00> : vector<256x16xf32>
    %16 = tpu.matmul %13, %15, %cst_22 {dimension_numbers = #tpu.dot_dimension_numbers<[1], [0], [0], [1], [0, 0, 1, 1], [], []>} : vector<256x16xf32>, vector<16x16xf32>, vector<256x16xf32> -> vector<256x16xf32>
    %17 = arith.addf %11, %16 : vector<256x16xf32>
    %c0_23 = arith.constant 0 : index
    %c2 = arith.constant 2 : index
    %c0_24 = arith.constant 0 : index
    %18 = vector.load %arg8[%c0_23, %c2, %c0_24] : memref<18x18x16xf32, #tpu.memory_space<vmem>>, vector<16x16x16xf32>
    %19 = vector.shape_cast %18 : vector<16x16x16xf32> to vector<256x16xf32>
    %c2_25 = arith.constant 2 : index
    %c0_26 = arith.constant 0 : index
    %c0_27 = arith.constant 0 : index
    %20 = vector.load %arg2[%c2_25, %c0_26, %c0_27] : memref<9x16x16xf32, #tpu.memory_space<vmem>>, vector<1x16x16xf32>
    %21 = vector.shape_cast %20 : vector<1x16x16xf32> to vector<16x16xf32>
    %cst_28 = arith.constant dense<0.000000e+00> : vector<256x16xf32>
    %22 = tpu.matmul %19, %21, %cst_28 {dimension_numbers = #tpu.dot_dimension_numbers<[1], [0], [0], [1], [0, 0, 1, 1], [], []>} : vector<256x16xf32>, vector<16x16xf32>, vector<256x16xf32> -> vector<256x16xf32>
    %23 = arith.addf %17, %22 : vector<256x16xf32>
    %c1_29 = arith.constant 1 : index
    %c0_30 = arith.constant 0 : index
    %c0_31 = arith.constant 0 : index
    %24 = vector.load %arg8[%c1_29, %c0_30, %c0_31] : memref<18x18x16xf32, #tpu.memory_space<vmem>>, vector<16x16x16xf32>
    %25 = vector.shape_cast %24 : vector<16x16x16xf32> to vector<256x16xf32>
    %c3 = arith.constant 3 : index
    %c0_32 = arith.constant 0 : index
    %c0_33 = arith.constant 0 : index
    %26 = vector.load %arg2[%c3, %c0_32, %c0_33] : memref<9x16x16xf32, #tpu.memory_space<vmem>>, vector<1x16x16xf32>
    %27 = vector.shape_cast %26 : vector<1x16x16xf32> to vector<16x16xf32>
    %cst_34 = arith.constant dense<0.000000e+00> : vector<256x16xf32>
    %28 = tpu.matmul %25, %27, %cst_34 {dimension_numbers = #tpu.dot_dimension_numbers<[1], [0], [0], [1], [0, 0, 1, 1], [], []>} : vector<256x16xf32>, vector<16x16xf32>, vector<256x16xf32> -> vector<256x16xf32>
    %29 = arith.addf %23, %28 : vector<256x16xf32>
    %c1_35 = arith.constant 1 : index
    %c1_36 = arith.constant 1 : index
    %c0_37 = arith.constant 0 : index
    %30 = vector.load %arg8[%c1_35, %c1_36, %c0_37] : memref<18x18x16xf32, #tpu.memory_space<vmem>>, vector<16x16x16xf32>
    %31 = vector.shape_cast %30 : vector<16x16x16xf32> to vector<256x16xf32>
    %c4 = arith.constant 4 : index
    %c0_38 = arith.constant 0 : index
    %c0_39 = arith.constant 0 : index
    %32 = vector.load %arg2[%c4, %c0_38, %c0_39] : memref<9x16x16xf32, #tpu.memory_space<vmem>>, vector<1x16x16xf32>
    %33 = vector.shape_cast %32 : vector<1x16x16xf32> to vector<16x16xf32>
    %cst_40 = arith.constant dense<0.000000e+00> : vector<256x16xf32>
    %34 = tpu.matmul %31, %33, %cst_40 {dimension_numbers = #tpu.dot_dimension_numbers<[1], [0], [0], [1], [0, 0, 1, 1], [], []>} : vector<256x16xf32>, vector<16x16xf32>, vector<256x16xf32> -> vector<256x16xf32>
    %35 = arith.addf %29, %34 : vector<256x16xf32>
    %c1_41 = arith.constant 1 : index
    %c2_42 = arith.constant 2 : index
    %c0_43 = arith.constant 0 : index
    %36 = vector.load %arg8[%c1_41, %c2_42, %c0_43] : memref<18x18x16xf32, #tpu.memory_space<vmem>>, vector<16x16x16xf32>
    %37 = vector.shape_cast %36 : vector<16x16x16xf32> to vector<256x16xf32>
    %c5 = arith.constant 5 : index
    %c0_44 = arith.constant 0 : index
    %c0_45 = arith.constant 0 : index
    %38 = vector.load %arg2[%c5, %c0_44, %c0_45] : memref<9x16x16xf32, #tpu.memory_space<vmem>>, vector<1x16x16xf32>
    %39 = vector.shape_cast %38 : vector<1x16x16xf32> to vector<16x16xf32>
    %cst_46 = arith.constant dense<0.000000e+00> : vector<256x16xf32>
    %40 = tpu.matmul %37, %39, %cst_46 {dimension_numbers = #tpu.dot_dimension_numbers<[1], [0], [0], [1], [0, 0, 1, 1], [], []>} : vector<256x16xf32>, vector<16x16xf32>, vector<256x16xf32> -> vector<256x16xf32>
    %41 = arith.addf %35, %40 : vector<256x16xf32>
    %c2_47 = arith.constant 2 : index
    %c0_48 = arith.constant 0 : index
    %c0_49 = arith.constant 0 : index
    %42 = vector.load %arg8[%c2_47, %c0_48, %c0_49] : memref<18x18x16xf32, #tpu.memory_space<vmem>>, vector<16x16x16xf32>
    %43 = vector.shape_cast %42 : vector<16x16x16xf32> to vector<256x16xf32>
    %c6 = arith.constant 6 : index
    %c0_50 = arith.constant 0 : index
    %c0_51 = arith.constant 0 : index
    %44 = vector.load %arg2[%c6, %c0_50, %c0_51] : memref<9x16x16xf32, #tpu.memory_space<vmem>>, vector<1x16x16xf32>
    %45 = vector.shape_cast %44 : vector<1x16x16xf32> to vector<16x16xf32>
    %cst_52 = arith.constant dense<0.000000e+00> : vector<256x16xf32>
    %46 = tpu.matmul %43, %45, %cst_52 {dimension_numbers = #tpu.dot_dimension_numbers<[1], [0], [0], [1], [0, 0, 1, 1], [], []>} : vector<256x16xf32>, vector<16x16xf32>, vector<256x16xf32> -> vector<256x16xf32>
    %47 = arith.addf %41, %46 : vector<256x16xf32>
    %c2_53 = arith.constant 2 : index
    %c1_54 = arith.constant 1 : index
    %c0_55 = arith.constant 0 : index
    %48 = vector.load %arg8[%c2_53, %c1_54, %c0_55] : memref<18x18x16xf32, #tpu.memory_space<vmem>>, vector<16x16x16xf32>
    %49 = vector.shape_cast %48 : vector<16x16x16xf32> to vector<256x16xf32>
    %c7 = arith.constant 7 : index
    %c0_56 = arith.constant 0 : index
    %c0_57 = arith.constant 0 : index
    %50 = vector.load %arg2[%c7, %c0_56, %c0_57] : memref<9x16x16xf32, #tpu.memory_space<vmem>>, vector<1x16x16xf32>
    %51 = vector.shape_cast %50 : vector<1x16x16xf32> to vector<16x16xf32>
    %cst_58 = arith.constant dense<0.000000e+00> : vector<256x16xf32>
    %52 = tpu.matmul %49, %51, %cst_58 {dimension_numbers = #tpu.dot_dimension_numbers<[1], [0], [0], [1], [0, 0, 1, 1], [], []>} : vector<256x16xf32>, vector<16x16xf32>, vector<256x16xf32> -> vector<256x16xf32>
    %53 = arith.addf %47, %52 : vector<256x16xf32>
    %c2_59 = arith.constant 2 : index
    %c2_60 = arith.constant 2 : index
    %c0_61 = arith.constant 0 : index
    %54 = vector.load %arg8[%c2_59, %c2_60, %c0_61] : memref<18x18x16xf32, #tpu.memory_space<vmem>>, vector<16x16x16xf32>
    %55 = vector.shape_cast %54 : vector<16x16x16xf32> to vector<256x16xf32>
    %c8 = arith.constant 8 : index
    %c0_62 = arith.constant 0 : index
    %c0_63 = arith.constant 0 : index
    %56 = vector.load %arg2[%c8, %c0_62, %c0_63] : memref<9x16x16xf32, #tpu.memory_space<vmem>>, vector<1x16x16xf32>
    %57 = vector.shape_cast %56 : vector<1x16x16xf32> to vector<16x16xf32>
    %cst_64 = arith.constant dense<0.000000e+00> : vector<256x16xf32>
    %58 = tpu.matmul %55, %57, %cst_64 {dimension_numbers = #tpu.dot_dimension_numbers<[1], [0], [0], [1], [0, 0, 1, 1], [], []>} : vector<256x16xf32>, vector<16x16xf32>, vector<256x16xf32> -> vector<256x16xf32>
    %59 = arith.addf %53, %58 : vector<256x16xf32>
    %c0_65 = arith.constant 0 : index
    %c0_66 = arith.constant 0 : index
    %60 = vector.load %arg3[%c0_65, %c0_66] : memref<1x16xf32, #tpu.memory_space<vmem>>, vector<1x16xf32>
    %61 = vector.broadcast %60 : vector<1x16xf32> to vector<256x16xf32>
    %62 = arith.addf %59, %61 : vector<256x16xf32>
    %c0_67 = arith.constant 0 : index
    %c0_68 = arith.constant 0 : index
    %63 = vector.load %arg6[%c0_67, %c0_68] : memref<16x16xf32, #tpu.memory_space<vmem>>, vector<16x16xf32>
    %c0_69 = arith.constant 0 : index
    %c0_70 = arith.constant 0 : index
    %64 = vector.load %arg4[%c0_69, %c0_70] : memref<1x16xf32, #tpu.memory_space<vmem>>, vector<1x16xf32>
    %c0_71 = arith.constant 0 : index
    %c0_72 = arith.constant 0 : index
    %65 = vector.load %arg5[%c0_71, %c0_72] : memref<1x16xf32, #tpu.memory_space<vmem>>, vector<1x16xf32>
    %cst_73 = arith.constant dense<0.000000e+00> : vector<16xf32>
    %66 = vector.multi_reduction <add>, %62, %cst_73 [0] : vector<256x16xf32> to vector<16xf32>
    %67 = vector.shape_cast %66 : vector<16xf32> to vector<1x16xf32>
    %68 = arith.mulf %62, %62 : vector<256x16xf32>
    %cst_74 = arith.constant dense<0.000000e+00> : vector<16xf32>
    %69 = vector.multi_reduction <add>, %68, %cst_74 [0] : vector<256x16xf32> to vector<16xf32>
    %70 = vector.shape_cast %69 : vector<16xf32> to vector<1x16xf32>
    %cst_75 = arith.constant dense<0.000000e+00> : vector<1x16xf32>
    %71 = tpu.matmul %67, %63, %cst_75 {dimension_numbers = #tpu.dot_dimension_numbers<[1], [0], [0], [1], [0, 0, 1, 1], [], []>} : vector<1x16xf32>, vector<16x16xf32>, vector<1x16xf32> -> vector<1x16xf32>
    %cst_76 = arith.constant 3.906250e-03 : f32
    %72 = vector.broadcast %cst_76 : f32 to vector<1x16xf32>
    %73 = arith.mulf %71, %72 : vector<1x16xf32>
    %cst_77 = arith.constant dense<0.000000e+00> : vector<1x16xf32>
    %74 = tpu.matmul %70, %63, %cst_77 {dimension_numbers = #tpu.dot_dimension_numbers<[1], [0], [0], [1], [0, 0, 1, 1], [], []>} : vector<1x16xf32>, vector<16x16xf32>, vector<1x16xf32> -> vector<1x16xf32>
    %cst_78 = arith.constant 3.906250e-03 : f32
    %75 = vector.broadcast %cst_78 : f32 to vector<1x16xf32>
    %76 = arith.mulf %74, %75 : vector<1x16xf32>
    %77 = arith.mulf %73, %73 : vector<1x16xf32>
    %78 = arith.subf %76, %77 : vector<1x16xf32>
    %79 = vector.broadcast %73 : vector<1x16xf32> to vector<256x16xf32>
    %80 = arith.subf %62, %79 : vector<256x16xf32>
    %cst_79 = arith.constant 9.99999974E-6 : f32
    %81 = vector.broadcast %cst_79 : f32 to vector<1x16xf32>
    %82 = arith.addf %78, %81 : vector<1x16xf32>
    %83 = math.rsqrt %82 : vector<1x16xf32>
    %84 = vector.broadcast %83 : vector<1x16xf32> to vector<256x16xf32>
    %85 = arith.mulf %80, %84 : vector<256x16xf32>
    %86 = vector.broadcast %64 : vector<1x16xf32> to vector<256x16xf32>
    %87 = arith.mulf %85, %86 : vector<256x16xf32>
    %88 = vector.broadcast %65 : vector<1x16xf32> to vector<256x16xf32>
    %89 = arith.addf %87, %88 : vector<256x16xf32>
    %90 = vector.shape_cast %89 : vector<256x16xf32> to vector<16x16x16xf32>
    %c0_80 = arith.constant 0 : index
    %c0_81 = arith.constant 0 : index
    %c0_82 = arith.constant 0 : index
    %c0_83 = arith.constant 0 : index
    %91 = vector.load %arg7[%c0_80, %c0_81, %c0_82, %c0_83] : memref<1x16x16x16xf32, #tpu.memory_space<vmem>>, vector<1x16x16x16xf32>
    %92 = vector.shape_cast %91 : vector<1x16x16x16xf32> to vector<16x16x16xf32>
    %93 = vector.shape_cast %90 : vector<16x16x16xf32> to vector<1x16x16x16xf32>
    tpu.vector_store %arg7[%c0_80, %c0_81, %c0_82, %c0_83], %93 {strides = array<i32>} : memref<1x16x16x16xf32, #tpu.memory_space<vmem>>, vector<1x16x16x16xf32>,
    return
  }
  func.func @transform_0(%arg0: i32) -> (i32, i32, i32, i32) {
    %c0_i32 = arith.constant 0 : i32
    %c0_i32_0 = arith.constant 0 : i32
    %c0_i32_1 = arith.constant 0 : i32
    %c0_i32_2 = arith.constant 0 : i32
    return %arg0, %c0_i32, %c0_i32_0, %c0_i32_1 : i32, i32, i32, i32
  }
  func.func @transform_1(%arg0: i32) -> (i32, i32, i32) {
    %c0_i32 = arith.constant 0 : i32
    %c0_i32_0 = arith.constant 0 : i32
    %c0_i32_1 = arith.constant 0 : i32
    %c0_i32_2 = arith.constant 0 : i32
    return %c0_i32, %c0_i32_0, %c0_i32_1 : i32, i32, i32
  }
  func.func @transform_2(%arg0: i32) -> (i32, i32) {
    %c0_i32 = arith.constant 0 : i32
    %c0_i32_0 = arith.constant 0 : i32
    %c0_i32_1 = arith.constant 0 : i32
    return %c0_i32, %c0_i32_0 : i32, i32
  }
  func.func @transform_3(%arg0: i32) -> (i32, i32) {
    %c0_i32 = arith.constant 0 : i32
    %c0_i32_0 = arith.constant 0 : i32
    %c0_i32_1 = arith.constant 0 : i32
    return %c0_i32, %c0_i32_0 : i32, i32
  }
  func.func @transform_4(%arg0: i32) -> (i32, i32) {
    %c0_i32 = arith.constant 0 : i32
    %c0_i32_0 = arith.constant 0 : i32
    %c0_i32_1 = arith.constant 0 : i32
    return %c0_i32, %c0_i32_0 : i32, i32
  }
  func.func @transform_5(%arg0: i32) -> (i32, i32) {
    %c0_i32 = arith.constant 0 : i32
    %c0_i32_0 = arith.constant 0 : i32
    %c0_i32_1 = arith.constant 0 : i32
    return %c0_i32, %c0_i32_0 : i32, i32
  }
  func.func @transform_6(%arg0: i32) -> (i32, i32, i32, i32) {
    %c0_i32 = arith.constant 0 : i32
    %c0_i32_0 = arith.constant 0 : i32
    %c0_i32_1 = arith.constant 0 : i32
    %c0_i32_2 = arith.constant 0 : i32
    return %arg0, %c0_i32, %c0_i32_0, %c0_i32_1 : i32, i32, i32, i32
  }
}

</mosaic_0001>

<llo_original>
// kernel: tpu_custom_call.1
$region0: #{tpu_custom_call.1}
  #allocation0 [shape = 'u32[]', space=smem, size = 0x4, offset = 0x4, fixed_abs, tag = 'smem constant byte address 0x4 - core index']
  #allocation1 [shape = 'u32[144,128]{1,0:T(1,128)}', space=vmem, size = 0x12000, scoped, tag = 'internal scratch']
  #allocation2 [shape = 'f32[18,18,16]{2,1,0:T(8,128)}', space=vmem, size = 0x36000, scoped, tag = 'scratch operand']
  %s0 = inlined_call_operand.hbm [shape: f32[2,16,16,16], index: 0, kind: input, shape index: {}]
  %s1 = inlined_call_operand.hbm [shape: f32[9,16,16], index: 1, kind: input, shape index: {}]
  %s2 = inlined_call_operand.vmem [shape: f32[1,16], index: 2, kind: input, shape index: {}]
  %s3 = inlined_call_operand.vmem [shape: f32[1,16], index: 3, kind: input, shape index: {}]
  %s4 = inlined_call_operand.hbm [shape: f32[1,16], index: 4, kind: input, shape index: {}]
  %s5 = inlined_call_operand.vmem [shape: f32[16,16], index: 5, kind: input, shape index: {}]
  %s6 = inlined_call_operand.hbm [shape: f32[2,16,16,16], index: 6, kind: output, shape index: {}]
  %s7 = sld [smem:[#allocation0]]
  $region69: #{tpu_custom_call.1} parent=0
    _
  %s9 = ssub.s32 1, %s7
  %s10 = scalar_select 0, %s9, %s7
  $region1: #{tpu_custom_call.1} parent=0
    #allocation3 [shape = 'u8[262144]{0}', space=vmem, size = 0x40000, scoped, tag = 'input window, operand 0']
    #allocation4 [shape = 's32[2]{0}', space=sflag, size = 0x8, scoped, tag = 'scoped memory for tpu_custom_call.1']
    #allocation5 [shape = 's32[2]{0}', space=sflag, size = 0x8, scoped, tag = 'scoped memory for tpu_custom_call.1']
    #allocation6 [shape = 'u8[73728]{0}', space=vmem, size = 0x12000, scoped, tag = 'input window, operand 1, single buffered']
    #allocation7 [shape = 's32[1]{0}', space=sflag, size = 0x4, scoped, tag = 'scoped memory for tpu_custom_call.1']
    #allocation8 [shape = 'u8[512]{0}', space=vmem, size = 0x400, scoped, tag = 'input window, operand 4, single buffered']
    #allocation9 [shape = 'u8[262144]{0}', space=vmem, size = 0x40000, scoped, tag = 'output window, operand 0']
    %11 = vsyncpa [#allocation4], 0
    %s12 = scalar_lea.sflag [#allocation4], 1
    %13 = vsyncpa %s12, 0
    %14 = vsyncpa [#allocation7], 0
    %15 = vsyncpa [#allocation5], 0
    %s16 = scalar_lea.sflag [#allocation5], 1
    %17 = vsyncpa %s16, 0
    loop: start=0, step=1, limit=4
    $region2: #{tpu_custom_call.1} parent=1 // loop_pre_header
      _
    $region3: #{tpu_custom_call.1} parent=1 // loop_header
      %s19 = sphi 0, %s23
      %p20 = scmp.ge.s32.totalorder %s19, 4
      %s29 = sphi 0, %s31
      %s32 = sphi 0, %s29
      %s33 = sphi 0, %s32
      %s49 = sphi 0, %s33
      %s53 = sphi 0, %s53
      %s55 = sphi 0, %s53
      %s56 = sphi 0, %s55
      %s70 = sphi 0, %s56
      %s74 = sphi 0, %s74
      %s76 = sphi 0, %s74
      %s77 = sphi 0, %s76
      %s91 = sphi 0, %s77
      %s95 = sphi 0, %s95
      %s97 = sphi 0, %s95
      %s98 = sphi 0, %s97
      %s112 = sphi 0, %s98
      %s116 = sphi 0, %s116
      %s118 = sphi 0, %s116
      %s119 = sphi 0, %s118
      %s133 = sphi 0, %s119
      %s137 = sphi 0, %s137
      %s139 = sphi 0, %s137
      %s140 = sphi 0, %s139
      %s154 = sphi 0, %s140
      %s160 = sphi 0, %s162
      %s163 = sphi 0, %s160
      %s164 = sphi 0, %s163
      %s180 = sphi 0, %s164
    $region4: #{tpu_custom_call.1} parent=1 // loop_header_branch
      %22 = sbr.rel (%p20) target = $region8
    $region5: #{tpu_custom_call.1} parent=1 // loop_body
      %s24 = ssub.s32 %s19, 1
      %s25 = ssub.s32 %s19, 2
      %s26 = sadd.s32 %s19, 1
      %s27 = ssub.s32 %s19, %s26
      %p28 = scmp.eq.s32.totalorder %s27, 0
      %s30 = sadd.s32 %s29, 1
      %s31 = scalar_select %p28, %s29, %s30
      %p34 = pneg %p28
      %p35 = scmp.eq.s32.totalorder %s19, 1
      %p36 = por %p34, %p35
      %p37 = scmp.ne.s32.totalorder %s29, %s32
      %p38 = scmp.eq.s32.totalorder %s19, 0
      %p39 = por %p37, %p38
      %p40 = scmp.ne.s32.totalorder %s29, %s32
      %p41 = scmp.eq.s32.totalorder %s24, 1
      %p42 = por %p40, %p41
      %p43 = scmp.ne.s32.totalorder %s32, %s33
      %p44 = scmp.eq.s32.totalorder %s24, 0
      %p45 = por %p43, %p44
      %p46 = scmp.ne.s32.totalorder %s32, %s33
      %p47 = scmp.eq.s32.totalorder %s25, 1
      %p48 = por %p46, %p47
      %p50 = scmp.ne.s32.totalorder %s33, %s49
      %p51 = scmp.eq.s32.totalorder %s25, 0
      %p52 = por %p50, %p51
      %s54 = sadd.s32 %s53, 1
      %p57 = scmp.eq.s32.totalorder %s19, 1
      %p58 = scmp.ne.s32.totalorder %s53, %s55
      %p59 = scmp.eq.s32.totalorder %s19, 0
      %p60 = por %p58, %p59
      %p61 = scmp.ne.s32.totalorder %s53, %s55
      %p62 = scmp.eq.s32.totalorder %s24, 1
      %p63 = por %p61, %p62
      %p64 = scmp.ne.s32.totalorder %s55, %s56
      %p65 = scmp.eq.s32.totalorder %s24, 0
      %p66 = por %p64, %p65
      %p67 = scmp.ne.s32.totalorder %s55, %s56
      %p68 = scmp.eq.s32.totalorder %s25, 1
      %p69 = por %p67, %p68
      %p71 = scmp.ne.s32.totalorder %s56, %s70
      %p72 = scmp.eq.s32.totalorder %s25, 0
      %p73 = por %p71, %p72
      %s75 = sadd.s32 %s74, 1
      %p78 = scmp.eq.s32.totalorder %s19, 1
      %p79 = scmp.ne.s32.totalorder %s74, %s76
      %p80 = scmp.eq.s32.totalorder %s19, 0
      %p81 = por %p79, %p80
      %p82 = scmp.ne.s32.totalorder %s74, %s76
      %p83 = scmp.eq.s32.totalorder %s24, 1
      %p84 = por %p82, %p83
      %p85 = scmp.ne.s32.totalorder %s76, %s77
      %p86 = scmp.eq.s32.totalorder %s24, 0
      %p87 = por %p85, %p86
      %p88 = scmp.ne.s32.totalorder %s76, %s77
      %p89 = scmp.eq.s32.totalorder %s25, 1
      %p90 = por %p88, %p89
      %p92 = scmp.ne.s32.totalorder %s77, %s91
      %p93 = scmp.eq.s32.totalorder %s25, 0
      %p94 = por %p92, %p93
      %s96 = sadd.s32 %s95, 1
      %p99 = scmp.eq.s32.totalorder %s19, 1
      %p100 = scmp.ne.s32.totalorder %s95, %s97
      %p101 = scmp.eq.s32.totalorder %s19, 0
      %p102 = por %p100, %p101
      %p103 = scmp.ne.s32.totalorder %s95, %s97
      %p104 = scmp.eq.s32.totalorder %s24, 1
      %p105 = por %p103, %p104
      %p106 = scmp.ne.s32.totalorder %s97, %s98
      %p107 = scmp.eq.s32.totalorder %s24, 0
      %p108 = por %p106, %p107
      %p109 = scmp.ne.s32.totalorder %s97, %s98
      %p110 = scmp.eq.s32.totalorder %s25, 1
      %p111 = por %p109, %p110
      %p113 = scmp.ne.s32.totalorder %s98, %s112
      %p114 = scmp.eq.s32.totalorder %s25, 0
      %p115 = por %p113, %p114
      %s117 = sadd.s32 %s116, 1
      %p120 = scmp.eq.s32.totalorder %s19, 1
      %p121 = scmp.ne.s32.totalorder %s116, %s118
      %p122 = scmp.eq.s32.totalorder %s19, 0
      %p123 = por %p121, %p122
      %p124 = scmp.ne.s32.totalorder %s116, %s118
      %p125 = scmp.eq.s32.totalorder %s24, 1
      %p126 = por %p124, %p125
      %p127 = scmp.ne.s32.totalorder %s118, %s119
      %p128 = scmp.eq.s32.totalorder %s24, 0
      %p129 = por %p127, %p128
      %p130 = scmp.ne.s32.totalorder %s118, %s119
      %p131 = scmp.eq.s32.totalorder %s25, 1
      %p132 = por %p130, %p131
      %p134 = scmp.ne.s32.totalorder %s119, %s133
      %p135 = scmp.eq.s32.totalorder %s25, 0
      %p136 = por %p134, %p135
      %s138 = sadd.s32 %s137, 1
      %p141 = scmp.eq.s32.totalorder %s19, 1
      %p142 = scmp.ne.s32.totalorder %s137, %s139
      %p143 = scmp.eq.s32.totalorder %s19, 0
      %p144 = por %p142, %p143
      %p145 = scmp.ne.s32.totalorder %s137, %s139
      %p146 = scmp.eq.s32.totalorder %s24, 1
      %p147 = por %p145, %p146
      %p148 = scmp.ne.s32.totalorder %s139, %s140
      %p149 = scmp.eq.s32.totalorder %s24, 0
      %p150 = por %p148, %p149
      %p151 = scmp.ne.s32.totalorder %s139, %s140
      %p152 = scmp.eq.s32.totalorder %s25, 1
      %p153 = por %p151, %p152
      %p155 = scmp.ne.s32.totalorder %s140, %s154
      %p156 = scmp.eq.s32.totalorder %s25, 0
      %p157 = por %p155, %p156
      %s158 = ssub.s32 %s19, %s26
      %p159 = scmp.eq.s32.totalorder %s158, 0
      %s161 = sadd.s32 %s160, 1
      %s162 = scalar_select %p159, %s160, %s161
      %p165 = pneg %p159
      %p166 = scmp.eq.s32.totalorder %s19, 1
      %p167 = por %p165, %p166
      %p168 = scmp.ne.s32.totalorder %s160, %s163
      %p169 = scmp.eq.s32.totalorder %s19, 0
      %p170 = por %p168, %p169
      %p171 = scmp.ne.s32.totalorder %s160, %s163
      %p172 = scmp.eq.s32.totalorder %s24, 1
      %p173 = por %p171, %p172
      %p174 = scmp.ne.s32.totalorder %s163, %s164
      %p175 = scmp.eq.s32.totalorder %s24, 0
      %p176 = por %p174, %p175
      %p177 = scmp.ne.s32.totalorder %s163, %s164
      %p178 = scmp.eq.s32.totalorder %s25, 1
      %p179 = por %p177, %p178
      %p181 = scmp.ne.s32.totalorder %s164, %s180
      %p182 = scmp.eq.s32.totalorder %s25, 0
      %p183 = por %p181, %p182
      %p184 = scmp.le.s32.totalorder 1, %s19
      %p185 = scmp.lt.s32.totalorder %s19, 3
      %p186 = pnand %p184, %p185
      %p187 = pneg %p186
      // Predicated region
      $region9: #{tpu_custom_call.1} parent=5 // pred_check
        _
      $region10: #{tpu_custom_call.1} parent=5 // pred_check_branch
        %189 = sbr.rel (%p186) target = $region12
      $region11: #{tpu_custom_call.1} parent=5 // pred_region
        %s190 = ssub.s32 %s19, 1
        // Predicated region
        $region13: #{tpu_custom_call.1} parent=11 // pred_check
          %p191 = pneg %p66
        $region14: #{tpu_custom_call.1} parent=11 // pred_check_branch
          %193 = sbr.rel (%p191) target = $region16
        $region15: #{tpu_custom_call.1} parent=11 // pred_region
          %s195 = ssub.s32 2304, 2304
          %196 = vsyncadd [#allocation7], %s195
          %s197 = sshll.u32 [#allocation6], 4
          %s198 = int_to_ptr.vmem [resolvable:$true] %s197
          %203 = dma.hbm_to_vmem [thread:$0]  %s1, 2304, %s198, [#allocation7], 128, 128, 8
        $region16: #{tpu_custom_call.1} parent=11 // pred_fallthru
          _
        // Predicated region
        $region17: #{tpu_custom_call.1} parent=11 // pred_check
          %p204 = pneg %p87
        $region18: #{tpu_custom_call.1} parent=11 // pred_check_branch
          %206 = sbr.rel (%p204) target = $region20
        $region19: #{tpu_custom_call.1} parent=11 // pred_region
          _
        $region20: #{tpu_custom_call.1} parent=11 // pred_fallthru
          _
        // Predicated region
        $region21: #{tpu_custom_call.1} parent=11 // pred_check
          %p207 = pneg %p108
        $region22: #{tpu_custom_call.1} parent=11 // pred_check_branch
          %209 = sbr.rel (%p207) target = $region24
        $region23: #{tpu_custom_call.1} parent=11 // pred_region
          _
        $region24: #{tpu_custom_call.1} parent=11 // pred_fallthru
          _
        // Predicated region
        $region25: #{tpu_custom_call.1} parent=11 // pred_check
          %p210 = pneg %p129
        $region26: #{tpu_custom_call.1} parent=11 // pred_check_branch
          %212 = sbr.rel (%p210) target = $region28
        $region27: #{tpu_custom_call.1} parent=11 // pred_region
          %s214 = ssub.s32 16, 16
          %215 = vsyncadd [#allocation7], %s214
          %s217 = sshll.u32 [#allocation8], 4
          %s218 = int_to_ptr.vmem [resolvable:$true] %s217
          %220 = dma.hbm_to_vmem [thread:$0]  %s4, 16, %s218, [#allocation7]
        $region28: #{tpu_custom_call.1} parent=11 // pred_fallthru
          _
        // Predicated region
        $region29: #{tpu_custom_call.1} parent=11 // pred_check
          %p221 = pneg %p150
        $region30: #{tpu_custom_call.1} parent=11 // pred_check_branch
          %223 = sbr.rel (%p221) target = $region32
        $region31: #{tpu_custom_call.1} parent=11 // pred_region
          _
        $region32: #{tpu_custom_call.1} parent=11 // pred_fallthru
          _
      $region12: #{tpu_custom_call.1} parent=5 // pred_fallthru
        _
      %p224 = scmp.lt.s32.totalorder %s19, 2
      // Predicated region
      $region33: #{tpu_custom_call.1} parent=5 // pred_check
        %p225 = pneg %p224
      $region34: #{tpu_custom_call.1} parent=5 // pred_check_branch
        %227 = sbr.rel (%p225) target = $region36
      $region35: #{tpu_custom_call.1} parent=5 // pred_region
        // Predicated region
        $region37: #{tpu_custom_call.1} parent=35 // pred_check
          %p228 = pneg %p39
        $region38: #{tpu_custom_call.1} parent=35 // pred_check_branch
          %230 = sbr.rel (%p228) target = $region40
        $region39: #{tpu_custom_call.1} parent=35 // pred_region
          %s231 = sand.u32 %s29, 1
          %s232 = scalar_lea.sflag [#allocation4], %s231
          %s233 = sand.u32 %s29, 1
          %s234 = smul.addr %s233, 256
          %s235 = scalar_lea.vmem [#allocation3], %s234
          %s237 = ssub.s32 4096, 4096
          %238 = vsyncadd %s232, %s237
          %s239 = smul.addr %s19, 32
          %s240 = smul.addr %s239, 128
          %s241 = scalar_lea.hbm %s0, %s240
          %s242 = sshll.u32 %s235, 4
          %s243 = int_to_ptr.vmem [resolvable:$true] %s242
          %248 = dma.hbm_to_vmem [thread:$0]  %s241, 4096, %s243, %s232, 128, 128, 8
        $region40: #{tpu_custom_call.1} parent=35 // pred_fallthru
          _
      $region36: #{tpu_custom_call.1} parent=5 // pred_fallthru
        _
      %p249 = scmp.le.s32.totalorder 1, %s19
      %p250 = scmp.lt.s32.totalorder %s19, 3
      %p251 = pnand %p249, %p250
      %p252 = pneg %p251
      // Predicated region
      $region41: #{tpu_custom_call.1} parent=5 // pred_check
        _
      $region42: #{tpu_custom_call.1} parent=5 // pred_check_branch
        %254 = sbr.rel (%p251) target = $region44
      $region43: #{tpu_custom_call.1} parent=5 // pred_region
        %s255 = ssub.s32 %s19, 1
        %s256 = sand.u32 %s32, 1
        %s257 = scalar_lea.sflag [#allocation4], %s256
        %s258 = sand.u32 %s32, 1
        %s259 = smul.addr %s258, 256
        %s260 = scalar_lea.vmem [#allocation3], %s259
        // Predicated region
        $region45: #{tpu_custom_call.1} parent=43 // pred_check
          %p261 = pneg %p45
        $region46: #{tpu_custom_call.1} parent=43 // pred_check_branch
          %263 = sbr.rel (%p261) target = $region48
        $region47: #{tpu_custom_call.1} parent=43 // pred_region
          %264 = dma.done %s257, 4096
        $region48: #{tpu_custom_call.1} parent=43 // pred_fallthru
          _
        // Predicated region
        $region49: #{tpu_custom_call.1} parent=43 // pred_check
          %p265 = pneg %p66
        $region50: #{tpu_custom_call.1} parent=43 // pred_check_branch
          %267 = sbr.rel (%p265) target = $region52
        $region51: #{tpu_custom_call.1} parent=43 // pred_region
          %268 = dma.done [#allocation7], 2304
        $region52: #{tpu_custom_call.1} parent=43 // pred_fallthru
          _
        // Predicated region
        $region53: #{tpu_custom_call.1} parent=43 // pred_check
          %p269 = pneg %p129
        $region54: #{tpu_custom_call.1} parent=43 // pred_check_branch
          %271 = sbr.rel (%p269) target = $region56
        $region55: #{tpu_custom_call.1} parent=43 // pred_region
          %272 = dma.done [#allocation7], 16
        $region56: #{tpu_custom_call.1} parent=43 // pred_fallthru
          _
        %s273 = sand.u32 %s32, 1
        %s274 = scalar_lea.sflag [#allocation4], %s273
        %s275 = sand.u32 %s32, 1
        %s276 = smul.addr %s275, 256
        %s277 = scalar_lea.vmem [#allocation3], %s276
        %p278 = pneg %p45
        %p279 = pneg %p42
        %p280 = pneg %p66
        %p281 = pneg %p63
        %p282 = pneg %p87
        %p283 = pneg %p84
        %p284 = pneg %p108
        %p285 = pneg %p105
        %p286 = pneg %p129
        %p287 = pneg %p126
        %p288 = pneg %p150
        %p289 = pneg %p147
        %p290 = pneg %p176
        %p291 = pneg %p173
        %s292 = sand.u32 %s163, 1
        %s293 = scalar_lea.sflag [#allocation5], %s292
        %s294 = sand.u32 %s163, 1
        %s295 = smul.addr %s294, 256
        %s296 = scalar_lea.vmem [#allocation9], %s295
        %vm297 = vcmask 130048
        %298 = vst.msk [vmem:[#allocation2] sm:$0xff] %vm297, 0.0
        %299 = vst.msk [vmem:[#allocation2 + $0x8] sm:$0xff] %vm297, 0.0
        %vm300 = vcmask 123904
        %301 = vst.msk [vmem:[#allocation2 + $0x10] sm:$0x3] %vm300, 0.0
        %302 = vst.msk [vmem:[#allocation2 + $0x18] sm:$0xff] %vm297, 0.0
        %303 = vst.msk [vmem:[#allocation2 + $0x20] sm:$0xff] %vm297, 0.0
        %304 = vst.msk [vmem:[#allocation2 + $0x28] sm:$0x3] %vm300, 0.0
        %305 = vst.msk [vmem:[#allocation2 + $0x30] sm:$0xff] %vm297, 0.0
        %306 = vst.msk [vmem:[#allocation2 + $0x38] sm:$0xff] %vm297, 0.0
        %307 = vst.msk [vmem:[#allocation2 + $0x40] sm:$0x3] %vm300, 0.0
        %308 = vst.msk [vmem:[#allocation2 + $0x48] sm:$0xff] %vm297, 0.0
        %309 = vst.msk [vmem:[#allocation2 + $0x50] sm:$0xff] %vm297, 0.0
        %310 = vst.msk [vmem:[#allocation2 + $0x58] sm:$0x3] %vm300, 0.0
        %311 = vst.msk [vmem:[#allocation2 + $0x60] sm:$0xff] %vm297, 0.0
        %312 = vst.msk [vmem:[#allocation2 + $0x68] sm:$0xff] %vm297, 0.0
        %313 = vst.msk [vmem:[#allocation2 + $0x70] sm:$0x3] %vm300, 0.0
        %314 = vst.msk [vmem:[#allocation2 + $0x78] sm:$0xff] %vm297, 0.0
        %315 = vst.msk [vmem:[#allocation2 + $0x80] sm:$0xff] %vm297, 0.0
        %316 = vst.msk [vmem:[#allocation2 + $0x88] sm:$0x3] %vm300, 0.0
        %317 = vst.msk [vmem:[#allocation2 + $0x90] sm:$0xff] %vm297, 0.0
        %318 = vst.msk [vmem:[#allocation2 + $0x98] sm:$0xff] %vm297, 0.0
        %319 = vst.msk [vmem:[#allocation2 + $0xa0] sm:$0x3] %vm300, 0.0
        %320 = vst.msk [vmem:[#allocation2 + $0xa8] sm:$0xff] %vm297, 0.0
        %321 = vst.msk [vmem:[#allocation2 + $0xb0] sm:$0xff] %vm297, 0.0
        %322 = vst.msk [vmem:[#allocation2 + $0xb8] sm:$0x3] %vm300, 0.0
        %323 = vst.msk [vmem:[#allocation2 + $0xc0] sm:$0xff] %vm297, 0.0
        %324 = vst.msk [vmem:[#allocation2 + $0xc8] sm:$0xff] %vm297, 0.0
        %325 = vst.msk [vmem:[#allocation2 + $0xd0] sm:$0x3] %vm300, 0.0
        %326 = vst.msk [vmem:[#allocation2 + $0xd8] sm:$0xff] %vm297, 0.0
        %327 = vst.msk [vmem:[#allocation2 + $0xe0] sm:$0xff] %vm297, 0.0
        %328 = vst.msk [vmem:[#allocation2 + $0xe8] sm:$0x3] %vm300, 0.0
        %329 = vst.msk [vmem:[#allocation2 + $0xf0] sm:$0xff] %vm297, 0.0
        %330 = vst.msk [vmem:[#allocation2 + $0xf8] sm:$0xff] %vm297, 0.0
        %331 = vst.msk [vmem:[#allocation2 + $0x100] sm:$0x3] %vm300, 0.0
        %332 = vst.msk [vmem:[#allocation2 + $0x108] sm:$0xff] %vm297, 0.0
        %333 = vst.msk [vmem:[#allocation2 + $0x110] sm:$0xff] %vm297, 0.0
        %334 = vst.msk [vmem:[#allocation2 + $0x118] sm:$0x3] %vm300, 0.0
        %335 = vst.msk [vmem:[#allocation2 + $0x120] sm:$0xff] %vm297, 0.0
        %336 = vst.msk [vmem:[#allocation2 + $0x128] sm:$0xff] %vm297, 0.0
        %337 = vst.msk [vmem:[#allocation2 + $0x130] sm:$0x3] %vm300, 0.0
        %338 = vst.msk [vmem:[#allocation2 + $0x138] sm:$0xff] %vm297, 0.0
        %339 = vst.msk [vmem:[#allocation2 + $0x140] sm:$0xff] %vm297, 0.0
        %340 = vst.msk [vmem:[#allocation2 + $0x148] sm:$0x3] %vm300, 0.0
        %341 = vst.msk [vmem:[#allocation2 + $0x150] sm:$0xff] %vm297, 0.0
        %342 = vst.msk [vmem:[#allocation2 + $0x158] sm:$0xff] %vm297, 0.0
        %343 = vst.msk [vmem:[#allocation2 + $0x160] sm:$0x3] %vm300, 0.0
        %344 = vst.msk [vmem:[#allocation2 + $0x168] sm:$0xff] %vm297, 0.0
        %345 = vst.msk [vmem:[#allocation2 + $0x170] sm:$0xff] %vm297, 0.0
        %346 = vst.msk [vmem:[#allocation2 + $0x178] sm:$0x3] %vm300, 0.0
        %347 = vst.msk [vmem:[#allocation2 + $0x180] sm:$0xff] %vm297, 0.0
        %348 = vst.msk [vmem:[#allocation2 + $0x188] sm:$0xff] %vm297, 0.0
        %349 = vst.msk [vmem:[#allocation2 + $0x190] sm:$0x3] %vm300, 0.0
        %350 = vst.msk [vmem:[#allocation2 + $0x198] sm:$0xff] %vm297, 0.0
        %351 = vst.msk [vmem:[#allocation2 + $0x1a0] sm:$0xff] %vm297, 0.0
        %352 = vst.msk [vmem:[#allocation2 + $0x1a8] sm:$0x3] %vm300, 0.0
        %v353 = vld [vmem:[%s260] sm:$0xff]
        %v354 = vld [vmem:[%s260 + $0x8] sm:$0xff]
        %v355 = vld [vmem:[%s260 + $0x10] sm:$0xff]
        %v356 = vld [vmem:[%s260 + $0x18] sm:$0xff]
        %v357 = vld [vmem:[%s260 + $0x20] sm:$0xff]
        %v358 = vld [vmem:[%s260 + $0x28] sm:$0xff]
        %v359 = vld [vmem:[%s260 + $0x30] sm:$0xff]
        %v360 = vld [vmem:[%s260 + $0x38] sm:$0xff]
        %v361 = vld [vmem:[%s260 + $0x40] sm:$0xff]
        %v362 = vld [vmem:[%s260 + $0x48] sm:$0xff]
        %v363 = vld [vmem:[%s260 + $0x50] sm:$0xff]
        %v364 = vld [vmem:[%s260 + $0x58] sm:$0xff]
        %v365 = vld [vmem:[%s260 + $0x60] sm:$0xff]
        %v366 = vld [vmem:[%s260 + $0x68] sm:$0xff]
        %v367 = vld [vmem:[%s260 + $0x70] sm:$0xff]
        %v368 = vld [vmem:[%s260 + $0x78] sm:$0xff]
        %v369 = vld [vmem:[%s260 + $0x80] sm:$0xff]
        %v370 = vld [vmem:[%s260 + $0x88] sm:$0xff]
        %v371 = vld [vmem:[%s260 + $0x90] sm:$0xff]
        %v372 = vld [vmem:[%s260 + $0x98] sm:$0xff]
        %v373 = vld [vmem:[%s260 + $0xa0] sm:$0xff]
        %v374 = vld [vmem:[%s260 + $0xa8] sm:$0xff]
        %v375 = vld [vmem:[%s260 + $0xb0] sm:$0xff]
        %v376 = vld [vmem:[%s260 + $0xb8] sm:$0xff]
        %v377 = vld [vmem:[%s260 + $0xc0] sm:$0xff]
        %v378 = vld [vmem:[%s260 + $0xc8] sm:$0xff]
        %v379 = vld [vmem:[%s260 + $0xd0] sm:$0xff]
        %v380 = vld [vmem:[%s260 + $0xd8] sm:$0xff]
        %v381 = vld [vmem:[%s260 + $0xe0] sm:$0xff]
        %v382 = vld [vmem:[%s260 + $0xe8] sm:$0xff]
        %v383 = vld [vmem:[%s260 + $0xf0] sm:$0xff]
        %v384 = vld [vmem:[%s260 + $0xf8] sm:$0xff]
        %s385 = scalar_lea.vmem [#allocation2], 24
        %386 = vst.msk [vmem:[%s385 + $0x1] sm:$0xff] %vm297, %v353
        %387 = vst.msk [vmem:[%s385 + $0x9] sm:$0xff] %vm297, %v354
        %388 = vst.msk [vmem:[%s385 + $0x19] sm:$0xff] %vm297, %v355
        %389 = vst.msk [vmem:[%s385 + $0x21] sm:$0xff] %vm297, %v356
        %390 = vst.msk [vmem:[%s385 + $0x31] sm:$0xff] %vm297, %v357
        %391 = vst.msk [vmem:[%s385 + $0x39] sm:$0xff] %vm297, %v358
        %392 = vst.msk [vmem:[%s385 + $0x49] sm:$0xff] %vm297, %v359
        %393 = vst.msk [vmem:[%s385 + $0x51] sm:$0xff] %vm297, %v360
        %394 = vst.msk [vmem:[%s385 + $0x61] sm:$0xff] %vm297, %v361
        %395 = vst.msk [vmem:[%s385 + $0x69] sm:$0xff] %vm297, %v362
        %396 = vst.msk [vmem:[%s385 + $0x79] sm:$0xff] %vm297, %v363
        %397 = vst.msk [vmem:[%s385 + $0x81] sm:$0xff] %vm297, %v364
        %398 = vst.msk [vmem:[%s385 + $0x91] sm:$0xff] %vm297, %v365
        %399 = vst.msk [vmem:[%s385 + $0x99] sm:$0xff] %vm297, %v366
        %400 = vst.msk [vmem:[%s385 + $0xa9] sm:$0xff] %vm297, %v367
        %401 = vst.msk [vmem:[%s385 + $0xb1] sm:$0xff] %vm297, %v368
        %402 = vst.msk [vmem:[%s385 + $0xc1] sm:$0xff] %vm297, %v369
        %403 = vst.msk [vmem:[%s385 + $0xc9] sm:$0xff] %vm297, %v370
        %404 = vst.msk [vmem:[%s385 + $0xd9] sm:$0xff] %vm297, %v371
        %405 = vst.msk [vmem:[%s385 + $0xe1] sm:$0xff] %vm297, %v372
        %406 = vst.msk [vmem:[%s385 + $0xf1] sm:$0xff] %vm297, %v373
        %407 = vst.msk [vmem:[%s385 + $0xf9] sm:$0xff] %vm297, %v374
        %408 = vst.msk [vmem:[%s385 + $0x109] sm:$0xff] %vm297, %v375
        %409 = vst.msk [vmem:[%s385 + $0x111] sm:$0xff] %vm297, %v376
        %410 = vst.msk [vmem:[%s385 + $0x121] sm:$0xff] %vm297, %v377
        %411 = vst.msk [vmem:[%s385 + $0x129] sm:$0xff] %vm297, %v378
        %412 = vst.msk [vmem:[%s385 + $0x139] sm:$0xff] %vm297, %v379
        %413 = vst.msk [vmem:[%s385 + $0x141] sm:$0xff] %vm297, %v380
        %414 = vst.msk [vmem:[%s385 + $0x151] sm:$0xff] %vm297, %v381
        %415 = vst.msk [vmem:[%s385 + $0x159] sm:$0xff] %vm297, %v382
        %416 = vst.msk [vmem:[%s385 + $0x169] sm:$0xff] %vm297, %v383
        %417 = vst.msk [vmem:[%s385 + $0x171] sm:$0xff] %vm297, %v384
        %v418 = vld [vmem:[#allocation2] sm:$0xff]
        %v419 = vld [vmem:[#allocation2 + $0x8] sm:$0xff]
        %v420 = vld [vmem:[#allocation2 + $0x18] sm:$0xff]
        %v421 = vld [vmem:[#allocation2 + $0x20] sm:$0xff]
        %v422 = vld [vmem:[#allocation2 + $0x30] sm:$0xff]
        %v423 = vld [vmem:[#allocation2 + $0x38] sm:$0xff]
        %v424 = vld [vmem:[#allocation2 + $0x48] sm:$0xff]
        %v425 = vld [vmem:[#allocation2 + $0x50] sm:$0xff]
        %v426 = vld [vmem:[#allocation2 + $0x60] sm:$0xff]
        %v427 = vld [vmem:[#allocation2 + $0x68] sm:$0xff]
        %v428 = vld [vmem:[#allocation2 + $0x78] sm:$0xff]
        %v429 = vld [vmem:[#allocation2 + $0x80] sm:$0xff]
        %v430 = vld [vmem:[#allocation2 + $0x90] sm:$0xff]
        %v431 = vld [vmem:[#allocation2 + $0x98] sm:$0xff]
        %v432 = vld [vmem:[#allocation2 + $0xa8] sm:$0xff]
        %v433 = vld [vmem:[#allocation2 + $0xb0] sm:$0xff]
        %v434 = vld [vmem:[#allocation2 + $0xc0] sm:$0xff]
        %v435 = vld [vmem:[#allocation2 + $0xc8] sm:$0xff]
        %v436 = vld [vmem:[#allocation2 + $0xd8] sm:$0xff]
        %v437 = vld [vmem:[#allocation2 + $0xe0] sm:$0xff]
        %v438 = vld [vmem:[#allocation2 + $0xf0] sm:$0xff]
        %v439 = vld [vmem:[#allocation2 + $0xf8] sm:$0xff]
        %v440 = vld [vmem:[#allocation2 + $0x108] sm:$0xff]
        %v441 = vld [vmem:[#allocation2 + $0x110] sm:$0xff]
        %v442 = vld [vmem:[#allocation2 + $0x120] sm:$0xff]
        %v443 = vld [vmem:[#allocation2 + $0x128] sm:$0xff]
        %v444 = vld [vmem:[#allocation2 + $0x138] sm:$0xff]
        %v445 = vld [vmem:[#allocation2 + $0x140] sm:$0xff]
        %v446 = vld [vmem:[#allocation2 + $0x150] sm:$0xff]
        %v447 = vld [vmem:[#allocation2 + $0x158] sm:$0xff]
        %v448 = vld [vmem:[#allocation2 + $0x168] sm:$0xff]
        %v449 = vld [vmem:[#allocation2 + $0x170] sm:$0xff]
        %v450 = vld [vmem:[#allocation6] sm:$0xff]
        %v451 = vld [vmem:[#allocation6 + $0x8] sm:$0xff]
        %v452 = vld [vmem:[#allocation2 + $0x1] sm:$0xff]
        %v453 = vld [vmem:[#allocation2 + $0x9] sm:$0xff]
        %v454 = vld [vmem:[#allocation2 + $0x19] sm:$0xff]
        %v455 = vld [vmem:[#allocation2 + $0x21] sm:$0xff]
        %v456 = vld [vmem:[#allocation2 + $0x31] sm:$0xff]
        %v457 = vld [vmem:[#allocation2 + $0x39] sm:$0xff]
        %v458 = vld [vmem:[#allocation2 + $0x49] sm:$0xff]
        %v459 = vld [vmem:[#allocation2 + $0x51] sm:$0xff]
        %v460 = vld [vmem:[#allocation2 + $0x61] sm:$0xff]
        %v461 = vld [vmem:[#allocation2 + $0x69] sm:$0xff]
        %v462 = vld [vmem:[#allocation2 + $0x79] sm:$0xff]
        %v463 = vld [vmem:[#allocation2 + $0x81] sm:$0xff]
        %v464 = vld [vmem:[#allocation2 + $0x91] sm:$0xff]
        %v465 = vld [vmem:[#allocation2 + $0x99] sm:$0xff]
        %v466 = vld [vmem:[#allocation2 + $0xa9] sm:$0xff]
        %v467 = vld [vmem:[#allocation2 + $0xb1] sm:$0xff]
        %v468 = vld [vmem:[#allocation2 + $0xc1] sm:$0xff]
        %v469 = vld [vmem:[#allocation2 + $0xc9] sm:$0xff]
        %v470 = vld [vmem:[#allocation2 + $0xd9] sm:$0xff]
        %v471 = vld [vmem:[#allocation2 + $0xe1] sm:$0xff]
        %v472 = vld [vmem:[#allocation2 + $0xf1] sm:$0xff]
        %v473 = vld [vmem:[#allocation2 + $0xf9] sm:$0xff]
        %v474 = vld [vmem:[#allocation2 + $0x109] sm:$0xff]
        %v475 = vld [vmem:[#allocation2 + $0x111] sm:$0xff]
        %v476 = vld [vmem:[#allocation2 + $0x121] sm:$0xff]
        %v477 = vld [vmem:[#allocation2 + $0x129] sm:$0xff]
        %v478 = vld [vmem:[#allocation2 + $0x139] sm:$0xff]
        %v479 = vld [vmem:[#allocation2 + $0x141] sm:$0xff]
        %v480 = vld [vmem:[#allocation2 + $0x151] sm:$0xff]
        %v481 = vld [vmem:[#allocation2 + $0x159] sm:$0xff]
        %v482 = vld [vmem:[#allocation2 + $0x169] sm:$0xff]
        %v483 = vld [vmem:[#allocation2 + $0x171] sm:$0xff]
        %s484 = scalar_lea.vmem [#allocation6], 16
        %v485 = vld [vmem:[%s484] sm:$0xff]
        %v486 = vld [vmem:[%s484 + $0x8] sm:$0xff]
        %v488 = vsel %vm297, %v452, 0
        %v491 = vsel %vm297, %v453, 0
        %v494 = vsel %vm297, %v454, 0
        %v497 = vsel %vm297, %v455, 0
        %v500 = vsel %vm297, %v456, 0
        %v503 = vsel %vm297, %v457, 0
        %v506 = vsel %vm297, %v458, 0
        %v509 = vsel %vm297, %v459, 0
        %v512 = vsel %vm297, %v460, 0
        %v515 = vsel %vm297, %v461, 0
        %v518 = vsel %vm297, %v462, 0
        %v521 = vsel %vm297, %v463, 0
        %v524 = vsel %vm297, %v464, 0
        %v527 = vsel %vm297, %v465, 0
        %v530 = vsel %vm297, %v466, 0
        %v533 = vsel %vm297, %v467, 0
        %v536 = vsel %vm297, %v468, 0
        %v539 = vsel %vm297, %v469, 0
        %v542 = vsel %vm297, %v470, 0
        %v545 = vsel %vm297, %v471, 0
        %v548 = vsel %vm297, %v472, 0
        %v551 = vsel %vm297, %v473, 0
        %v554 = vsel %vm297, %v474, 0
        %v557 = vsel %vm297, %v475, 0
        %v560 = vsel %vm297, %v476, 0
        %v563 = vsel %vm297, %v477, 0
        %v566 = vsel %vm297, %v478, 0
        %v569 = vsel %vm297, %v479, 0
        %v572 = vsel %vm297, %v480, 0
        %v575 = vsel %vm297, %v481, 0
        %v578 = vsel %vm297, %v482, 0
        %v581 = vsel %vm297, %v483, 0
        %583 = vmatprep.subr.mxu0 0.0
        %584 = vmatpush1.msra.mxu0 %v485
        %585 = vmatprep.subr.mxu0 0.0
        %586 = vmatpush1.msra.mxu0 %v486
        %587 = vmatprep.subr.mxu0 0.0
        %588 = vmatpush1.msra.mxu0 0.0
        %589 = vmatprep.subr.mxu0 0.0
        %590 = vmatpush1.msra.mxu0 0.0
        %591 = vmatprep.subr.mxu0 0.0
        %592 = vmatpush1.msra.mxu0 0.0
        %593 = vmatprep.subr.mxu0 0.0
        %594 = vmatpush1.msra.mxu0 0.0
        %595 = vmatprep.subr.mxu0 0.0
        %596 = vmatpush1.msra.mxu0 0.0
        %597 = vmatprep.subr.mxu0 0.0
        %598 = vmatpush1.msra.mxu0 0.0
        %599 = vmatprep.subr.mxu0 0.0
        %600 = vmatpush1.msra.mxu0 0.0
        %601 = vmatprep.subr.mxu0 0.0
        %602 = vmatpush1.msra.mxu0 0.0
        %603 = vmatprep.subr.mxu0 0.0
        %604 = vmatpush1.msra.mxu0 0.0
        %605 = vmatprep.subr.mxu0 0.0
        %606 = vmatpush1.msra.mxu0 0.0
        %607 = vmatprep.subr.mxu0 0.0
        %608 = vmatpush1.msra.mxu0 0.0
        %609 = vmatprep.subr.mxu0 0.0
        %610 = vmatpush1.msra.mxu0 0.0
        %611 = vmatprep.subr.mxu0 0.0
        %612 = vmatpush1.msra.mxu0 0.0
        %613 = vmatprep.subr.mxu0 0.0
        %614 = vmatpush1.msra.mxu0 0.0
        %615 = vmatprep.subr.mxu0 0.0
        %616 = vmatpush1.msra.mxu0 0.0
        %617 = vmatprep.subr.mxu0 0.0
        %618 = vmatpush1.msra.mxu0 0.0
        %619 = vmatprep.subr.mxu0 0.0
        %620 = vmatpush1.msra.mxu0 0.0
        %621 = vmatprep.subr.mxu0 0.0
        %622 = vmatpush1.msra.mxu0 0.0
        %623 = vmatprep.subr.mxu0 0.0
        %624 = vmatpush1.msra.mxu0 0.0
        %625 = vmatprep.subr.mxu0 0.0
        %626 = vmatpush1.msra.mxu0 0.0
        %627 = vmatprep.subr.mxu0 0.0
        %628 = vmatpush1.msra.mxu0 0.0
        %629 = vmatprep.subr.mxu0 0.0
        %630 = vmatpush1.msra.mxu0 0.0
        %631 = vmatprep.subr.mxu0 0.0
        %632 = vmatpush1.msra.mxu0 0.0
        %633 = vmatprep.subr.mxu0 0.0
        %634 = vmatpush1.msra.mxu0 0.0
        %635 = vmatprep.subr.mxu0 0.0
        %636 = vmatpush1.msra.mxu0 0.0
        %637 = vmatprep.subr.mxu0 0.0
        %638 = vmatpush1.msra.mxu0 0.0
        %639 = vmatprep.subr.mxu0 0.0
        %640 = vmatpush1.msra.mxu0 0.0
        %641 = vmatprep.subr.mxu0 0.0
        %642 = vmatpush1.msra.mxu0 0.0
        %643 = vmatprep.subr.mxu0 0.0
        %644 = vmatpush1.msra.mxu0 0.0
        %645 = vmatprep.subr.mxu0 0.0
        %646 = vmatpush1.msra.mxu0 0.0
        %647 = vmatprep.mubr.f32.mxu0 0.0
        %648 = vmatmul.mubr.f32.gmra.mrb[0].mxu0 %v488
        %v649 = vpop.f32.mrb[0].mxu0
        %v650 = vadd.f32 0.0, %v649
        %v651 = vpop.f32.mrb[0].mxu0
        %652 = vmatprep.mubr.f32.mxu0 0.0
        %653 = vmatmul.mubr.f32.gmra.mrb[0].mxu0 %v491
        %v654 = vpop.f32.mrb[0].mxu0
        %v655 = vadd.f32 0.0, %v654
        %v656 = vpop.f32.mrb[0].mxu0
        %657 = vmatprep.mubr.f32.mxu0 0.0
        %658 = vmatmul.mubr.f32.gmra.mrb[0].mxu0 %v494
        %v659 = vpop.f32.mrb[0].mxu0
        %v660 = vadd.f32 0.0, %v659
        %v661 = vpop.f32.mrb[0].mxu0
        %662 = vmatprep.mubr.f32.mxu0 0.0
        %663 = vmatmul.mubr.f32.gmra.mrb[0].mxu0 %v497
        %v664 = vpop.f32.mrb[0].mxu0
        %v665 = vadd.f32 0.0, %v664
        %v666 = vpop.f32.mrb[0].mxu0
        %667 = vmatprep.mubr.f32.mxu0 0.0
        %668 = vmatmul.mubr.f32.gmra.mrb[0].mxu0 %v500
        %v669 = vpop.f32.mrb[0].mxu0
        %v670 = vadd.f32 0.0, %v669
        %v671 = vpop.f32.mrb[0].mxu0
        %672 = vmatprep.mubr.f32.mxu0 0.0
        %673 = vmatmul.mubr.f32.gmra.mrb[0].mxu0 %v503
        %v674 = vpop.f32.mrb[0].mxu0
        %v675 = vadd.f32 0.0, %v674
        %v676 = vpop.f32.mrb[0].mxu0
        %677 = vmatprep.mubr.f32.mxu0 0.0
        %678 = vmatmul.mubr.f32.gmra.mrb[0].mxu0 %v506
        %v679 = vpop.f32.mrb[0].mxu0
        %v680 = vadd.f32 0.0, %v679
        %v681 = vpop.f32.mrb[0].mxu0
        %682 = vmatprep.mubr.f32.mxu0 0.0
        %683 = vmatmul.mubr.f32.gmra.mrb[0].mxu0 %v509
        %v684 = vpop.f32.mrb[0].mxu0
        %v685 = vadd.f32 0.0, %v684
        %v686 = vpop.f32.mrb[0].mxu0
        %687 = vmatprep.mubr.f32.mxu0 0.0
        %688 = vmatmul.mubr.f32.gmra.mrb[0].mxu0 %v512
        %v689 = vpop.f32.mrb[0].mxu0
        %v690 = vadd.f32 0.0, %v689
        %v691 = vpop.f32.mrb[0].mxu0
        %692 = vmatprep.mubr.f32.mxu0 0.0
        %693 = vmatmul.mubr.f32.gmra.mrb[0].mxu0 %v515
        %v694 = vpop.f32.mrb[0].mxu0
        %v695 = vadd.f32 0.0, %v694
        %v696 = vpop.f32.mrb[0].mxu0
        %697 = vmatprep.mubr.f32.mxu0 0.0
        %698 = vmatmul.mubr.f32.gmra.mrb[0].mxu0 %v518
        %v699 = vpop.f32.mrb[0].mxu0
        %v700 = vadd.f32 0.0, %v699
        %v701 = vpop.f32.mrb[0].mxu0
        %702 = vmatprep.mubr.f32.mxu0 0.0
        %703 = vmatmul.mubr.f32.gmra.mrb[0].mxu0 %v521
        %v704 = vpop.f32.mrb[0].mxu0
        %v705 = vadd.f32 0.0, %v704
        %v706 = vpop.f32.mrb[0].mxu0
        %707 = vmatprep.mubr.f32.mxu0 0.0
        %708 = vmatmul.mubr.f32.gmra.mrb[0].mxu0 %v524
        %v709 = vpop.f32.mrb[0].mxu0
        %v710 = vadd.f32 0.0, %v709
        %v711 = vpop.f32.mrb[0].mxu0
        %712 = vmatprep.mubr.f32.mxu0 0.0
        %713 = vmatmul.mubr.f32.gmra.mrb[0].mxu0 %v527
        %v714 = vpop.f32.mrb[0].mxu0
        %v715 = vadd.f32 0.0, %v714
        %v716 = vpop.f32.mrb[0].mxu0
        %717 = vmatprep.mubr.f32.mxu0 0.0
        %718 = vmatmul.mubr.f32.gmra.mrb[0].mxu0 %v530
        %v719 = vpop.f32.mrb[0].mxu0
        %v720 = vadd.f32 0.0, %v719
        %v721 = vpop.f32.mrb[0].mxu0
        %722 = vmatprep.mubr.f32.mxu0 0.0
        %723 = vmatmul.mubr.f32.gmra.mrb[0].mxu0 %v533
        %v724 = vpop.f32.mrb[0].mxu0
        %v725 = vadd.f32 0.0, %v724
        %v726 = vpop.f32.mrb[0].mxu0
        %727 = vmatprep.mubr.f32.mxu0 0.0
        %728 = vmatmul.mubr.f32.gmra.mrb[0].mxu0 %v536
        %v729 = vpop.f32.mrb[0].mxu0
        %v730 = vadd.f32 0.0, %v729
        %v731 = vpop.f32.mrb[0].mxu0
        %732 = vmatprep.mubr.f32.mxu0 0.0
        %733 = vmatmul.mubr.f32.gmra.mrb[0].mxu0 %v539
        %v734 = vpop.f32.mrb[0].mxu0
        %v735 = vadd.f32 0.0, %v734
        %v736 = vpop.f32.mrb[0].mxu0
        %737 = vmatprep.mubr.f32.mxu0 0.0
        %738 = vmatmul.mubr.f32.gmra.mrb[0].mxu0 %v542
        %v739 = vpop.f32.mrb[0].mxu0
        %v740 = vadd.f32 0.0, %v739
        %v741 = vpop.f32.mrb[0].mxu0
        %742 = vmatprep.mubr.f32.mxu0 0.0
        %743 = vmatmul.mubr.f32.gmra.mrb[0].mxu0 %v545
        %v744 = vpop.f32.mrb[0].mxu0
        %v745 = vadd.f32 0.0, %v744
        %v746 = vpop.f32.mrb[0].mxu0
        %747 = vmatprep.mubr.f32.mxu0 0.0
        %748 = vmatmul.mubr.f32.gmra.mrb[0].mxu0 %v548
        %v749 = vpop.f32.mrb[0].mxu0
        %v750 = vadd.f32 0.0, %v749
        %v751 = vpop.f32.mrb[0].mxu0
        %752 = vmatprep.mubr.f32.mxu0 0.0
        %753 = vmatmul.mubr.f32.gmra.mrb[0].mxu0 %v551
        %v754 = vpop.f32.mrb[0].mxu0
        %v755 = vadd.f32 0.0, %v754
        %v756 = vpop.f32.mrb[0].mxu0
        %757 = vmatprep.mubr.f32.mxu0 0.0
        %758 = vmatmul.mubr.f32.gmra.mrb[0].mxu0 %v554
        %v759 = vpop.f32.mrb[0].mxu0
        %v760 = vadd.f32 0.0, %v759
        %v761 = vpop.f32.mrb[0].mxu0
        %762 = vmatprep.mubr.f32.mxu0 0.0
        %763 = vmatmul.mubr.f32.gmra.mrb[0].mxu0 %v557
        %v764 = vpop.f32.mrb[0].mxu0
        %v765 = vadd.f32 0.0, %v764
        %v766 = vpop.f32.mrb[0].mxu0
        %767 = vmatprep.mubr.f32.mxu0 0.0
        %768 = vmatmul.mubr.f32.gmra.mrb[0].mxu0 %v560
        %v769 = vpop.f32.mrb[0].mxu0
        %v770 = vadd.f32 0.0, %v769
        %v771 = vpop.f32.mrb[0].mxu0
        %772 = vmatprep.mubr.f32.mxu0 0.0
        %773 = vmatmul.mubr.f32.gmra.mrb[0].mxu0 %v563
        %v774 = vpop.f32.mrb[0].mxu0
        %v775 = vadd.f32 0.0, %v774
        %v776 = vpop.f32.mrb[0].mxu0
        %777 = vmatprep.mubr.f32.mxu0 0.0
        %778 = vmatmul.mubr.f32.gmra.mrb[0].mxu0 %v566
        %v779 = vpop.f32.mrb[0].mxu0
        %v780 = vadd.f32 0.0, %v779
        %v781 = vpop.f32.mrb[0].mxu0
        %782 = vmatprep.mubr.f32.mxu0 0.0
        %783 = vmatmul.mubr.f32.gmra.mrb[0].mxu0 %v569
        %v784 = vpop.f32.mrb[0].mxu0
        %v785 = vadd.f32 0.0, %v784
        %v786 = vpop.f32.mrb[0].mxu0
        %787 = vmatprep.mubr.f32.mxu0 0.0
        %788 = vmatmul.mubr.f32.gmra.mrb[0].mxu0 %v572
        %v789 = vpop.f32.mrb[0].mxu0
        %v790 = vadd.f32 0.0, %v789
        %v791 = vpop.f32.mrb[0].mxu0
        %792 = vmatprep.mubr.f32.mxu0 0.0
        %793 = vmatmul.mubr.f32.gmra.mrb[0].mxu0 %v575
        %v794 = vpop.f32.mrb[0].mxu0
        %v795 = vadd.f32 0.0, %v794
        %v796 = vpop.f32.mrb[0].mxu0
        %797 = vmatprep.mubr.f32.mxu0 0.0
        %798 = vmatmul.mubr.f32.gmra.mrb[0].mxu0 %v578
        %v799 = vpop.f32.mrb[0].mxu0
        %v800 = vadd.f32 0.0, %v799
        %v801 = vpop.f32.mrb[0].mxu0
        %802 = vmatprep.mubr.f32.mxu0 0.0
        %803 = vmatmul.mubr.f32.gmra.mrb[0].mxu0 %v581
        %v804 = vpop.f32.mrb[0].mxu0
        %v805 = vadd.f32 0.0, %v804
        %v806 = vpop.f32.mrb[0].mxu0
        %807 = vdwg.mxu0
        %v809 = vsel %vm297, %v418, 0
        %v812 = vsel %vm297, %v419, 0
        %v815 = vsel %vm297, %v420, 0
        %v818 = vsel %vm297, %v421, 0
        %v821 = vsel %vm297, %v422, 0
        %v824 = vsel %vm297, %v423, 0
        %v827 = vsel %vm297, %v424, 0
        %v830 = vsel %vm297, %v425, 0
        %v833 = vsel %vm297, %v426, 0
        %v836 = vsel %vm297, %v427, 0
        %v839 = vsel %vm297, %v428, 0
        %v842 = vsel %vm297, %v429, 0
        %v845 = vsel %vm297, %v430, 0
        %v848 = vsel %vm297, %v431, 0
        %v851 = vsel %vm297, %v432, 0
        %v854 = vsel %vm297, %v433, 0
        %v857 = vsel %vm297, %v434, 0
        %v860 = vsel %vm297, %v435, 0
        %v863 = vsel %vm297, %v436, 0
        %v866 = vsel %vm297, %v437, 0
        %v869 = vsel %vm297, %v438, 0
        %v872 = vsel %vm297, %v439, 0
        %v875 = vsel %vm297, %v440, 0
        %v878 = vsel %vm297, %v441, 0
        %v881 = vsel %vm297, %v442, 0
        %v884 = vsel %vm297, %v443, 0
        %v887 = vsel %vm297, %v444, 0
        %v890 = vsel %vm297, %v445, 0
        %v893 = vsel %vm297, %v446, 0
        %v896 = vsel %vm297, %v447, 0
        %v899 = vsel %vm297, %v448, 0
        %v902 = vsel %vm297, %v449, 0
        %904 = vmatprep.subr.mxu0 0.0
        %905 = vmatpush1.msra.mxu0 %v450
        %906 = vmatprep.subr.mxu0 0.0
        %907 = vmatpush1.msra.mxu0 %v451
        %908 = vmatprep.subr.mxu0 0.0
        %909 = vmatpush1.msra.mxu0 0.0
        %910 = vmatprep.subr.mxu0 0.0
        %911 = vmatpush1.msra.mxu0 0.0
        %912 = vmatprep.subr.mxu0 0.0
        %913 = vmatpush1.msra.mxu0 0.0
        %914 = vmatprep.subr.mxu0 0.0
        %915 = vmatpush1.msra.mxu0 0.0
        %916 = vmatprep.subr.mxu0 0.0
        %917 = vmatpush1.msra.mxu0 0.0
        %918 = vmatprep.subr.mxu0 0.0
        %919 = vmatpush1.msra.mxu0 0.0
        %920 = vmatprep.subr.mxu0 0.0
        %921 = vmatpush1.msra.mxu0 0.0
        %922 = vmatprep.subr.mxu0 0.0
        %923 = vmatpush1.msra.mxu0 0.0
        %924 = vmatprep.subr.mxu0 0.0
        %925 = vmatpush1.msra.mxu0 0.0
        %926 = vmatprep.subr.mxu0 0.0
        %927 = vmatpush1.msra.mxu0 0.0
        %928 = vmatprep.subr.mxu0 0.0
        %929 = vmatpush1.msra.mxu0 0.0
        %930 = vmatprep.subr.mxu0 0.0
        %931 = vmatpush1.msra.mxu0 0.0
        %932 = vmatprep.subr.mxu0 0.0
        %933 = vmatpush1.msra.mxu0 0.0
        %934 = vmatprep.subr.mxu0 0.0
        %935 = vmatpush1.msra.mxu0 0.0
        %936 = vmatprep.subr.mxu0 0.0
        %937 = vmatpush1.msra.mxu0 0.0
        %938 = vmatprep.subr.mxu0 0.0
        %939 = vmatpush1.msra.mxu0 0.0
        %940 = vmatprep.subr.mxu0 0.0
        %941 = vmatpush1.msra.mxu0 0.0
        %942 = vmatprep.subr.mxu0 0.0
        %943 = vmatpush1.msra.mxu0 0.0
        %944 = vmatprep.subr.mxu0 0.0
        %945 = vmatpush1.msra.mxu0 0.0
        %946 = vmatprep.subr.mxu0 0.0
        %947 = vmatpush1.msra.mxu0 0.0
        %948 = vmatprep.subr.mxu0 0.0
        %949 = vmatpush1.msra.mxu0 0.0
        %950 = vmatprep.subr.mxu0 0.0
        %951 = vmatpush1.msra.mxu0 0.0
        %952 = vmatprep.subr.mxu0 0.0
        %953 = vmatpush1.msra.mxu0 0.0
        %954 = vmatprep.subr.mxu0 0.0
        %955 = vmatpush1.msra.mxu0 0.0
        %956 = vmatprep.subr.mxu0 0.0
        %957 = vmatpush1.msra.mxu0 0.0
        %958 = vmatprep.subr.mxu0 0.0
        %959 = vmatpush1.msra.mxu0 0.0
        %960 = vmatprep.subr.mxu0 0.0
        %961 = vmatpush1.msra.mxu0 0.0
        %962 = vmatprep.subr.mxu0 0.0
        %963 = vmatpush1.msra.mxu0 0.0
        %964 = vmatprep.subr.mxu0 0.0
        %965 = vmatpush1.msra.mxu0 0.0
        %966 = vmatprep.subr.mxu0 0.0
        %967 = vmatpush1.msra.mxu0 0.0
        %968 = vmatprep.mubr.f32.mxu0 0.0
        %969 = vmatmul.mubr.f32.gmra.mrb[0].mxu0 %v809
        %v970 = vpop.f32.mrb[0].mxu0
        %v971 = vadd.f32 %v650, %v970
        %v972 = vpop.f32.mrb[0].mxu0
        %973 = vmatprep.mubr.f32.mxu0 0.0
        %974 = vmatmul.mubr.f32.gmra.mrb[0].mxu0 %v812
        %v975 = vpop.f32.mrb[0].mxu0
        %v976 = vadd.f32 %v655, %v975
        %v977 = vpop.f32.mrb[0].mxu0
        %978 = vmatprep.mubr.f32.mxu0 0.0
        %979 = vmatmul.mubr.f32.gmra.mrb[0].mxu0 %v815
        %v980 = vpop.f32.mrb[0].mxu0
        %v981 = vadd.f32 %v660, %v980
        %v982 = vpop.f32.mrb[0].mxu0
        %983 = vmatprep.mubr.f32.mxu0 0.0
        %984 = vmatmul.mubr.f32.gmra.mrb[0].mxu0 %v818
        %v985 = vpop.f32.mrb[0].mxu0
        %v986 = vadd.f32 %v665, %v985
        %v987 = vpop.f32.mrb[0].mxu0
        %988 = vmatprep.mubr.f32.mxu0 0.0
        %989 = vmatmul.mubr.f32.gmra.mrb[0].mxu0 %v821
        %v990 = vpop.f32.mrb[0].mxu0
        %v991 = vadd.f32 %v670, %v990
        %v992 = vpop.f32.mrb[0].mxu0
        %993 = vmatprep.mubr.f32.mxu0 0.0
        %994 = vmatmul.mubr.f32.gmra.mrb[0].mxu0 %v824
        %v995 = vpop.f32.mrb[0].mxu0
        %v996 = vadd.f32 %v675, %v995
        %v997 = vpop.f32.mrb[0].mxu0
        %998 = vmatprep.mubr.f32.mxu0 0.0
        %999 = vmatmul.mubr.f32.gmra.mrb[0].mxu0 %v827
        %v1000 = vpop.f32.mrb[0].mxu0
        %v1001 = vadd.f32 %v680, %v1000
        %v1002 = vpop.f32.mrb[0].mxu0
        %1003 = vmatprep.mubr.f32.mxu0 0.0
        %1004 = vmatmul.mubr.f32.gmra.mrb[0].mxu0 %v830
        %v1005 = vpop.f32.mrb[0].mxu0
        %v1006 = vadd.f32 %v685, %v1005
        %v1007 = vpop.f32.mrb[0].mxu0
        %1008 = vmatprep.mubr.f32.mxu0 0.0
        %1009 = vmatmul.mubr.f32.gmra.mrb[0].mxu0 %v833
        %v1010 = vpop.f32.mrb[0].mxu0
        %v1011 = vadd.f32 %v690, %v1010
        %v1012 = vpop.f32.mrb[0].mxu0
        %1013 = vmatprep.mubr.f32.mxu0 0.0
        %1014 = vmatmul.mubr.f32.gmra.mrb[0].mxu0 %v836
        %v1015 = vpop.f32.mrb[0].mxu0
        %v1016 = vadd.f32 %v695, %v1015
        %v1017 = vpop.f32.mrb[0].mxu0
        %1018 = vmatprep.mubr.f32.mxu0 0.0
        %1019 = vmatmul.mubr.f32.gmra.mrb[0].mxu0 %v839
        %v1020 = vpop.f32.mrb[0].mxu0
        %v1021 = vadd.f32 %v700, %v1020
        %v1022 = vpop.f32.mrb[0].mxu0
        %1023 = vmatprep.mubr.f32.mxu0 0.0
        %1024 = vmatmul.mubr.f32.gmra.mrb[0].mxu0 %v842
        %v1025 = vpop.f32.mrb[0].mxu0
        %v1026 = vadd.f32 %v705, %v1025
        %v1027 = vpop.f32.mrb[0].mxu0
        %1028 = vmatprep.mubr.f32.mxu0 0.0
        %1029 = vmatmul.mubr.f32.gmra.mrb[0].mxu0 %v845
        %v1030 = vpop.f32.mrb[0].mxu0
        %v1031 = vadd.f32 %v710, %v1030
        %v1032 = vpop.f32.mrb[0].mxu0
        %1033 = vmatprep.mubr.f32.mxu0 0.0
        %1034 = vmatmul.mubr.f32.gmra.mrb[0].mxu0 %v848
        %v1035 = vpop.f32.mrb[0].mxu0
        %v1036 = vadd.f32 %v715, %v1035
        %v1037 = vpop.f32.mrb[0].mxu0
        %1038 = vmatprep.mubr.f32.mxu0 0.0
        %1039 = vmatmul.mubr.f32.gmra.mrb[0].mxu0 %v851
        %v1040 = vpop.f32.mrb[0].mxu0
        %v1041 = vadd.f32 %v720, %v1040
        %v1042 = vpop.f32.mrb[0].mxu0
        %1043 = vmatprep.mubr.f32.mxu0 0.0
        %1044 = vmatmul.mubr.f32.gmra.mrb[0].mxu0 %v854
        %v1045 = vpop.f32.mrb[0].mxu0
        %v1046 = vadd.f32 %v725, %v1045
        %v1047 = vpop.f32.mrb[0].mxu0
        %1048 = vmatprep.mubr.f32.mxu0 0.0
        %1049 = vmatmul.mubr.f32.gmra.mrb[0].mxu0 %v857
        %v1050 = vpop.f32.mrb[0].mxu0
        %v1051 = vadd.f32 %v730, %v1050
        %v1052 = vpop.f32.mrb[0].mxu0
        %1053 = vmatprep.mubr.f32.mxu0 0.0
        %1054 = vmatmul.mubr.f32.gmra.mrb[0].mxu0 %v860
        %v1055 = vpop.f32.mrb[0].mxu0
        %v1056 = vadd.f32 %v735, %v1055
        %v1057 = vpop.f32.mrb[0].mxu0
        %1058 = vmatprep.mubr.f32.mxu0 0.0
        %1059 = vmatmul.mubr.f32.gmra.mrb[0].mxu0 %v863
        %v1060 = vpop.f32.mrb[0].mxu0
        %v1061 = vadd.f32 %v740, %v1060
        %v1062 = vpop.f32.mrb[0].mxu0
        %1063 = vmatprep.mubr.f32.mxu0 0.0
        %1064 = vmatmul.mubr.f32.gmra.mrb[0].mxu0 %v866
        %v1065 = vpop.f32.mrb[0].mxu0
        %v1066 = vadd.f32 %v745, %v1065
        %v1067 = vpop.f32.mrb[0].mxu0
        %1068 = vmatprep.mubr.f32.mxu0 0.0
        %1069 = vmatmul.mubr.f32.gmra.mrb[0].mxu0 %v869
        %v1070 = vpop.f32.mrb[0].mxu0
        %v1071 = vadd.f32 %v750, %v1070
        %v1072 = vpop.f32.mrb[0].mxu0
        %1073 = vmatprep.mubr.f32.mxu0 0.0
        %1074 = vmatmul.mubr.f32.gmra.mrb[0].mxu0 %v872
        %v1075 = vpop.f32.mrb[0].mxu0
        %v1076 = vadd.f32 %v755, %v1075
        %v1077 = vpop.f32.mrb[0].mxu0
        %1078 = vmatprep.mubr.f32.mxu0 0.0
        %1079 = vmatmul.mubr.f32.gmra.mrb[0].mxu0 %v875
        %v1080 = vpop.f32.mrb[0].mxu0
        %v1081 = vadd.f32 %v760, %v1080
        %v1082 = vpop.f32.mrb[0].mxu0
        %1083 = vmatprep.mubr.f32.mxu0 0.0
        %1084 = vmatmul.mubr.f32.gmra.mrb[0].mxu0 %v878
        %v1085 = vpop.f32.mrb[0].mxu0
        %v1086 = vadd.f32 %v765, %v1085
        %v1087 = vpop.f32.mrb[0].mxu0
        %1088 = vmatprep.mubr.f32.mxu0 0.0
        %1089 = vmatmul.mubr.f32.gmra.mrb[0].mxu0 %v881
        %v1090 = vpop.f32.mrb[0].mxu0
        %v1091 = vadd.f32 %v770, %v1090
        %v1092 = vpop.f32.mrb[0].mxu0
        %1093 = vmatprep.mubr.f32.mxu0 0.0
        %1094 = vmatmul.mubr.f32.gmra.mrb[0].mxu0 %v884
        %v1095 = vpop.f32.mrb[0].mxu0
        %v1096 = vadd.f32 %v775, %v1095
        %v1097 = vpop.f32.mrb[0].mxu0
        %1098 = vmatprep.mubr.f32.mxu0 0.0
        %1099 = vmatmul.mubr.f32.gmra.mrb[0].mxu0 %v887
        %v1100 = vpop.f32.mrb[0].mxu0
        %v1101 = vadd.f32 %v780, %v1100
        %v1102 = vpop.f32.mrb[0].mxu0
        %1103 = vmatprep.mubr.f32.mxu0 0.0
        %1104 = vmatmul.mubr.f32.gmra.mrb[0].mxu0 %v890
        %v1105 = vpop.f32.mrb[0].mxu0
        %v1106 = vadd.f32 %v785, %v1105
        %v1107 = vpop.f32.mrb[0].mxu0
        %1108 = vmatprep.mubr.f32.mxu0 0.0
        %1109 = vmatmul.mubr.f32.gmra.mrb[0].mxu0 %v893
        %v1110 = vpop.f32.mrb[0].mxu0
        %v1111 = vadd.f32 %v790, %v1110
        %v1112 = vpop.f32.mrb[0].mxu0
        %1113 = vmatprep.mubr.f32.mxu0 0.0
        %1114 = vmatmul.mubr.f32.gmra.mrb[0].mxu0 %v896
        %v1115 = vpop.f32.mrb[0].mxu0
        %v1116 = vadd.f32 %v795, %v1115
        %v1117 = vpop.f32.mrb[0].mxu0
        %1118 = vmatprep.mubr.f32.mxu0 0.0
        %1119 = vmatmul.mubr.f32.gmra.mrb[0].mxu0 %v899
        %v1120 = vpop.f32.mrb[0].mxu0
        %v1121 = vadd.f32 %v800, %v1120
        %v1122 = vpop.f32.mrb[0].mxu0
        %1123 = vmatprep.mubr.f32.mxu0 0.0
        %1124 = vmatmul.mubr.f32.gmra.mrb[0].mxu0 %v902
        %v1125 = vpop.f32.mrb[0].mxu0
        %v1126 = vadd.f32 %v805, %v1125
        %v1127 = vpop.f32.mrb[0].mxu0
        %1128 = vdwg.mxu0
        %v1129 = vld [vmem:[#allocation2 + $0x2] sm:$0xff]
        %v1130 = vld [vmem:[#allocation2 + $0xa] sm:$0xff]
        %v1131 = vld [vmem:[#allocation2 + $0x1a] sm:$0xff]
        %v1132 = vld [vmem:[#allocation2 + $0x22] sm:$0xff]
        %v1133 = vld [vmem:[#allocation2 + $0x32] sm:$0xff]
        %v1134 = vld [vmem:[#allocation2 + $0x3a] sm:$0xff]
        %v1135 = vld [vmem:[#allocation2 + $0x4a] sm:$0xff]
        %v1136 = vld [vmem:[#allocation2 + $0x52] sm:$0xff]
        %v1137 = vld [vmem:[#allocation2 + $0x62] sm:$0xff]
        %v1138 = vld [vmem:[#allocation2 + $0x6a] sm:$0xff]
        %v1139 = vld [vmem:[#allocation2 + $0x7a] sm:$0xff]
        %v1140 = vld [vmem:[#allocation2 + $0x82] sm:$0xff]
        %v1141 = vld [vmem:[#allocation2 + $0x92] sm:$0xff]
        %v1142 = vld [vmem:[#allocation2 + $0x9a] sm:$0xff]
        %v1143 = vld [vmem:[#allocation2 + $0xaa] sm:$0xff]
        %v1144 = vld [vmem:[#allocation2 + $0xb2] sm:$0xff]
        %v1145 = vld [vmem:[#allocation2 + $0xc2] sm:$0xff]
        %v1146 = vld [vmem:[#allocation2 + $0xca] sm:$0xff]
        %v1147 = vld [vmem:[#allocation2 + $0xda] sm:$0xff]
        %v1148 = vld [vmem:[#allocation2 + $0xe2] sm:$0xff]
        %v1149 = vld [vmem:[#allocation2 + $0xf2] sm:$0xff]
        %v1150 = vld [vmem:[#allocation2 + $0xfa] sm:$0xff]
        %v1151 = vld [vmem:[#allocation2 + $0x10a] sm:$0xff]
        %v1152 = vld [vmem:[#allocation2 + $0x112] sm:$0xff]
        %v1153 = vld [vmem:[#allocation2 + $0x122] sm:$0xff]
        %v1154 = vld [vmem:[#allocation2 + $0x12a] sm:$0xff]
        %v1155 = vld [vmem:[#allocation2 + $0x13a] sm:$0xff]
        %v1156 = vld [vmem:[#allocation2 + $0x142] sm:$0xff]
        %v1157 = vld [vmem:[#allocation2 + $0x152] sm:$0xff]
        %v1158 = vld [vmem:[#allocation2 + $0x15a] sm:$0xff]
        %v1159 = vld [vmem:[#allocation2 + $0x16a] sm:$0xff]
        %v1160 = vld [vmem:[#allocation2 + $0x172] sm:$0xff]
        %s1161 = scalar_lea.vmem [#allocation6], 32
        %v1162 = vld [vmem:[%s1161] sm:$0xff]
        %v1163 = vld [vmem:[%s1161 + $0x8] sm:$0xff]
        %v1165 = vsel %vm297, %v1129, 0
        %v1168 = vsel %vm297, %v1130, 0
        %v1171 = vsel %vm297, %v1131, 0
        %v1174 = vsel %vm297, %v1132, 0
        %v1177 = vsel %vm297, %v1133, 0
        %v1180 = vsel %vm297, %v1134, 0
        %v1183 = vsel %vm297, %v1135, 0
        %v1186 = vsel %vm297, %v1136, 0
        %v1189 = vsel %vm297, %v1137, 0
        %v1192 = vsel %vm297, %v1138, 0
        %v1195 = vsel %vm297, %v1139, 0
        %v1198 = vsel %vm297, %v1140, 0
        %v1201 = vsel %vm297, %v1141, 0
        %v1204 = vsel %vm297, %v1142, 0
        %v1207 = vsel %vm297, %v1143, 0
        %v1210 = vsel %vm297, %v1144, 0
        %v1213 = vsel %vm297, %v1145, 0
        %v1216 = vsel %vm297, %v1146, 0
        %v1219 = vsel %vm297, %v1147, 0
        %v1222 = vsel %vm297, %v1148, 0
        %v1225 = vsel %vm297, %v1149, 0
        %v1228 = vsel %vm297, %v1150, 0
        %v1231 = vsel %vm297, %v1151, 0
        %v1234 = vsel %vm297, %v1152, 0
        %v1237 = vsel %vm297, %v1153, 0
        %v1240 = vsel %vm297, %v1154, 0
        %v1243 = vsel %vm297, %v1155, 0
        %v1246 = vsel %vm297, %v1156, 0
        %v1249 = vsel %vm297, %v1157, 0
        %v1252 = vsel %vm297, %v1158, 0
        %v1255 = vsel %vm297, %v1159, 0
        %v1258 = vsel %vm297, %v1160, 0
        %1260 = vmatprep.subr.mxu0 0.0
        %1261 = vmatpush1.msra.mxu0 %v1162
        %1262 = vmatprep.subr.mxu0 0.0
        %1263 = vmatpush1.msra.mxu0 %v1163
        %1264 = vmatprep.subr.mxu0 0.0
        %1265 = vmatpush1.msra.mxu0 0.0
        %1266 = vmatprep.subr.mxu0 0.0
        %1267 = vmatpush1.msra.mxu0 0.0
        %1268 = vmatprep.subr.mxu0 0.0
        %1269 = vmatpush1.msra.mxu0 0.0
        %1270 = vmatprep.subr.mxu0 0.0
        %1271 = vmatpush1.msra.mxu0 0.0
        %1272 = vmatprep.subr.mxu0 0.0
        %1273 = vmatpush1.msra.mxu0 0.0
        %1274 = vmatprep.subr.mxu0 0.0
        %1275 = vmatpush1.msra.mxu0 0.0
        %1276 = vmatprep.subr.mxu0 0.0
        %1277 = vmatpush1.msra.mxu0 0.0
        %1278 = vmatprep.subr.mxu0 0.0
        %1279 = vmatpush1.msra.mxu0 0.0
        %1280 = vmatprep.subr.mxu0 0.0
        %1281 = vmatpush1.msra.mxu0 0.0
        %1282 = vmatprep.subr.mxu0 0.0
        %1283 = vmatpush1.msra.mxu0 0.0
        %1284 = vmatprep.subr.mxu0 0.0
        %1285 = vmatpush1.msra.mxu0 0.0
        %1286 = vmatprep.subr.mxu0 0.0
        %1287 = vmatpush1.msra.mxu0 0.0
        %1288 = vmatprep.subr.mxu0 0.0
        %1289 = vmatpush1.msra.mxu0 0.0
        %1290 = vmatprep.subr.mxu0 0.0
        %1291 = vmatpush1.msra.mxu0 0.0
        %1292 = vmatprep.subr.mxu0 0.0
        %1293 = vmatpush1.msra.mxu0 0.0
        %1294 = vmatprep.subr.mxu0 0.0
        %1295 = vmatpush1.msra.mxu0 0.0
        %1296 = vmatprep.subr.mxu0 0.0
        %1297 = vmatpush1.msra.mxu0 0.0
        %1298 = vmatprep.subr.mxu0 0.0
        %1299 = vmatpush1.msra.mxu0 0.0
        %1300 = vmatprep.subr.mxu0 0.0
        %1301 = vmatpush1.msra.mxu0 0.0
        %1302 = vmatprep.subr.mxu0 0.0
        %1303 = vmatpush1.msra.mxu0 0.0
        %1304 = vmatprep.subr.mxu0 0.0
        %1305 = vmatpush1.msra.mxu0 0.0
        %1306 = vmatprep.subr.mxu0 0.0
        %1307 = vmatpush1.msra.mxu0 0.0
        %1308 = vmatprep.subr.mxu0 0.0
        %1309 = vmatpush1.msra.mxu0 0.0
        %1310 = vmatprep.subr.mxu0 0.0
        %1311 = vmatpush1.msra.mxu0 0.0
        %1312 = vmatprep.subr.mxu0 0.0
        %1313 = vmatpush1.msra.mxu0 0.0
        %1314 = vmatprep.subr.mxu0 0.0
        %1315 = vmatpush1.msra.mxu0 0.0
        %1316 = vmatprep.subr.mxu0 0.0
        %1317 = vmatpush1.msra.mxu0 0.0
        %1318 = vmatprep.subr.mxu0 0.0
        %1319 = vmatpush1.msra.mxu0 0.0
        %1320 = vmatprep.subr.mxu0 0.0
        %1321 = vmatpush1.msra.mxu0 0.0
        %1322 = vmatprep.subr.mxu0 0.0
        %1323 = vmatpush1.msra.mxu0 0.0
        %1324 = vmatprep.mubr.f32.mxu0 0.0
        %1325 = vmatmul.mubr.f32.gmra.mrb[0].mxu0 %v1165
        %v1326 = vpop.f32.mrb[0].mxu0
        %v1327 = vadd.f32 0.0, %v1326
        %v1328 = vpop.f32.mrb[0].mxu0
        %1329 = vmatprep.mubr.f32.mxu0 0.0
        %1330 = vmatmul.mubr.f32.gmra.mrb[0].mxu0 %v1168
        %v1331 = vpop.f32.mrb[0].mxu0
        %v1332 = vadd.f32 0.0, %v1331
        %v1333 = vpop.f32.mrb[0].mxu0
        %1334 = vmatprep.mubr.f32.mxu0 0.0
        %1335 = vmatmul.mubr.f32.gmra.mrb[0].mxu0 %v1171
        %v1336 = vpop.f32.mrb[0].mxu0
        %v1337 = vadd.f32 0.0, %v1336
        %v1338 = vpop.f32.mrb[0].mxu0
        %1339 = vmatprep.mubr.f32.mxu0 0.0
        %1340 = vmatmul.mubr.f32.gmra.mrb[0].mxu0 %v1174
        %v1341 = vpop.f32.mrb[0].mxu0
        %v1342 = vadd.f32 0.0, %v1341
        %v1343 = vpop.f32.mrb[0].mxu0
        %1344 = vmatprep.mubr.f32.mxu0 0.0
        %1345 = vmatmul.mubr.f32.gmra.mrb[0].mxu0 %v1177
        %v1346 = vpop.f32.mrb[0].mxu0
        %v1347 = vadd.f32 0.0, %v1346
        %v1348 = vpop.f32.mrb[0].mxu0
        %1349 = vmatprep.mubr.f32.mxu0 0.0
        %1350 = vmatmul.mubr.f32.gmra.mrb[0].mxu0 %v1180
        %v1351 = vpop.f32.mrb[0].mxu0
        %v1352 = vadd.f32 0.0, %v1351
        %v1353 = vpop.f32.mrb[0].mxu0
        %1354 = vmatprep.mubr.f32.mxu0 0.0
        %1355 = vmatmul.mubr.f32.gmra.mrb[0].mxu0 %v1183
        %v1356 = vpop.f32.mrb[0].mxu0
        %v1357 = vadd.f32 0.0, %v1356
        %v1358 = vpop.f32.mrb[0].mxu0
        %1359 = vmatprep.mubr.f32.mxu0 0.0
        %1360 = vmatmul.mubr.f32.gmra.mrb[0].mxu0 %v1186
        %v1361 = vpop.f32.mrb[0].mxu0
        %v1362 = vadd.f32 0.0, %v1361
        %v1363 = vpop.f32.mrb[0].mxu0
        %1364 = vmatprep.mubr.f32.mxu0 0.0
        %1365 = vmatmul.mubr.f32.gmra.mrb[0].mxu0 %v1189
        %v1366 = vpop.f32.mrb[0].mxu0
        %v1367 = vadd.f32 0.0, %v1366
        %v1368 = vpop.f32.mrb[0].mxu0
        %1369 = vmatprep.mubr.f32.mxu0 0.0
        %1370 = vmatmul.mubr.f32.gmra.mrb[0].mxu0 %v1192
        %v1371 = vpop.f32.mrb[0].mxu0
        %v1372 = vadd.f32 0.0, %v1371
        %v1373 = vpop.f32.mrb[0].mxu0
        %1374 = vmatprep.mubr.f32.mxu0 0.0
        %1375 = vmatmul.mubr.f32.gmra.mrb[0].mxu0 %v1195
        %v1376 = vpop.f32.mrb[0].mxu0
        %v1377 = vadd.f32 0.0, %v1376
        %v1378 = vpop.f32.mrb[0].mxu0
        %1379 = vmatprep.mubr.f32.mxu0 0.0
        %1380 = vmatmul.mubr.f32.gmra.mrb[0].mxu0 %v1198
        %v1381 = vpop.f32.mrb[0].mxu0
        %v1382 = vadd.f32 0.0, %v1381
        %v1383 = vpop.f32.mrb[0].mxu0
        %1384 = vmatprep.mubr.f32.mxu0 0.0
        %1385 = vmatmul.mubr.f32.gmra.mrb[0].mxu0 %v1201
        %v1386 = vpop.f32.mrb[0].mxu0
        %v1387 = vadd.f32 0.0, %v1386
        %v1388 = vpop.f32.mrb[0].mxu0
        %1389 = vmatprep.mubr.f32.mxu0 0.0
        %1390 = vmatmul.mubr.f32.gmra.mrb[0].mxu0 %v1204
        %v1391 = vpop.f32.mrb[0].mxu0
        %v1392 = vadd.f32 0.0, %v1391
        %v1393 = vpop.f32.mrb[0].mxu0
        %1394 = vmatprep.mubr.f32.mxu0 0.0
        %1395 = vmatmul.mubr.f32.gmra.mrb[0].mxu0 %v1207
        %v1396 = vpop.f32.mrb[0].mxu0
        %v1397 = vadd.f32 0.0, %v1396
        %v1398 = vpop.f32.mrb[0].mxu0
        %1399 = vmatprep.mubr.f32.mxu0 0.0
        %1400 = vmatmul.mubr.f32.gmra.mrb[0].mxu0 %v1210
        %v1401 = vpop.f32.mrb[0].mxu0
        %v1402 = vadd.f32 0.0, %v1401
        %v1403 = vpop.f32.mrb[0].mxu0
        %1404 = vmatprep.mubr.f32.mxu0 0.0
        %1405 = vmatmul.mubr.f32.gmra.mrb[0].mxu0 %v1213
        %v1406 = vpop.f32.mrb[0].mxu0
        %v1407 = vadd.f32 0.0, %v1406
        %v1408 = vpop.f32.mrb[0].mxu0
        %1409 = vmatprep.mubr.f32.mxu0 0.0
        %1410 = vmatmul.mubr.f32.gmra.mrb[0].mxu0 %v1216
        %v1411 = vpop.f32.mrb[0].mxu0
        %v1412 = vadd.f32 0.0, %v1411
        %v1413 = vpop.f32.mrb[0].mxu0
        %1414 = vmatprep.mubr.f32.mxu0 0.0
        %1415 = vmatmul.mubr.f32.gmra.mrb[0].mxu0 %v1219
        %v1416 = vpop.f32.mrb[0].mxu0
        %v1417 = vadd.f32 0.0, %v1416
        %v1418 = vpop.f32.mrb[0].mxu0
        %1419 = vmatprep.mubr.f32.mxu0 0.0
        %1420 = vmatmul.mubr.f32.gmra.mrb[0].mxu0 %v1222
        %v1421 = vpop.f32.mrb[0].mxu0
        %v1422 = vadd.f32 0.0, %v1421
        %v1423 = vpop.f32.mrb[0].mxu0
        %1424 = vmatprep.mubr.f32.mxu0 0.0
        %1425 = vmatmul.mubr.f32.gmra.mrb[0].mxu0 %v1225
        %v1426 = vpop.f32.mrb[0].mxu0
        %v1427 = vadd.f32 0.0, %v1426
        %v1428 = vpop.f32.mrb[0].mxu0
        %1429 = vmatprep.mubr.f32.mxu0 0.0
        %1430 = vmatmul.mubr.f32.gmra.mrb[0].mxu0 %v1228
        %v1431 = vpop.f32.mrb[0].mxu0
        %v1432 = vadd.f32 0.0, %v1431
        %v1433 = vpop.f32.mrb[0].mxu0
        %1434 = vmatprep.mubr.f32.mxu0 0.0
        %1435 = vmatmul.mubr.f32.gmra.mrb[0].mxu0 %v1231
        %v1436 = vpop.f32.mrb[0].mxu0
        %v1437 = vadd.f32 0.0, %v1436
        %v1438 = vpop.f32.mrb[0].mxu0
        %1439 = vmatprep.mubr.f32.mxu0 0.0
        %1440 = vmatmul.mubr.f32.gmra.mrb[0].mxu0 %v1234
        %v1441 = vpop.f32.mrb[0].mxu0
        %v1442 = vadd.f32 0.0, %v1441
        %v1443 = vpop.f32.mrb[0].mxu0
        %1444 = vmatprep.mubr.f32.mxu0 0.0
        %1445 = vmatmul.mubr.f32.gmra.mrb[0].mxu0 %v1237
        %v1446 = vpop.f32.mrb[0].mxu0
        %v1447 = vadd.f32 0.0, %v1446
        %v1448 = vpop.f32.mrb[0].mxu0
        %1449 = vmatprep.mubr.f32.mxu0 0.0
        %1450 = vmatmul.mubr.f32.gmra.mrb[0].mxu0 %v1240
        %v1451 = vpop.f32.mrb[0].mxu0
        %v1452 = vadd.f32 0.0, %v1451
        %v1453 = vpop.f32.mrb[0].mxu0
        %1454 = vmatprep.mubr.f32.mxu0 0.0
        %1455 = vmatmul.mubr.f32.gmra.mrb[0].mxu0 %v1243
        %v1456 = vpop.f32.mrb[0].mxu0
        %v1457 = vadd.f32 0.0, %v1456
        %v1458 = vpop.f32.mrb[0].mxu0
        %1459 = vmatprep.mubr.f32.mxu0 0.0
        %1460 = vmatmul.mubr.f32.gmra.mrb[0].mxu0 %v1246
        %v1461 = vpop.f32.mrb[0].mxu0
        %v1462 = vadd.f32 0.0, %v1461
        %v1463 = vpop.f32.mrb[0].mxu0
        %1464 = vmatprep.mubr.f32.mxu0 0.0
        %1465 = vmatmul.mubr.f32.gmra.mrb[0].mxu0 %v1249
        %v1466 = vpop.f32.mrb[0].mxu0
        %v1467 = vadd.f32 0.0, %v1466
        %v1468 = vpop.f32.mrb[0].mxu0
        %1469 = vmatprep.mubr.f32.mxu0 0.0
        %1470 = vmatmul.mubr.f32.gmra.mrb[0].mxu0 %v1252
        %v1471 = vpop.f32.mrb[0].mxu0
        %v1472 = vadd.f32 0.0, %v1471
        %v1473 = vpop.f32.mrb[0].mxu0
        %1474 = vmatprep.mubr.f32.mxu0 0.0
        %1475 = vmatmul.mubr.f32.gmra.mrb[0].mxu0 %v1255
        %v1476 = vpop.f32.mrb[0].mxu0
        %v1477 = vadd.f32 0.0, %v1476
        %v1478 = vpop.f32.mrb[0].mxu0
        %1479 = vmatprep.mubr.f32.mxu0 0.0
        %1480 = vmatmul.mubr.f32.gmra.mrb[0].mxu0 %v1258
        %v1481 = vpop.f32.mrb[0].mxu0
        %v1482 = vadd.f32 0.0, %v1481
        %v1483 = vpop.f32.mrb[0].mxu0
        %1484 = vdwg.mxu0
        %v1485 = vadd.f32 %v971, %v1327
        %v1486 = vadd.f32 %v976, %v1332
        %v1487 = vadd.f32 %v981, %v1337
        %v1488 = vadd.f32 %v986, %v1342
        %v1489 = vadd.f32 %v991, %v1347
        %v1490 = vadd.f32 %v996, %v1352
        %v1491 = vadd.f32 %v1001, %v1357
        %v1492 = vadd.f32 %v1006, %v1362
        %v1493 = vadd.f32 %v1011, %v1367
        %v1494 = vadd.f32 %v1016, %v1372
        %v1495 = vadd.f32 %v1021, %v1377
        %v1496 = vadd.f32 %v1026, %v1382
        %v1497 = vadd.f32 %v1031, %v1387
        %v1498 = vadd.f32 %v1036, %v1392
        %v1499 = vadd.f32 %v1041, %v1397
        %v1500 = vadd.f32 %v1046, %v1402
        %v1501 = vadd.f32 %v1051, %v1407
        %v1502 = vadd.f32 %v1056, %v1412
        %v1503 = vadd.f32 %v1061, %v1417
        %v1504 = vadd.f32 %v1066, %v1422
        %v1505 = vadd.f32 %v1071, %v1427
        %v1506 = vadd.f32 %v1076, %v1432
        %v1507 = vadd.f32 %v1081, %v1437
        %v1508 = vadd.f32 %v1086, %v1442
        %v1509 = vadd.f32 %v1091, %v1447
        %v1510 = vadd.f32 %v1096, %v1452
        %v1511 = vadd.f32 %v1101, %v1457
        %v1512 = vadd.f32 %v1106, %v1462
        %v1513 = vadd.f32 %v1111, %v1467
        %v1514 = vadd.f32 %v1116, %v1472
        %v1515 = vadd.f32 %v1121, %v1477
        %v1516 = vadd.f32 %v1126, %v1482
        %v1517 = vld [vmem:[%s385] sm:$0xff]
        %v1518 = vld [vmem:[%s385 + $0x8] sm:$0xff]
        %v1519 = vld [vmem:[%s385 + $0x18] sm:$0xff]
        %v1520 = vld [vmem:[%s385 + $0x20] sm:$0xff]
        %v1521 = vld [vmem:[%s385 + $0x30] sm:$0xff]
        %v1522 = vld [vmem:[%s385 + $0x38] sm:$0xff]
        %v1523 = vld [vmem:[%s385 + $0x48] sm:$0xff]
        %v1524 = vld [vmem:[%s385 + $0x50] sm:$0xff]
        %v1525 = vld [vmem:[%s385 + $0x60] sm:$0xff]
        %v1526 = vld [vmem:[%s385 + $0x68] sm:$0xff]
        %v1527 = vld [vmem:[%s385 + $0x78] sm:$0xff]
        %v1528 = vld [vmem:[%s385 + $0x80] sm:$0xff]
        %v1529 = vld [vmem:[%s385 + $0x90] sm:$0xff]
        %v1530 = vld [vmem:[%s385 + $0x98] sm:$0xff]
        %v1531 = vld [vmem:[%s385 + $0xa8] sm:$0xff]
        %v1532 = vld [vmem:[%s385 + $0xb0] sm:$0xff]
        %v1533 = vld [vmem:[%s385 + $0xc0] sm:$0xff]
        %v1534 = vld [vmem:[%s385 + $0xc8] sm:$0xff]
        %v1535 = vld [vmem:[%s385 + $0xd8] sm:$0xff]
        %v1536 = vld [vmem:[%s385 + $0xe0] sm:$0xff]
        %v1537 = vld [vmem:[%s385 + $0xf0] sm:$0xff]
        %v1538 = vld [vmem:[%s385 + $0xf8] sm:$0xff]
        %v1539 = vld [vmem:[%s385 + $0x108] sm:$0xff]
        %v1540 = vld [vmem:[%s385 + $0x110] sm:$0xff]
        %v1541 = vld [vmem:[%s385 + $0x120] sm:$0xff]
        %v1542 = vld [vmem:[%s385 + $0x128] sm:$0xff]
        %v1543 = vld [vmem:[%s385 + $0x138] sm:$0xff]
        %v1544 = vld [vmem:[%s385 + $0x140] sm:$0xff]
        %v1545 = vld [vmem:[%s385 + $0x150] sm:$0xff]
        %v1546 = vld [vmem:[%s385 + $0x158] sm:$0xff]
        %v1547 = vld [vmem:[%s385 + $0x168] sm:$0xff]
        %v1548 = vld [vmem:[%s385 + $0x170] sm:$0xff]
        %s1549 = scalar_lea.vmem [#allocation6], 48
        %v1550 = vld [vmem:[%s1549] sm:$0xff]
        %v1551 = vld [vmem:[%s1549 + $0x8] sm:$0xff]
        %v1553 = vsel %vm297, %v1517, 0
        %v1556 = vsel %vm297, %v1518, 0
        %v1559 = vsel %vm297, %v1519, 0
        %v1562 = vsel %vm297, %v1520, 0
        %v1565 = vsel %vm297, %v1521, 0
        %v1568 = vsel %vm297, %v1522, 0
        %v1571 = vsel %vm297, %v1523, 0
        %v1574 = vsel %vm297, %v1524, 0
        %v1577 = vsel %vm297, %v1525, 0
        %v1580 = vsel %vm297, %v1526, 0
        %v1583 = vsel %vm297, %v1527, 0
        %v1586 = vsel %vm297, %v1528, 0
        %v1589 = vsel %vm297, %v1529, 0
        %v1592 = vsel %vm297, %v1530, 0
        %v1595 = vsel %vm297, %v1531, 0
        %v1598 = vsel %vm297, %v1532, 0
        %v1601 = vsel %vm297, %v1533, 0
        %v1604 = vsel %vm297, %v1534, 0
        %v1607 = vsel %vm297, %v1535, 0
        %v1610 = vsel %vm297, %v1536, 0
        %v1613 = vsel %vm297, %v1537, 0
        %v1616 = vsel %vm297, %v1538, 0
        %v1619 = vsel %vm297, %v1539, 0
        %v1622 = vsel %vm297, %v1540, 0
        %v1625 = vsel %vm297, %v1541, 0
        %v1628 = vsel %vm297, %v1542, 0
        %v1631 = vsel %vm297, %v1543, 0
        %v1634 = vsel %vm297, %v1544, 0
        %v1637 = vsel %vm297, %v1545, 0
        %v1640 = vsel %vm297, %v1546, 0
        %v1643 = vsel %vm297, %v1547, 0
        %v1646 = vsel %vm297, %v1548, 0
        %1648 = vmatprep.subr.mxu0 0.0
        %1649 = vmatpush1.msra.mxu0 %v1550
        %1650 = vmatprep.subr.mxu0 0.0
        %1651 = vmatpush1.msra.mxu0 %v1551
        %1652 = vmatprep.subr.mxu0 0.0
        %1653 = vmatpush1.msra.mxu0 0.0
        %1654 = vmatprep.subr.mxu0 0.0
        %1655 = vmatpush1.msra.mxu0 0.0
        %1656 = vmatprep.subr.mxu0 0.0
        %1657 = vmatpush1.msra.mxu0 0.0
        %1658 = vmatprep.subr.mxu0 0.0
        %1659 = vmatpush1.msra.mxu0 0.0
        %1660 = vmatprep.subr.mxu0 0.0
        %1661 = vmatpush1.msra.mxu0 0.0
        %1662 = vmatprep.subr.mxu0 0.0
        %1663 = vmatpush1.msra.mxu0 0.0
        %1664 = vmatprep.subr.mxu0 0.0
        %1665 = vmatpush1.msra.mxu0 0.0
        %1666 = vmatprep.subr.mxu0 0.0
        %1667 = vmatpush1.msra.mxu0 0.0
        %1668 = vmatprep.subr.mxu0 0.0
        %1669 = vmatpush1.msra.mxu0 0.0
        %1670 = vmatprep.subr.mxu0 0.0
        %1671 = vmatpush1.msra.mxu0 0.0
        %1672 = vmatprep.subr.mxu0 0.0
        %1673 = vmatpush1.msra.mxu0 0.0
        %1674 = vmatprep.subr.mxu0 0.0
        %1675 = vmatpush1.msra.mxu0 0.0
        %1676 = vmatprep.subr.mxu0 0.0
        %1677 = vmatpush1.msra.mxu0 0.0
        %1678 = vmatprep.subr.mxu0 0.0
        %1679 = vmatpush1.msra.mxu0 0.0
        %1680 = vmatprep.subr.mxu0 0.0
        %1681 = vmatpush1.msra.mxu0 0.0
        %1682 = vmatprep.subr.mxu0 0.0
        %1683 = vmatpush1.msra.mxu0 0.0
        %1684 = vmatprep.subr.mxu0 0.0
        %1685 = vmatpush1.msra.mxu0 0.0
        %1686 = vmatprep.subr.mxu0 0.0
        %1687 = vmatpush1.msra.mxu0 0.0
        %1688 = vmatprep.subr.mxu0 0.0
        %1689 = vmatpush1.msra.mxu0 0.0
        %1690 = vmatprep.subr.mxu0 0.0
        %1691 = vmatpush1.msra.mxu0 0.0
        %1692 = vmatprep.subr.mxu0 0.0
        %1693 = vmatpush1.msra.mxu0 0.0
        %1694 = vmatprep.subr.mxu0 0.0
        %1695 = vmatpush1.msra.mxu0 0.0
        %1696 = vmatprep.subr.mxu0 0.0
        %1697 = vmatpush1.msra.mxu0 0.0
        %1698 = vmatprep.subr.mxu0 0.0
        %1699 = vmatpush1.msra.mxu0 0.0
        %1700 = vmatprep.subr.mxu0 0.0
        %1701 = vmatpush1.msra.mxu0 0.0
        %1702 = vmatprep.subr.mxu0 0.0
        %1703 = vmatpush1.msra.mxu0 0.0
        %1704 = vmatprep.subr.mxu0 0.0
        %1705 = vmatpush1.msra.mxu0 0.0
        %1706 = vmatprep.subr.mxu0 0.0
        %1707 = vmatpush1.msra.mxu0 0.0
        %1708 = vmatprep.subr.mxu0 0.0
        %1709 = vmatpush1.msra.mxu0 0.0
        %1710 = vmatprep.subr.mxu0 0.0
        %1711 = vmatpush1.msra.mxu0 0.0
        %1712 = vmatprep.mubr.f32.mxu0 0.0
        %1713 = vmatmul.mubr.f32.gmra.mrb[0].mxu0 %v1553
        %v1714 = vpop.f32.mrb[0].mxu0
        %v1715 = vadd.f32 0.0, %v1714
        %v1716 = vpop.f32.mrb[0].mxu0
        %1717 = vmatprep.mubr.f32.mxu0 0.0
        %1718 = vmatmul.mubr.f32.gmra.mrb[0].mxu0 %v1556
        %v1719 = vpop.f32.mrb[0].mxu0
        %v1720 = vadd.f32 0.0, %v1719
        %v1721 = vpop.f32.mrb[0].mxu0
        %1722 = vmatprep.mubr.f32.mxu0 0.0
        %1723 = vmatmul.mubr.f32.gmra.mrb[0].mxu0 %v1559
        %v1724 = vpop.f32.mrb[0].mxu0
        %v1725 = vadd.f32 0.0, %v1724
        %v1726 = vpop.f32.mrb[0].mxu0
        %1727 = vmatprep.mubr.f32.mxu0 0.0
        %1728 = vmatmul.mubr.f32.gmra.mrb[0].mxu0 %v1562
        %v1729 = vpop.f32.mrb[0].mxu0
        %v1730 = vadd.f32 0.0, %v1729
        %v1731 = vpop.f32.mrb[0].mxu0
        %1732 = vmatprep.mubr.f32.mxu0 0.0
        %1733 = vmatmul.mubr.f32.gmra.mrb[0].mxu0 %v1565
        %v1734 = vpop.f32.mrb[0].mxu0
        %v1735 = vadd.f32 0.0, %v1734
        %v1736 = vpop.f32.mrb[0].mxu0
        %1737 = vmatprep.mubr.f32.mxu0 0.0
        %1738 = vmatmul.mubr.f32.gmra.mrb[0].mxu0 %v1568
        %v1739 = vpop.f32.mrb[0].mxu0
        %v1740 = vadd.f32 0.0, %v1739
        %v1741 = vpop.f32.mrb[0].mxu0
        %1742 = vmatprep.mubr.f32.mxu0 0.0
        %1743 = vmatmul.mubr.f32.gmra.mrb[0].mxu0 %v1571
        %v1744 = vpop.f32.mrb[0].mxu0
        %v1745 = vadd.f32 0.0, %v1744
        %v1746 = vpop.f32.mrb[0].mxu0
        %1747 = vmatprep.mubr.f32.mxu0 0.0
        %1748 = vmatmul.mubr.f32.gmra.mrb[0].mxu0 %v1574
        %v1749 = vpop.f32.mrb[0].mxu0
        %v1750 = vadd.f32 0.0, %v1749
        %v1751 = vpop.f32.mrb[0].mxu0
        %1752 = vmatprep.mubr.f32.mxu0 0.0
        %1753 = vmatmul.mubr.f32.gmra.mrb[0].mxu0 %v1577
        %v1754 = vpop.f32.mrb[0].mxu0
        %v1755 = vadd.f32 0.0, %v1754
        %v1756 = vpop.f32.mrb[0].mxu0
        %1757 = vmatprep.mubr.f32.mxu0 0.0
        %1758 = vmatmul.mubr.f32.gmra.mrb[0].mxu0 %v1580
        %v1759 = vpop.f32.mrb[0].mxu0
        %v1760 = vadd.f32 0.0, %v1759
        %v1761 = vpop.f32.mrb[0].mxu0
        %1762 = vmatprep.mubr.f32.mxu0 0.0
        %1763 = vmatmul.mubr.f32.gmra.mrb[0].mxu0 %v1583
        %v1764 = vpop.f32.mrb[0].mxu0
        %v1765 = vadd.f32 0.0, %v1764
        %v1766 = vpop.f32.mrb[0].mxu0
        %1767 = vmatprep.mubr.f32.mxu0 0.0
        %1768 = vmatmul.mubr.f32.gmra.mrb[0].mxu0 %v1586
        %v1769 = vpop.f32.mrb[0].mxu0
        %v1770 = vadd.f32 0.0, %v1769
        %v1771 = vpop.f32.mrb[0].mxu0
        %1772 = vmatprep.mubr.f32.mxu0 0.0
        %1773 = vmatmul.mubr.f32.gmra.mrb[0].mxu0 %v1589
        %v1774 = vpop.f32.mrb[0].mxu0
        %v1775 = vadd.f32 0.0, %v1774
        %v1776 = vpop.f32.mrb[0].mxu0
        %1777 = vmatprep.mubr.f32.mxu0 0.0
        %1778 = vmatmul.mubr.f32.gmra.mrb[0].mxu0 %v1592
        %v1779 = vpop.f32.mrb[0].mxu0
        %v1780 = vadd.f32 0.0, %v1779
        %v1781 = vpop.f32.mrb[0].mxu0
        %1782 = vmatprep.mubr.f32.mxu0 0.0
        %1783 = vmatmul.mubr.f32.gmra.mrb[0].mxu0 %v1595
        %v1784 = vpop.f32.mrb[0].mxu0
        %v1785 = vadd.f32 0.0, %v1784
        %v1786 = vpop.f32.mrb[0].mxu0
        %1787 = vmatprep.mubr.f32.mxu0 0.0
        %1788 = vmatmul.mubr.f32.gmra.mrb[0].mxu0 %v1598
        %v1789 = vpop.f32.mrb[0].mxu0
        %v1790 = vadd.f32 0.0, %v1789
        %v1791 = vpop.f32.mrb[0].mxu0
        %1792 = vmatprep.mubr.f32.mxu0 0.0
        %1793 = vmatmul.mubr.f32.gmra.mrb[0].mxu0 %v1601
        %v1794 = vpop.f32.mrb[0].mxu0
        %v1795 = vadd.f32 0.0, %v1794
        %v1796 = vpop.f32.mrb[0].mxu0
        %1797 = vmatprep.mubr.f32.mxu0 0.0
        %1798 = vmatmul.mubr.f32.gmra.mrb[0].mxu0 %v1604
        %v1799 = vpop.f32.mrb[0].mxu0
        %v1800 = vadd.f32 0.0, %v1799
        %v1801 = vpop.f32.mrb[0].mxu0
        %1802 = vmatprep.mubr.f32.mxu0 0.0
        %1803 = vmatmul.mubr.f32.gmra.mrb[0].mxu0 %v1607
        %v1804 = vpop.f32.mrb[0].mxu0
        %v1805 = vadd.f32 0.0, %v1804
        %v1806 = vpop.f32.mrb[0].mxu0
        %1807 = vmatprep.mubr.f32.mxu0 0.0
        %1808 = vmatmul.mubr.f32.gmra.mrb[0].mxu0 %v1610
        %v1809 = vpop.f32.mrb[0].mxu0
        %v1810 = vadd.f32 0.0, %v1809
        %v1811 = vpop.f32.mrb[0].mxu0
        %1812 = vmatprep.mubr.f32.mxu0 0.0
        %1813 = vmatmul.mubr.f32.gmra.mrb[0].mxu0 %v1613
        %v1814 = vpop.f32.mrb[0].mxu0
        %v1815 = vadd.f32 0.0, %v1814
        %v1816 = vpop.f32.mrb[0].mxu0
        %1817 = vmatprep.mubr.f32.mxu0 0.0
        %1818 = vmatmul.mubr.f32.gmra.mrb[0].mxu0 %v1616
        %v1819 = vpop.f32.mrb[0].mxu0
        %v1820 = vadd.f32 0.0, %v1819
        %v1821 = vpop.f32.mrb[0].mxu0
        %1822 = vmatprep.mubr.f32.mxu0 0.0
        %1823 = vmatmul.mubr.f32.gmra.mrb[0].mxu0 %v1619
        %v1824 = vpop.f32.mrb[0].mxu0
        %v1825 = vadd.f32 0.0, %v1824
        %v1826 = vpop.f32.mrb[0].mxu0
        %1827 = vmatprep.mubr.f32.mxu0 0.0
        %1828 = vmatmul.mubr.f32.gmra.mrb[0].mxu0 %v1622
        %v1829 = vpop.f32.mrb[0].mxu0
        %v1830 = vadd.f32 0.0, %v1829
        %v1831 = vpop.f32.mrb[0].mxu0
        %1832 = vmatprep.mubr.f32.mxu0 0.0
        %1833 = vmatmul.mubr.f32.gmra.mrb[0].mxu0 %v1625
        %v1834 = vpop.f32.mrb[0].mxu0
        %v1835 = vadd.f32 0.0, %v1834
        %v1836 = vpop.f32.mrb[0].mxu0
        %1837 = vmatprep.mubr.f32.mxu0 0.0
        %1838 = vmatmul.mubr.f32.gmra.mrb[0].mxu0 %v1628
        %v1839 = vpop.f32.mrb[0].mxu0
        %v1840 = vadd.f32 0.0, %v1839
        %v1841 = vpop.f32.mrb[0].mxu0
        %1842 = vmatprep.mubr.f32.mxu0 0.0
        %1843 = vmatmul.mubr.f32.gmra.mrb[0].mxu0 %v1631
        %v1844 = vpop.f32.mrb[0].mxu0
        %v1845 = vadd.f32 0.0, %v1844
        %v1846 = vpop.f32.mrb[0].mxu0
        %1847 = vmatprep.mubr.f32.mxu0 0.0
        %1848 = vmatmul.mubr.f32.gmra.mrb[0].mxu0 %v1634
        %v1849 = vpop.f32.mrb[0].mxu0
        %v1850 = vadd.f32 0.0, %v1849
        %v1851 = vpop.f32.mrb[0].mxu0
        %1852 = vmatprep.mubr.f32.mxu0 0.0
        %1853 = vmatmul.mubr.f32.gmra.mrb[0].mxu0 %v1637
        %v1854 = vpop.f32.mrb[0].mxu0
        %v1855 = vadd.f32 0.0, %v1854
        %v1856 = vpop.f32.mrb[0].mxu0
        %1857 = vmatprep.mubr.f32.mxu0 0.0
        %1858 = vmatmul.mubr.f32.gmra.mrb[0].mxu0 %v1640
        %v1859 = vpop.f32.mrb[0].mxu0
        %v1860 = vadd.f32 0.0, %v1859
        %v1861 = vpop.f32.mrb[0].mxu0
        %1862 = vmatprep.mubr.f32.mxu0 0.0
        %1863 = vmatmul.mubr.f32.gmra.mrb[0].mxu0 %v1643
        %v1864 = vpop.f32.mrb[0].mxu0
        %v1865 = vadd.f32 0.0, %v1864
        %v1866 = vpop.f32.mrb[0].mxu0
        %1867 = vmatprep.mubr.f32.mxu0 0.0
        %1868 = vmatmul.mubr.f32.gmra.mrb[0].mxu0 %v1646
        %v1869 = vpop.f32.mrb[0].mxu0
        %v1870 = vadd.f32 0.0, %v1869
        %v1871 = vpop.f32.mrb[0].mxu0
        %1872 = vdwg.mxu0
        %v1873 = vadd.f32 %v1485, %v1715
        %v1874 = vadd.f32 %v1486, %v1720
        %v1875 = vadd.f32 %v1487, %v1725
        %v1876 = vadd.f32 %v1488, %v1730
        %v1877 = vadd.f32 %v1489, %v1735
        %v1878 = vadd.f32 %v1490, %v1740
        %v1879 = vadd.f32 %v1491, %v1745
        %v1880 = vadd.f32 %v1492, %v1750
        %v1881 = vadd.f32 %v1493, %v1755
        %v1882 = vadd.f32 %v1494, %v1760
        %v1883 = vadd.f32 %v1495, %v1765
        %v1884 = vadd.f32 %v1496, %v1770
        %v1885 = vadd.f32 %v1497, %v1775
        %v1886 = vadd.f32 %v1498, %v1780
        %v1887 = vadd.f32 %v1499, %v1785
        %v1888 = vadd.f32 %v1500, %v1790
        %v1889 = vadd.f32 %v1501, %v1795
        %v1890 = vadd.f32 %v1502, %v1800
        %v1891 = vadd.f32 %v1503, %v1805
        %v1892 = vadd.f32 %v1504, %v1810
        %v1893 = vadd.f32 %v1505, %v1815
        %v1894 = vadd.f32 %v1506, %v1820
        %v1895 = vadd.f32 %v1507, %v1825
        %v1896 = vadd.f32 %v1508, %v1830
        %v1897 = vadd.f32 %v1509, %v1835
        %v1898 = vadd.f32 %v1510, %v1840
        %v1899 = vadd.f32 %v1511, %v1845
        %v1900 = vadd.f32 %v1512, %v1850
        %v1901 = vadd.f32 %v1513, %v1855
        %v1902 = vadd.f32 %v1514, %v1860
        %v1903 = vadd.f32 %v1515, %v1865
        %v1904 = vadd.f32 %v1516, %v1870
        %v1905 = vld [vmem:[%s385 + $0x1] sm:$0xff]
        %v1906 = vld [vmem:[%s385 + $0x9] sm:$0xff]
        %v1907 = vld [vmem:[%s385 + $0x19] sm:$0xff]
        %v1908 = vld [vmem:[%s385 + $0x21] sm:$0xff]
        %v1909 = vld [vmem:[%s385 + $0x31] sm:$0xff]
        %v1910 = vld [vmem:[%s385 + $0x39] sm:$0xff]
        %v1911 = vld [vmem:[%s385 + $0x49] sm:$0xff]
        %v1912 = vld [vmem:[%s385 + $0x51] sm:$0xff]
        %v1913 = vld [vmem:[%s385 + $0x61] sm:$0xff]
        %v1914 = vld [vmem:[%s385 + $0x69] sm:$0xff]
        %v1915 = vld [vmem:[%s385 + $0x79] sm:$0xff]
        %v1916 = vld [vmem:[%s385 + $0x81] sm:$0xff]
        %v1917 = vld [vmem:[%s385 + $0x91] sm:$0xff]
        %v1918 = vld [vmem:[%s385 + $0x99] sm:$0xff]
        %v1919 = vld [vmem:[%s385 + $0xa9] sm:$0xff]
        %v1920 = vld [vmem:[%s385 + $0xb1] sm:$0xff]
        %v1921 = vld [vmem:[%s385 + $0xc1] sm:$0xff]
        %v1922 = vld [vmem:[%s385 + $0xc9] sm:$0xff]
        %v1923 = vld [vmem:[%s385 + $0xd9] sm:$0xff]
        %v1924 = vld [vmem:[%s385 + $0xe1] sm:$0xff]
        %v1925 = vld [vmem:[%s385 + $0xf1] sm:$0xff]
        %v1926 = vld [vmem:[%s385 + $0xf9] sm:$0xff]
        %v1927 = vld [vmem:[%s385 + $0x109] sm:$0xff]
        %v1928 = vld [vmem:[%s385 + $0x111] sm:$0xff]
        %v1929 = vld [vmem:[%s385 + $0x121] sm:$0xff]
        %v1930 = vld [vmem:[%s385 + $0x129] sm:$0xff]
        %v1931 = vld [vmem:[%s385 + $0x139] sm:$0xff]
        %v1932 = vld [vmem:[%s385 + $0x141] sm:$0xff]
        %v1933 = vld [vmem:[%s385 + $0x151] sm:$0xff]
        %v1934 = vld [vmem:[%s385 + $0x159] sm:$0xff]
        %v1935 = vld [vmem:[%s385 + $0x169] sm:$0xff]
        %v1936 = vld [vmem:[%s385 + $0x171] sm:$0xff]
        %s1937 = scalar_lea.vmem [#allocation6], 64
        %v1938 = vld [vmem:[%s1937] sm:$0xff]
        %v1939 = vld [vmem:[%s1937 + $0x8] sm:$0xff]
        %v1941 = vsel %vm297, %v1905, 0
        %v1944 = vsel %vm297, %v1906, 0
        %v1947 = vsel %vm297, %v1907, 0
        %v1950 = vsel %vm297, %v1908, 0
        %v1953 = vsel %vm297, %v1909, 0
        %v1956 = vsel %vm297, %v1910, 0
        %v1959 = vsel %vm297, %v1911, 0
        %v1962 = vsel %vm297, %v1912, 0
        %v1965 = vsel %vm297, %v1913, 0
        %v1968 = vsel %vm297, %v1914, 0
        %v1971 = vsel %vm297, %v1915, 0
        %v1974 = vsel %vm297, %v1916, 0
        %v1977 = vsel %vm297, %v1917, 0
        %v1980 = vsel %vm297, %v1918, 0
        %v1983 = vsel %vm297, %v1919, 0
        %v1986 = vsel %vm297, %v1920, 0
        %v1989 = vsel %vm297, %v1921, 0
        %v1992 = vsel %vm297, %v1922, 0
        %v1995 = vsel %vm297, %v1923, 0
        %v1998 = vsel %vm297, %v1924, 0
        %v2001 = vsel %vm297, %v1925, 0
        %v2004 = vsel %vm297, %v1926, 0
        %v2007 = vsel %vm297, %v1927, 0
        %v2010 = vsel %vm297, %v1928, 0
        %v2013 = vsel %vm297, %v1929, 0
        %v2016 = vsel %vm297, %v1930, 0
        %v2019 = vsel %vm297, %v1931, 0
        %v2022 = vsel %vm297, %v1932, 0
        %v2025 = vsel %vm297, %v1933, 0
        %v2028 = vsel %vm297, %v1934, 0
        %v2031 = vsel %vm297, %v1935, 0
        %v2034 = vsel %vm297, %v1936, 0
        %2036 = vmatprep.subr.mxu0 0.0
        %2037 = vmatpush1.msra.mxu0 %v1938
        %2038 = vmatprep.subr.mxu0 0.0
        %2039 = vmatpush1.msra.mxu0 %v1939
        %2040 = vmatprep.subr.mxu0 0.0
        %2041 = vmatpush1.msra.mxu0 0.0
        %2042 = vmatprep.subr.mxu0 0.0
        %2043 = vmatpush1.msra.mxu0 0.0
        %2044 = vmatprep.subr.mxu0 0.0
        %2045 = vmatpush1.msra.mxu0 0.0
        %2046 = vmatprep.subr.mxu0 0.0
        %2047 = vmatpush1.msra.mxu0 0.0
        %2048 = vmatprep.subr.mxu0 0.0
        %2049 = vmatpush1.msra.mxu0 0.0
        %2050 = vmatprep.subr.mxu0 0.0
        %2051 = vmatpush1.msra.mxu0 0.0
        %2052 = vmatprep.subr.mxu0 0.0
        %2053 = vmatpush1.msra.mxu0 0.0
        %2054 = vmatprep.subr.mxu0 0.0
        %2055 = vmatpush1.msra.mxu0 0.0
        %2056 = vmatprep.subr.mxu0 0.0
        %2057 = vmatpush1.msra.mxu0 0.0
        %2058 = vmatprep.subr.mxu0 0.0
        %2059 = vmatpush1.msra.mxu0 0.0
        %2060 = vmatprep.subr.mxu0 0.0
        %2061 = vmatpush1.msra.mxu0 0.0
        %2062 = vmatprep.subr.mxu0 0.0
        %2063 = vmatpush1.msra.mxu0 0.0
        %2064 = vmatprep.subr.mxu0 0.0
        %2065 = vmatpush1.msra.mxu0 0.0
        %2066 = vmatprep.subr.mxu0 0.0
        %2067 = vmatpush1.msra.mxu0 0.0
        %2068 = vmatprep.subr.mxu0 0.0
        %2069 = vmatpush1.msra.mxu0 0.0
        %2070 = vmatprep.subr.mxu0 0.0
        %2071 = vmatpush1.msra.mxu0 0.0
        %2072 = vmatprep.subr.mxu0 0.0
        %2073 = vmatpush1.msra.mxu0 0.0
        %2074 = vmatprep.subr.mxu0 0.0
        %2075 = vmatpush1.msra.mxu0 0.0
        %2076 = vmatprep.subr.mxu0 0.0
        %2077 = vmatpush1.msra.mxu0 0.0
        %2078 = vmatprep.subr.mxu0 0.0
        %2079 = vmatpush1.msra.mxu0 0.0
        %2080 = vmatprep.subr.mxu0 0.0
        %2081 = vmatpush1.msra.mxu0 0.0
        %2082 = vmatprep.subr.mxu0 0.0
        %2083 = vmatpush1.msra.mxu0 0.0
        %2084 = vmatprep.subr.mxu0 0.0
        %2085 = vmatpush1.msra.mxu0 0.0
        %2086 = vmatprep.subr.mxu0 0.0
        %2087 = vmatpush1.msra.mxu0 0.0
        %2088 = vmatprep.subr.mxu0 0.0
        %2089 = vmatpush1.msra.mxu0 0.0
        %2090 = vmatprep.subr.mxu0 0.0
        %2091 = vmatpush1.msra.mxu0 0.0
        %2092 = vmatprep.subr.mxu0 0.0
        %2093 = vmatpush1.msra.mxu0 0.0
        %2094 = vmatprep.subr.mxu0 0.0
        %2095 = vmatpush1.msra.mxu0 0.0
        %2096 = vmatprep.subr.mxu0 0.0
        %2097 = vmatpush1.msra.mxu0 0.0
        %2098 = vmatprep.subr.mxu0 0.0
        %2099 = vmatpush1.msra.mxu0 0.0
        %2100 = vmatprep.mubr.f32.mxu0 0.0
        %2101 = vmatmul.mubr.f32.gmra.mrb[0].mxu0 %v1941
        %v2102 = vpop.f32.mrb[0].mxu0
        %v2103 = vadd.f32 0.0, %v2102
        %v2104 = vpop.f32.mrb[0].mxu0
        %2105 = vmatprep.mubr.f32.mxu0 0.0
        %2106 = vmatmul.mubr.f32.gmra.mrb[0].mxu0 %v1944
        %v2107 = vpop.f32.mrb[0].mxu0
        %v2108 = vadd.f32 0.0, %v2107
        %v2109 = vpop.f32.mrb[0].mxu0
        %2110 = vmatprep.mubr.f32.mxu0 0.0
        %2111 = vmatmul.mubr.f32.gmra.mrb[0].mxu0 %v1947
        %v2112 = vpop.f32.mrb[0].mxu0
        %v2113 = vadd.f32 0.0, %v2112
        %v2114 = vpop.f32.mrb[0].mxu0
        %2115 = vmatprep.mubr.f32.mxu0 0.0
        %2116 = vmatmul.mubr.f32.gmra.mrb[0].mxu0 %v1950
        %v2117 = vpop.f32.mrb[0].mxu0
        %v2118 = vadd.f32 0.0, %v2117
        %v2119 = vpop.f32.mrb[0].mxu0
        %2120 = vmatprep.mubr.f32.mxu0 0.0
        %2121 = vmatmul.mubr.f32.gmra.mrb[0].mxu0 %v1953
        %v2122 = vpop.f32.mrb[0].mxu0
        %v2123 = vadd.f32 0.0, %v2122
        %v2124 = vpop.f32.mrb[0].mxu0
        %2125 = vmatprep.mubr.f32.mxu0 0.0
        %2126 = vmatmul.mubr.f32.gmra.mrb[0].mxu0 %v1956
        %v2127 = vpop.f32.mrb[0].mxu0
        %v2128 = vadd.f32 0.0, %v2127
        %v2129 = vpop.f32.mrb[0].mxu0
        %2130 = vmatprep.mubr.f32.mxu0 0.0
        %2131 = vmatmul.mubr.f32.gmra.mrb[0].mxu0 %v1959
        %v2132 = vpop.f32.mrb[0].mxu0
        %v2133 = vadd.f32 0.0, %v2132
        %v2134 = vpop.f32.mrb[0].mxu0
        %2135 = vmatprep.mubr.f32.mxu0 0.0
        %2136 = vmatmul.mubr.f32.gmra.mrb[0].mxu0 %v1962
        %v2137 = vpop.f32.mrb[0].mxu0
        %v2138 = vadd.f32 0.0, %v2137
        %v2139 = vpop.f32.mrb[0].mxu0
        %2140 = vmatprep.mubr.f32.mxu0 0.0
        %2141 = vmatmul.mubr.f32.gmra.mrb[0].mxu0 %v1965
        %v2142 = vpop.f32.mrb[0].mxu0
        %v2143 = vadd.f32 0.0, %v2142
        %v2144 = vpop.f32.mrb[0].mxu0
        %2145 = vmatprep.mubr.f32.mxu0 0.0
        %2146 = vmatmul.mubr.f32.gmra.mrb[0].mxu0 %v1968
        %v2147 = vpop.f32.mrb[0].mxu0
        %v2148 = vadd.f32 0.0, %v2147
        %v2149 = vpop.f32.mrb[0].mxu0
        %2150 = vmatprep.mubr.f32.mxu0 0.0
        %2151 = vmatmul.mubr.f32.gmra.mrb[0].mxu0 %v1971
        %v2152 = vpop.f32.mrb[0].mxu0
        %v2153 = vadd.f32 0.0, %v2152
        %v2154 = vpop.f32.mrb[0].mxu0
        %2155 = vmatprep.mubr.f32.mxu0 0.0
        %2156 = vmatmul.mubr.f32.gmra.mrb[0].mxu0 %v1974
        %v2157 = vpop.f32.mrb[0].mxu0
        %v2158 = vadd.f32 0.0, %v2157
        %v2159 = vpop.f32.mrb[0].mxu0
        %2160 = vmatprep.mubr.f32.mxu0 0.0
        %2161 = vmatmul.mubr.f32.gmra.mrb[0].mxu0 %v1977
        %v2162 = vpop.f32.mrb[0].mxu0
        %v2163 = vadd.f32 0.0, %v2162
        %v2164 = vpop.f32.mrb[0].mxu0
        %2165 = vmatprep.mubr.f32.mxu0 0.0
        %2166 = vmatmul.mubr.f32.gmra.mrb[0].mxu0 %v1980
        %v2167 = vpop.f32.mrb[0].mxu0
        %v2168 = vadd.f32 0.0, %v2167
        %v2169 = vpop.f32.mrb[0].mxu0
        %2170 = vmatprep.mubr.f32.mxu0 0.0
        %2171 = vmatmul.mubr.f32.gmra.mrb[0].mxu0 %v1983
        %v2172 = vpop.f32.mrb[0].mxu0
        %v2173 = vadd.f32 0.0, %v2172
        %v2174 = vpop.f32.mrb[0].mxu0
        %2175 = vmatprep.mubr.f32.mxu0 0.0
        %2176 = vmatmul.mubr.f32.gmra.mrb[0].mxu0 %v1986
        %v2177 = vpop.f32.mrb[0].mxu0
        %v2178 = vadd.f32 0.0, %v2177
        %v2179 = vpop.f32.mrb[0].mxu0
        %2180 = vmatprep.mubr.f32.mxu0 0.0
        %2181 = vmatmul.mubr.f32.gmra.mrb[0].mxu0 %v1989
        %v2182 = vpop.f32.mrb[0].mxu0
        %v2183 = vadd.f32 0.0, %v2182
        %v2184 = vpop.f32.mrb[0].mxu0
        %2185 = vmatprep.mubr.f32.mxu0 0.0
        %2186 = vmatmul.mubr.f32.gmra.mrb[0].mxu0 %v1992
        %v2187 = vpop.f32.mrb[0].mxu0
        %v2188 = vadd.f32 0.0, %v2187
        %v2189 = vpop.f32.mrb[0].mxu0
        %2190 = vmatprep.mubr.f32.mxu0 0.0
        %2191 = vmatmul.mubr.f32.gmra.mrb[0].mxu0 %v1995
        %v2192 = vpop.f32.mrb[0].mxu0
        %v2193 = vadd.f32 0.0, %v2192
        %v2194 = vpop.f32.mrb[0].mxu0
        %2195 = vmatprep.mubr.f32.mxu0 0.0
        %2196 = vmatmul.mubr.f32.gmra.mrb[0].mxu0 %v1998
        %v2197 = vpop.f32.mrb[0].mxu0
        %v2198 = vadd.f32 0.0, %v2197
        %v2199 = vpop.f32.mrb[0].mxu0
        %2200 = vmatprep.mubr.f32.mxu0 0.0
        %2201 = vmatmul.mubr.f32.gmra.mrb[0].mxu0 %v2001
        %v2202 = vpop.f32.mrb[0].mxu0
        %v2203 = vadd.f32 0.0, %v2202
        %v2204 = vpop.f32.mrb[0].mxu0
        %2205 = vmatprep.mubr.f32.mxu0 0.0
        %2206 = vmatmul.mubr.f32.gmra.mrb[0].mxu0 %v2004
        %v2207 = vpop.f32.mrb[0].mxu0
        %v2208 = vadd.f32 0.0, %v2207
        %v2209 = vpop.f32.mrb[0].mxu0
        %2210 = vmatprep.mubr.f32.mxu0 0.0
        %2211 = vmatmul.mubr.f32.gmra.mrb[0].mxu0 %v2007
        %v2212 = vpop.f32.mrb[0].mxu0
        %v2213 = vadd.f32 0.0, %v2212
        %v2214 = vpop.f32.mrb[0].mxu0
        %2215 = vmatprep.mubr.f32.mxu0 0.0
        %2216 = vmatmul.mubr.f32.gmra.mrb[0].mxu0 %v2010
        %v2217 = vpop.f32.mrb[0].mxu0
        %v2218 = vadd.f32 0.0, %v2217
        %v2219 = vpop.f32.mrb[0].mxu0
        %2220 = vmatprep.mubr.f32.mxu0 0.0
        %2221 = vmatmul.mubr.f32.gmra.mrb[0].mxu0 %v2013
        %v2222 = vpop.f32.mrb[0].mxu0
        %v2223 = vadd.f32 0.0, %v2222
        %v2224 = vpop.f32.mrb[0].mxu0
        %2225 = vmatprep.mubr.f32.mxu0 0.0
        %2226 = vmatmul.mubr.f32.gmra.mrb[0].mxu0 %v2016
        %v2227 = vpop.f32.mrb[0].mxu0
        %v2228 = vadd.f32 0.0, %v2227
        %v2229 = vpop.f32.mrb[0].mxu0
        %2230 = vmatprep.mubr.f32.mxu0 0.0
        %2231 = vmatmul.mubr.f32.gmra.mrb[0].mxu0 %v2019
        %v2232 = vpop.f32.mrb[0].mxu0
        %v2233 = vadd.f32 0.0, %v2232
        %v2234 = vpop.f32.mrb[0].mxu0
        %2235 = vmatprep.mubr.f32.mxu0 0.0
        %2236 = vmatmul.mubr.f32.gmra.mrb[0].mxu0 %v2022
        %v2237 = vpop.f32.mrb[0].mxu0
        %v2238 = vadd.f32 0.0, %v2237
        %v2239 = vpop.f32.mrb[0].mxu0
        %2240 = vmatprep.mubr.f32.mxu0 0.0
        %2241 = vmatmul.mubr.f32.gmra.mrb[0].mxu0 %v2025
        %v2242 = vpop.f32.mrb[0].mxu0
        %v2243 = vadd.f32 0.0, %v2242
        %v2244 = vpop.f32.mrb[0].mxu0
        %2245 = vmatprep.mubr.f32.mxu0 0.0
        %2246 = vmatmul.mubr.f32.gmra.mrb[0].mxu0 %v2028
        %v2247 = vpop.f32.mrb[0].mxu0
        %v2248 = vadd.f32 0.0, %v2247
        %v2249 = vpop.f32.mrb[0].mxu0
        %2250 = vmatprep.mubr.f32.mxu0 0.0
        %2251 = vmatmul.mubr.f32.gmra.mrb[0].mxu0 %v2031
        %v2252 = vpop.f32.mrb[0].mxu0
        %v2253 = vadd.f32 0.0, %v2252
        %v2254 = vpop.f32.mrb[0].mxu0
        %2255 = vmatprep.mubr.f32.mxu0 0.0
        %2256 = vmatmul.mubr.f32.gmra.mrb[0].mxu0 %v2034
        %v2257 = vpop.f32.mrb[0].mxu0
        %v2258 = vadd.f32 0.0, %v2257
        %v2259 = vpop.f32.mrb[0].mxu0
        %2260 = vdwg.mxu0
        %v2261 = vadd.f32 %v1873, %v2103
        %v2262 = vadd.f32 %v1874, %v2108
        %v2263 = vadd.f32 %v1875, %v2113
        %v2264 = vadd.f32 %v1876, %v2118
        %v2265 = vadd.f32 %v1877, %v2123
        %v2266 = vadd.f32 %v1878, %v2128
        %v2267 = vadd.f32 %v1879, %v2133
        %v2268 = vadd.f32 %v1880, %v2138
        %v2269 = vadd.f32 %v1881, %v2143
        %v2270 = vadd.f32 %v1882, %v2148
        %v2271 = vadd.f32 %v1883, %v2153
        %v2272 = vadd.f32 %v1884, %v2158
        %v2273 = vadd.f32 %v1885, %v2163
        %v2274 = vadd.f32 %v1886, %v2168
        %v2275 = vadd.f32 %v1887, %v2173
        %v2276 = vadd.f32 %v1888, %v2178
        %v2277 = vadd.f32 %v1889, %v2183
        %v2278 = vadd.f32 %v1890, %v2188
        %v2279 = vadd.f32 %v1891, %v2193
        %v2280 = vadd.f32 %v1892, %v2198
        %v2281 = vadd.f32 %v1893, %v2203
        %v2282 = vadd.f32 %v1894, %v2208
        %v2283 = vadd.f32 %v1895, %v2213
        %v2284 = vadd.f32 %v1896, %v2218
        %v2285 = vadd.f32 %v1897, %v2223
        %v2286 = vadd.f32 %v1898, %v2228
        %v2287 = vadd.f32 %v1899, %v2233
        %v2288 = vadd.f32 %v1900, %v2238
        %v2289 = vadd.f32 %v1901, %v2243
        %v2290 = vadd.f32 %v1902, %v2248
        %v2291 = vadd.f32 %v1903, %v2253
        %v2292 = vadd.f32 %v1904, %v2258
        %v2293 = vld [vmem:[%s385 + $0x2] sm:$0xff]
        %v2294 = vld [vmem:[%s385 + $0xa] sm:$0xff]
        %v2295 = vld [vmem:[%s385 + $0x1a] sm:$0xff]
        %v2296 = vld [vmem:[%s385 + $0x22] sm:$0xff]
        %v2297 = vld [vmem:[%s385 + $0x32] sm:$0xff]
        %v2298 = vld [vmem:[%s385 + $0x3a] sm:$0xff]
        %v2299 = vld [vmem:[%s385 + $0x4a] sm:$0xff]
        %v2300 = vld [vmem:[%s385 + $0x52] sm:$0xff]
        %v2301 = vld [vmem:[%s385 + $0x62] sm:$0xff]
        %v2302 = vld [vmem:[%s385 + $0x6a] sm:$0xff]
        %v2303 = vld [vmem:[%s385 + $0x7a] sm:$0xff]
        %v2304 = vld [vmem:[%s385 + $0x82] sm:$0xff]
        %v2305 = vld [vmem:[%s385 + $0x92] sm:$0xff]
        %v2306 = vld [vmem:[%s385 + $0x9a] sm:$0xff]
        %v2307 = vld [vmem:[%s385 + $0xaa] sm:$0xff]
        %v2308 = vld [vmem:[%s385 + $0xb2] sm:$0xff]
        %v2309 = vld [vmem:[%s385 + $0xc2] sm:$0xff]
        %v2310 = vld [vmem:[%s385 + $0xca] sm:$0xff]
        %v2311 = vld [vmem:[%s385 + $0xda] sm:$0xff]
        %v2312 = vld [vmem:[%s385 + $0xe2] sm:$0xff]
        %v2313 = vld [vmem:[%s385 + $0xf2] sm:$0xff]
        %v2314 = vld [vmem:[%s385 + $0xfa] sm:$0xff]
        %v2315 = vld [vmem:[%s385 + $0x10a] sm:$0xff]
        %v2316 = vld [vmem:[%s385 + $0x112] sm:$0xff]
        %v2317 = vld [vmem:[%s385 + $0x122] sm:$0xff]
        %v2318 = vld [vmem:[%s385 + $0x12a] sm:$0xff]
        %v2319 = vld [vmem:[%s385 + $0x13a] sm:$0xff]
        %v2320 = vld [vmem:[%s385 + $0x142] sm:$0xff]
        %v2321 = vld [vmem:[%s385 + $0x152] sm:$0xff]
        %v2322 = vld [vmem:[%s385 + $0x15a] sm:$0xff]
        %v2323 = vld [vmem:[%s385 + $0x16a] sm:$0xff]
        %v2324 = vld [vmem:[%s385 + $0x172] sm:$0xff]
        %s2325 = scalar_lea.vmem [#allocation6], 80
        %v2326 = vld [vmem:[%s2325] sm:$0xff]
        %v2327 = vld [vmem:[%s2325 + $0x8] sm:$0xff]
        %v2329 = vsel %vm297, %v2293, 0
        %v2332 = vsel %vm297, %v2294, 0
        %v2335 = vsel %vm297, %v2295, 0
        %v2338 = vsel %vm297, %v2296, 0
        %v2341 = vsel %vm297, %v2297, 0
        %v2344 = vsel %vm297, %v2298, 0
        %v2347 = vsel %vm297, %v2299, 0
        %v2350 = vsel %vm297, %v2300, 0
        %v2353 = vsel %vm297, %v2301, 0
        %v2356 = vsel %vm297, %v2302, 0
        %v2359 = vsel %vm297, %v2303, 0
        %v2362 = vsel %vm297, %v2304, 0
        %v2365 = vsel %vm297, %v2305, 0
        %v2368 = vsel %vm297, %v2306, 0
        %v2371 = vsel %vm297, %v2307, 0
        %v2374 = vsel %vm297, %v2308, 0
        %v2377 = vsel %vm297, %v2309, 0
        %v2380 = vsel %vm297, %v2310, 0
        %v2383 = vsel %vm297, %v2311, 0
        %v2386 = vsel %vm297, %v2312, 0
        %v2389 = vsel %vm297, %v2313, 0
        %v2392 = vsel %vm297, %v2314, 0
        %v2395 = vsel %vm297, %v2315, 0
        %v2398 = vsel %vm297, %v2316, 0
        %v2401 = vsel %vm297, %v2317, 0
        %v2404 = vsel %vm297, %v2318, 0
        %v2407 = vsel %vm297, %v2319, 0
        %v2410 = vsel %vm297, %v2320, 0
        %v2413 = vsel %vm297, %v2321, 0
        %v2416 = vsel %vm297, %v2322, 0
        %v2419 = vsel %vm297, %v2323, 0
        %v2422 = vsel %vm297, %v2324, 0
        %2424 = vmatprep.subr.mxu0 0.0
        %2425 = vmatpush1.msra.mxu0 %v2326
        %2426 = vmatprep.subr.mxu0 0.0
        %2427 = vmatpush1.msra.mxu0 %v2327
        %2428 = vmatprep.subr.mxu0 0.0
        %2429 = vmatpush1.msra.mxu0 0.0
        %2430 = vmatprep.subr.mxu0 0.0
        %2431 = vmatpush1.msra.mxu0 0.0
        %2432 = vmatprep.subr.mxu0 0.0
        %2433 = vmatpush1.msra.mxu0 0.0
        %2434 = vmatprep.subr.mxu0 0.0
        %2435 = vmatpush1.msra.mxu0 0.0
        %2436 = vmatprep.subr.mxu0 0.0
        %2437 = vmatpush1.msra.mxu0 0.0
        %2438 = vmatprep.subr.mxu0 0.0
        %2439 = vmatpush1.msra.mxu0 0.0
        %2440 = vmatprep.subr.mxu0 0.0
        %2441 = vmatpush1.msra.mxu0 0.0
        %2442 = vmatprep.subr.mxu0 0.0
        %2443 = vmatpush1.msra.mxu0 0.0
        %2444 = vmatprep.subr.mxu0 0.0
        %2445 = vmatpush1.msra.mxu0 0.0
        %2446 = vmatprep.subr.mxu0 0.0
        %2447 = vmatpush1.msra.mxu0 0.0
        %2448 = vmatprep.subr.mxu0 0.0
        %2449 = vmatpush1.msra.mxu0 0.0
        %2450 = vmatprep.subr.mxu0 0.0
        %2451 = vmatpush1.msra.mxu0 0.0
        %2452 = vmatprep.subr.mxu0 0.0
        %2453 = vmatpush1.msra.mxu0 0.0
        %2454 = vmatprep.subr.mxu0 0.0
        %2455 = vmatpush1.msra.mxu0 0.0
        %2456 = vmatprep.subr.mxu0 0.0
        %2457 = vmatpush1.msra.mxu0 0.0
        %2458 = vmatprep.subr.mxu0 0.0
        %2459 = vmatpush1.msra.mxu0 0.0
        %2460 = vmatprep.subr.mxu0 0.0
        %2461 = vmatpush1.msra.mxu0 0.0
        %2462 = vmatprep.subr.mxu0 0.0
        %2463 = vmatpush1.msra.mxu0 0.0
        %2464 = vmatprep.subr.mxu0 0.0
        %2465 = vmatpush1.msra.mxu0 0.0
        %2466 = vmatprep.subr.mxu0 0.0
        %2467 = vmatpush1.msra.mxu0 0.0
        %2468 = vmatprep.subr.mxu0 0.0
        %2469 = vmatpush1.msra.mxu0 0.0
        %2470 = vmatprep.subr.mxu0 0.0
        %2471 = vmatpush1.msra.mxu0 0.0
        %2472 = vmatprep.subr.mxu0 0.0
        %2473 = vmatpush1.msra.mxu0 0.0
        %2474 = vmatprep.subr.mxu0 0.0
        %2475 = vmatpush1.msra.mxu0 0.0
        %2476 = vmatprep.subr.mxu0 0.0
        %2477 = vmatpush1.msra.mxu0 0.0
        %2478 = vmatprep.subr.mxu0 0.0
        %2479 = vmatpush1.msra.mxu0 0.0
        %2480 = vmatprep.subr.mxu0 0.0
        %2481 = vmatpush1.msra.mxu0 0.0
        %2482 = vmatprep.subr.mxu0 0.0
        %2483 = vmatpush1.msra.mxu0 0.0
        %2484 = vmatprep.subr.mxu0 0.0
        %2485 = vmatpush1.msra.mxu0 0.0
        %2486 = vmatprep.subr.mxu0 0.0
        %2487 = vmatpush1.msra.mxu0 0.0
        %2488 = vmatprep.mubr.f32.mxu0 0.0
        %2489 = vmatmul.mubr.f32.gmra.mrb[0].mxu0 %v2329
        %v2490 = vpop.f32.mrb[0].mxu0
        %v2491 = vadd.f32 0.0, %v2490
        %v2492 = vpop.f32.mrb[0].mxu0
        %2493 = vmatprep.mubr.f32.mxu0 0.0
        %2494 = vmatmul.mubr.f32.gmra.mrb[0].mxu0 %v2332
        %v2495 = vpop.f32.mrb[0].mxu0
        %v2496 = vadd.f32 0.0, %v2495
        %v2497 = vpop.f32.mrb[0].mxu0
        %2498 = vmatprep.mubr.f32.mxu0 0.0
        %2499 = vmatmul.mubr.f32.gmra.mrb[0].mxu0 %v2335
        %v2500 = vpop.f32.mrb[0].mxu0
        %v2501 = vadd.f32 0.0, %v2500
        %v2502 = vpop.f32.mrb[0].mxu0
        %2503 = vmatprep.mubr.f32.mxu0 0.0
        %2504 = vmatmul.mubr.f32.gmra.mrb[0].mxu0 %v2338
        %v2505 = vpop.f32.mrb[0].mxu0
        %v2506 = vadd.f32 0.0, %v2505
        %v2507 = vpop.f32.mrb[0].mxu0
        %2508 = vmatprep.mubr.f32.mxu0 0.0
        %2509 = vmatmul.mubr.f32.gmra.mrb[0].mxu0 %v2341
        %v2510 = vpop.f32.mrb[0].mxu0
        %v2511 = vadd.f32 0.0, %v2510
        %v2512 = vpop.f32.mrb[0].mxu0
        %2513 = vmatprep.mubr.f32.mxu0 0.0
        %2514 = vmatmul.mubr.f32.gmra.mrb[0].mxu0 %v2344
        %v2515 = vpop.f32.mrb[0].mxu0
        %v2516 = vadd.f32 0.0, %v2515
        %v2517 = vpop.f32.mrb[0].mxu0
        %2518 = vmatprep.mubr.f32.mxu0 0.0
        %2519 = vmatmul.mubr.f32.gmra.mrb[0].mxu0 %v2347
        %v2520 = vpop.f32.mrb[0].mxu0
        %v2521 = vadd.f32 0.0, %v2520
        %v2522 = vpop.f32.mrb[0].mxu0
        %2523 = vmatprep.mubr.f32.mxu0 0.0
        %2524 = vmatmul.mubr.f32.gmra.mrb[0].mxu0 %v2350
        %v2525 = vpop.f32.mrb[0].mxu0
        %v2526 = vadd.f32 0.0, %v2525
        %v2527 = vpop.f32.mrb[0].mxu0
        %2528 = vmatprep.mubr.f32.mxu0 0.0
        %2529 = vmatmul.mubr.f32.gmra.mrb[0].mxu0 %v2353
        %v2530 = vpop.f32.mrb[0].mxu0
        %v2531 = vadd.f32 0.0, %v2530
        %v2532 = vpop.f32.mrb[0].mxu0
        %2533 = vmatprep.mubr.f32.mxu0 0.0
        %2534 = vmatmul.mubr.f32.gmra.mrb[0].mxu0 %v2356
        %v2535 = vpop.f32.mrb[0].mxu0
        %v2536 = vadd.f32 0.0, %v2535
        %v2537 = vpop.f32.mrb[0].mxu0
        %2538 = vmatprep.mubr.f32.mxu0 0.0
        %2539 = vmatmul.mubr.f32.gmra.mrb[0].mxu0 %v2359
        %v2540 = vpop.f32.mrb[0].mxu0
        %v2541 = vadd.f32 0.0, %v2540
        %v2542 = vpop.f32.mrb[0].mxu0
        %2543 = vmatprep.mubr.f32.mxu0 0.0
        %2544 = vmatmul.mubr.f32.gmra.mrb[0].mxu0 %v2362
        %v2545 = vpop.f32.mrb[0].mxu0
        %v2546 = vadd.f32 0.0, %v2545
        %v2547 = vpop.f32.mrb[0].mxu0
        %2548 = vmatprep.mubr.f32.mxu0 0.0
        %2549 = vmatmul.mubr.f32.gmra.mrb[0].mxu0 %v2365
        %v2550 = vpop.f32.mrb[0].mxu0
        %v2551 = vadd.f32 0.0, %v2550
        %v2552 = vpop.f32.mrb[0].mxu0
        %2553 = vmatprep.mubr.f32.mxu0 0.0
        %2554 = vmatmul.mubr.f32.gmra.mrb[0].mxu0 %v2368
        %v2555 = vpop.f32.mrb[0].mxu0
        %v2556 = vadd.f32 0.0, %v2555
        %v2557 = vpop.f32.mrb[0].mxu0
        %2558 = vmatprep.mubr.f32.mxu0 0.0
        %2559 = vmatmul.mubr.f32.gmra.mrb[0].mxu0 %v2371
        %v2560 = vpop.f32.mrb[0].mxu0
        %v2561 = vadd.f32 0.0, %v2560
        %v2562 = vpop.f32.mrb[0].mxu0
        %2563 = vmatprep.mubr.f32.mxu0 0.0
        %2564 = vmatmul.mubr.f32.gmra.mrb[0].mxu0 %v2374
        %v2565 = vpop.f32.mrb[0].mxu0
        %v2566 = vadd.f32 0.0, %v2565
        %v2567 = vpop.f32.mrb[0].mxu0
        %2568 = vmatprep.mubr.f32.mxu0 0.0
        %2569 = vmatmul.mubr.f32.gmra.mrb[0].mxu0 %v2377
        %v2570 = vpop.f32.mrb[0].mxu0
        %v2571 = vadd.f32 0.0, %v2570
        %v2572 = vpop.f32.mrb[0].mxu0
        %2573 = vmatprep.mubr.f32.mxu0 0.0
        %2574 = vmatmul.mubr.f32.gmra.mrb[0].mxu0 %v2380
        %v2575 = vpop.f32.mrb[0].mxu0
        %v2576 = vadd.f32 0.0, %v2575
        %v2577 = vpop.f32.mrb[0].mxu0
        %2578 = vmatprep.mubr.f32.mxu0 0.0
        %2579 = vmatmul.mubr.f32.gmra.mrb[0].mxu0 %v2383
        %v2580 = vpop.f32.mrb[0].mxu0
        %v2581 = vadd.f32 0.0, %v2580
        %v2582 = vpop.f32.mrb[0].mxu0
        %2583 = vmatprep.mubr.f32.mxu0 0.0
        %2584 = vmatmul.mubr.f32.gmra.mrb[0].mxu0 %v2386
        %v2585 = vpop.f32.mrb[0].mxu0
        %v2586 = vadd.f32 0.0, %v2585
        %v2587 = vpop.f32.mrb[0].mxu0
        %2588 = vmatprep.mubr.f32.mxu0 0.0
        %2589 = vmatmul.mubr.f32.gmra.mrb[0].mxu0 %v2389
        %v2590 = vpop.f32.mrb[0].mxu0
        %v2591 = vadd.f32 0.0, %v2590
        %v2592 = vpop.f32.mrb[0].mxu0
        %2593 = vmatprep.mubr.f32.mxu0 0.0
        %2594 = vmatmul.mubr.f32.gmra.mrb[0].mxu0 %v2392
        %v2595 = vpop.f32.mrb[0].mxu0
        %v2596 = vadd.f32 0.0, %v2595
        %v2597 = vpop.f32.mrb[0].mxu0
        %2598 = vmatprep.mubr.f32.mxu0 0.0
        %2599 = vmatmul.mubr.f32.gmra.mrb[0].mxu0 %v2395
        %v2600 = vpop.f32.mrb[0].mxu0
        %v2601 = vadd.f32 0.0, %v2600
        %v2602 = vpop.f32.mrb[0].mxu0
        %2603 = vmatprep.mubr.f32.mxu0 0.0
        %2604 = vmatmul.mubr.f32.gmra.mrb[0].mxu0 %v2398
        %v2605 = vpop.f32.mrb[0].mxu0
        %v2606 = vadd.f32 0.0, %v2605
        %v2607 = vpop.f32.mrb[0].mxu0
        %2608 = vmatprep.mubr.f32.mxu0 0.0
        %2609 = vmatmul.mubr.f32.gmra.mrb[0].mxu0 %v2401
        %v2610 = vpop.f32.mrb[0].mxu0
        %v2611 = vadd.f32 0.0, %v2610
        %v2612 = vpop.f32.mrb[0].mxu0
        %2613 = vmatprep.mubr.f32.mxu0 0.0
        %2614 = vmatmul.mubr.f32.gmra.mrb[0].mxu0 %v2404
        %v2615 = vpop.f32.mrb[0].mxu0
        %v2616 = vadd.f32 0.0, %v2615
        %v2617 = vpop.f32.mrb[0].mxu0
        %2618 = vmatprep.mubr.f32.mxu0 0.0
        %2619 = vmatmul.mubr.f32.gmra.mrb[0].mxu0 %v2407
        %v2620 = vpop.f32.mrb[0].mxu0
        %v2621 = vadd.f32 0.0, %v2620
        %v2622 = vpop.f32.mrb[0].mxu0
        %2623 = vmatprep.mubr.f32.mxu0 0.0
        %2624 = vmatmul.mubr.f32.gmra.mrb[0].mxu0 %v2410
        %v2625 = vpop.f32.mrb[0].mxu0
        %v2626 = vadd.f32 0.0, %v2625
        %v2627 = vpop.f32.mrb[0].mxu0
        %2628 = vmatprep.mubr.f32.mxu0 0.0
        %2629 = vmatmul.mubr.f32.gmra.mrb[0].mxu0 %v2413
        %v2630 = vpop.f32.mrb[0].mxu0
        %v2631 = vadd.f32 0.0, %v2630
        %v2632 = vpop.f32.mrb[0].mxu0
        %2633 = vmatprep.mubr.f32.mxu0 0.0
        %2634 = vmatmul.mubr.f32.gmra.mrb[0].mxu0 %v2416
        %v2635 = vpop.f32.mrb[0].mxu0
        %v2636 = vadd.f32 0.0, %v2635
        %v2637 = vpop.f32.mrb[0].mxu0
        %2638 = vmatprep.mubr.f32.mxu0 0.0
        %2639 = vmatmul.mubr.f32.gmra.mrb[0].mxu0 %v2419
        %v2640 = vpop.f32.mrb[0].mxu0
        %v2641 = vadd.f32 0.0, %v2640
        %v2642 = vpop.f32.mrb[0].mxu0
        %2643 = vmatprep.mubr.f32.mxu0 0.0
        %2644 = vmatmul.mubr.f32.gmra.mrb[0].mxu0 %v2422
        %v2645 = vpop.f32.mrb[0].mxu0
        %v2646 = vadd.f32 0.0, %v2645
        %v2647 = vpop.f32.mrb[0].mxu0
        %2648 = vdwg.mxu0
        %v2649 = vadd.f32 %v2261, %v2491
        %v2650 = vadd.f32 %v2262, %v2496
        %v2651 = vadd.f32 %v2263, %v2501
        %v2652 = vadd.f32 %v2264, %v2506
        %v2653 = vadd.f32 %v2265, %v2511
        %v2654 = vadd.f32 %v2266, %v2516
        %v2655 = vadd.f32 %v2267, %v2521
        %v2656 = vadd.f32 %v2268, %v2526
        %v2657 = vadd.f32 %v2269, %v2531
        %v2658 = vadd.f32 %v2270, %v2536
        %v2659 = vadd.f32 %v2271, %v2541
        %v2660 = vadd.f32 %v2272, %v2546
        %v2661 = vadd.f32 %v2273, %v2551
        %v2662 = vadd.f32 %v2274, %v2556
        %v2663 = vadd.f32 %v2275, %v2561
        %v2664 = vadd.f32 %v2276, %v2566
        %v2665 = vadd.f32 %v2277, %v2571
        %v2666 = vadd.f32 %v2278, %v2576
        %v2667 = vadd.f32 %v2279, %v2581
        %v2668 = vadd.f32 %v2280, %v2586
        %v2669 = vadd.f32 %v2281, %v2591
        %v2670 = vadd.f32 %v2282, %v2596
        %v2671 = vadd.f32 %v2283, %v2601
        %v2672 = vadd.f32 %v2284, %v2606
        %v2673 = vadd.f32 %v2285, %v2611
        %v2674 = vadd.f32 %v2286, %v2616
        %v2675 = vadd.f32 %v2287, %v2621
        %v2676 = vadd.f32 %v2288, %v2626
        %v2677 = vadd.f32 %v2289, %v2631
        %v2678 = vadd.f32 %v2290, %v2636
        %v2679 = vadd.f32 %v2291, %v2641
        %v2680 = vadd.f32 %v2292, %v2646
        %s2681 = scalar_lea.vmem [#allocation2], 48
        %v2682 = vld [vmem:[%s2681] sm:$0xff]
        %v2683 = vld [vmem:[%s2681 + $0x8] sm:$0xff]
        %v2684 = vld [vmem:[%s2681 + $0x18] sm:$0xff]
        %v2685 = vld [vmem:[%s2681 + $0x20] sm:$0xff]
        %v2686 = vld [vmem:[%s2681 + $0x30] sm:$0xff]
        %v2687 = vld [vmem:[%s2681 + $0x38] sm:$0xff]
        %v2688 = vld [vmem:[%s2681 + $0x48] sm:$0xff]
        %v2689 = vld [vmem:[%s2681 + $0x50] sm:$0xff]
        %v2690 = vld [vmem:[%s2681 + $0x60] sm:$0xff]
        %v2691 = vld [vmem:[%s2681 + $0x68] sm:$0xff]
        %v2692 = vld [vmem:[%s2681 + $0x78] sm:$0xff]
        %v2693 = vld [vmem:[%s2681 + $0x80] sm:$0xff]
        %v2694 = vld [vmem:[%s2681 + $0x90] sm:$0xff]
        %v2695 = vld [vmem:[%s2681 + $0x98] sm:$0xff]
        %v2696 = vld [vmem:[%s2681 + $0xa8] sm:$0xff]
        %v2697 = vld [vmem:[%s2681 + $0xb0] sm:$0xff]
        %v2698 = vld [vmem:[%s2681 + $0xc0] sm:$0xff]
        %v2699 = vld [vmem:[%s2681 + $0xc8] sm:$0xff]
        %v2700 = vld [vmem:[%s2681 + $0xd8] sm:$0xff]
        %v2701 = vld [vmem:[%s2681 + $0xe0] sm:$0xff]
        %v2702 = vld [vmem:[%s2681 + $0xf0] sm:$0xff]
        %v2703 = vld [vmem:[%s2681 + $0xf8] sm:$0xff]
        %v2704 = vld [vmem:[%s2681 + $0x108] sm:$0xff]
        %v2705 = vld [vmem:[%s2681 + $0x110] sm:$0xff]
        %v2706 = vld [vmem:[%s2681 + $0x120] sm:$0xff]
        %v2707 = vld [vmem:[%s2681 + $0x128] sm:$0xff]
        %v2708 = vld [vmem:[%s2681 + $0x138] sm:$0xff]
        %v2709 = vld [vmem:[%s2681 + $0x140] sm:$0xff]
        %v2710 = vld [vmem:[%s2681 + $0x150] sm:$0xff]
        %v2711 = vld [vmem:[%s2681 + $0x158] sm:$0xff]
        %v2712 = vld [vmem:[%s2681 + $0x168] sm:$0xff]
        %v2713 = vld [vmem:[%s2681 + $0x170] sm:$0xff]
        %s2714 = scalar_lea.vmem [#allocation6], 96
        %v2715 = vld [vmem:[%s2714] sm:$0xff]
        %v2716 = vld [vmem:[%s2714 + $0x8] sm:$0xff]
        %v2718 = vsel %vm297, %v2682, 0
        %v2721 = vsel %vm297, %v2683, 0
        %v2724 = vsel %vm297, %v2684, 0
        %v2727 = vsel %vm297, %v2685, 0
        %v2730 = vsel %vm297, %v2686, 0
        %v2733 = vsel %vm297, %v2687, 0
        %v2736 = vsel %vm297, %v2688, 0
        %v2739 = vsel %vm297, %v2689, 0
        %v2742 = vsel %vm297, %v2690, 0
        %v2745 = vsel %vm297, %v2691, 0
        %v2748 = vsel %vm297, %v2692, 0
        %v2751 = vsel %vm297, %v2693, 0
        %v2754 = vsel %vm297, %v2694, 0
        %v2757 = vsel %vm297, %v2695, 0
        %v2760 = vsel %vm297, %v2696, 0
        %v2763 = vsel %vm297, %v2697, 0
        %v2766 = vsel %vm297, %v2698, 0
        %v2769 = vsel %vm297, %v2699, 0
        %v2772 = vsel %vm297, %v2700, 0
        %v2775 = vsel %vm297, %v2701, 0
        %v2778 = vsel %vm297, %v2702, 0
        %v2781 = vsel %vm297, %v2703, 0
        %v2784 = vsel %vm297, %v2704, 0
        %v2787 = vsel %vm297, %v2705, 0
        %v2790 = vsel %vm297, %v2706, 0
        %v2793 = vsel %vm297, %v2707, 0
        %v2796 = vsel %vm297, %v2708, 0
        %v2799 = vsel %vm297, %v2709, 0
        %v2802 = vsel %vm297, %v2710, 0
        %v2805 = vsel %vm297, %v2711, 0
        %v2808 = vsel %vm297, %v2712, 0
        %v2811 = vsel %vm297, %v2713, 0
        %2813 = vmatprep.subr.mxu0 0.0
        %2814 = vmatpush1.msra.mxu0 %v2715
        %2815 = vmatprep.subr.mxu0 0.0
        %2816 = vmatpush1.msra.mxu0 %v2716
        %2817 = vmatprep.subr.mxu0 0.0
        %2818 = vmatpush1.msra.mxu0 0.0
        %2819 = vmatprep.subr.mxu0 0.0
        %2820 = vmatpush1.msra.mxu0 0.0
        %2821 = vmatprep.subr.mxu0 0.0
        %2822 = vmatpush1.msra.mxu0 0.0
        %2823 = vmatprep.subr.mxu0 0.0
        %2824 = vmatpush1.msra.mxu0 0.0
        %2825 = vmatprep.subr.mxu0 0.0
        %2826 = vmatpush1.msra.mxu0 0.0
        %2827 = vmatprep.subr.mxu0 0.0
        %2828 = vmatpush1.msra.mxu0 0.0
        %2829 = vmatprep.subr.mxu0 0.0
        %2830 = vmatpush1.msra.mxu0 0.0
        %2831 = vmatprep.subr.mxu0 0.0
        %2832 = vmatpush1.msra.mxu0 0.0
        %2833 = vmatprep.subr.mxu0 0.0
        %2834 = vmatpush1.msra.mxu0 0.0
        %2835 = vmatprep.subr.mxu0 0.0
        %2836 = vmatpush1.msra.mxu0 0.0
        %2837 = vmatprep.subr.mxu0 0.0
        %2838 = vmatpush1.msra.mxu0 0.0
        %2839 = vmatprep.subr.mxu0 0.0
        %2840 = vmatpush1.msra.mxu0 0.0
        %2841 = vmatprep.subr.mxu0 0.0
        %2842 = vmatpush1.msra.mxu0 0.0
        %2843 = vmatprep.subr.mxu0 0.0
        %2844 = vmatpush1.msra.mxu0 0.0
        %2845 = vmatprep.subr.mxu0 0.0
        %2846 = vmatpush1.msra.mxu0 0.0
        %2847 = vmatprep.subr.mxu0 0.0
        %2848 = vmatpush1.msra.mxu0 0.0
        %2849 = vmatprep.subr.mxu0 0.0
        %2850 = vmatpush1.msra.mxu0 0.0
        %2851 = vmatprep.subr.mxu0 0.0
        %2852 = vmatpush1.msra.mxu0 0.0
        %2853 = vmatprep.subr.mxu0 0.0
        %2854 = vmatpush1.msra.mxu0 0.0
        %2855 = vmatprep.subr.mxu0 0.0
        %2856 = vmatpush1.msra.mxu0 0.0
        %2857 = vmatprep.subr.mxu0 0.0
        %2858 = vmatpush1.msra.mxu0 0.0
        %2859 = vmatprep.subr.mxu0 0.0
        %2860 = vmatpush1.msra.mxu0 0.0
        %2861 = vmatprep.subr.mxu0 0.0
        %2862 = vmatpush1.msra.mxu0 0.0
        %2863 = vmatprep.subr.mxu0 0.0
        %2864 = vmatpush1.msra.mxu0 0.0
        %2865 = vmatprep.subr.mxu0 0.0
        %2866 = vmatpush1.msra.mxu0 0.0
        %2867 = vmatprep.subr.mxu0 0.0
        %2868 = vmatpush1.msra.mxu0 0.0
        %2869 = vmatprep.subr.mxu0 0.0
        %2870 = vmatpush1.msra.mxu0 0.0
        %2871 = vmatprep.subr.mxu0 0.0
        %2872 = vmatpush1.msra.mxu0 0.0
        %2873 = vmatprep.subr.mxu0 0.0
        %2874 = vmatpush1.msra.mxu0 0.0
        %2875 = vmatprep.subr.mxu0 0.0
        %2876 = vmatpush1.msra.mxu0 0.0
        %2877 = vmatprep.mubr.f32.mxu0 0.0
        %2878 = vmatmul.mubr.f32.gmra.mrb[0].mxu0 %v2718
        %v2879 = vpop.f32.mrb[0].mxu0
        %v2880 = vadd.f32 0.0, %v2879
        %v2881 = vpop.f32.mrb[0].mxu0
        %2882 = vmatprep.mubr.f32.mxu0 0.0
        %2883 = vmatmul.mubr.f32.gmra.mrb[0].mxu0 %v2721
        %v2884 = vpop.f32.mrb[0].mxu0
        %v2885 = vadd.f32 0.0, %v2884
        %v2886 = vpop.f32.mrb[0].mxu0
        %2887 = vmatprep.mubr.f32.mxu0 0.0
        %2888 = vmatmul.mubr.f32.gmra.mrb[0].mxu0 %v2724
        %v2889 = vpop.f32.mrb[0].mxu0
        %v2890 = vadd.f32 0.0, %v2889
        %v2891 = vpop.f32.mrb[0].mxu0
        %2892 = vmatprep.mubr.f32.mxu0 0.0
        %2893 = vmatmul.mubr.f32.gmra.mrb[0].mxu0 %v2727
        %v2894 = vpop.f32.mrb[0].mxu0
        %v2895 = vadd.f32 0.0, %v2894
        %v2896 = vpop.f32.mrb[0].mxu0
        %2897 = vmatprep.mubr.f32.mxu0 0.0
        %2898 = vmatmul.mubr.f32.gmra.mrb[0].mxu0 %v2730
        %v2899 = vpop.f32.mrb[0].mxu0
        %v2900 = vadd.f32 0.0, %v2899
        %v2901 = vpop.f32.mrb[0].mxu0
        %2902 = vmatprep.mubr.f32.mxu0 0.0
        %2903 = vmatmul.mubr.f32.gmra.mrb[0].mxu0 %v2733
        %v2904 = vpop.f32.mrb[0].mxu0
        %v2905 = vadd.f32 0.0, %v2904
        %v2906 = vpop.f32.mrb[0].mxu0
        %2907 = vmatprep.mubr.f32.mxu0 0.0
        %2908 = vmatmul.mubr.f32.gmra.mrb[0].mxu0 %v2736
        %v2909 = vpop.f32.mrb[0].mxu0
        %v2910 = vadd.f32 0.0, %v2909
        %v2911 = vpop.f32.mrb[0].mxu0
        %2912 = vmatprep.mubr.f32.mxu0 0.0
        %2913 = vmatmul.mubr.f32.gmra.mrb[0].mxu0 %v2739
        %v2914 = vpop.f32.mrb[0].mxu0
        %v2915 = vadd.f32 0.0, %v2914
        %v2916 = vpop.f32.mrb[0].mxu0
        %2917 = vmatprep.mubr.f32.mxu0 0.0
        %2918 = vmatmul.mubr.f32.gmra.mrb[0].mxu0 %v2742
        %v2919 = vpop.f32.mrb[0].mxu0
        %v2920 = vadd.f32 0.0, %v2919
        %v2921 = vpop.f32.mrb[0].mxu0
        %2922 = vmatprep.mubr.f32.mxu0 0.0
        %2923 = vmatmul.mubr.f32.gmra.mrb[0].mxu0 %v2745
        %v2924 = vpop.f32.mrb[0].mxu0
        %v2925 = vadd.f32 0.0, %v2924
        %v2926 = vpop.f32.mrb[0].mxu0
        %2927 = vmatprep.mubr.f32.mxu0 0.0
        %2928 = vmatmul.mubr.f32.gmra.mrb[0].mxu0 %v2748
        %v2929 = vpop.f32.mrb[0].mxu0
        %v2930 = vadd.f32 0.0, %v2929
        %v2931 = vpop.f32.mrb[0].mxu0
        %2932 = vmatprep.mubr.f32.mxu0 0.0
        %2933 = vmatmul.mubr.f32.gmra.mrb[0].mxu0 %v2751
        %v2934 = vpop.f32.mrb[0].mxu0
        %v2935 = vadd.f32 0.0, %v2934
        %v2936 = vpop.f32.mrb[0].mxu0
        %2937 = vmatprep.mubr.f32.mxu0 0.0
        %2938 = vmatmul.mubr.f32.gmra.mrb[0].mxu0 %v2754
        %v2939 = vpop.f32.mrb[0].mxu0
        %v2940 = vadd.f32 0.0, %v2939
        %v2941 = vpop.f32.mrb[0].mxu0
        %2942 = vmatprep.mubr.f32.mxu0 0.0
        %2943 = vmatmul.mubr.f32.gmra.mrb[0].mxu0 %v2757
        %v2944 = vpop.f32.mrb[0].mxu0
        %v2945 = vadd.f32 0.0, %v2944
        %v2946 = vpop.f32.mrb[0].mxu0
        %2947 = vmatprep.mubr.f32.mxu0 0.0
        %2948 = vmatmul.mubr.f32.gmra.mrb[0].mxu0 %v2760
        %v2949 = vpop.f32.mrb[0].mxu0
        %v2950 = vadd.f32 0.0, %v2949
        %v2951 = vpop.f32.mrb[0].mxu0
        %2952 = vmatprep.mubr.f32.mxu0 0.0
        %2953 = vmatmul.mubr.f32.gmra.mrb[0].mxu0 %v2763
        %v2954 = vpop.f32.mrb[0].mxu0
        %v2955 = vadd.f32 0.0, %v2954
        %v2956 = vpop.f32.mrb[0].mxu0
        %2957 = vmatprep.mubr.f32.mxu0 0.0
        %2958 = vmatmul.mubr.f32.gmra.mrb[0].mxu0 %v2766
        %v2959 = vpop.f32.mrb[0].mxu0
        %v2960 = vadd.f32 0.0, %v2959
        %v2961 = vpop.f32.mrb[0].mxu0
        %2962 = vmatprep.mubr.f32.mxu0 0.0
        %2963 = vmatmul.mubr.f32.gmra.mrb[0].mxu0 %v2769
        %v2964 = vpop.f32.mrb[0].mxu0
        %v2965 = vadd.f32 0.0, %v2964
        %v2966 = vpop.f32.mrb[0].mxu0
        %2967 = vmatprep.mubr.f32.mxu0 0.0
        %2968 = vmatmul.mubr.f32.gmra.mrb[0].mxu0 %v2772
        %v2969 = vpop.f32.mrb[0].mxu0
        %v2970 = vadd.f32 0.0, %v2969
        %v2971 = vpop.f32.mrb[0].mxu0
        %2972 = vmatprep.mubr.f32.mxu0 0.0
        %2973 = vmatmul.mubr.f32.gmra.mrb[0].mxu0 %v2775
        %v2974 = vpop.f32.mrb[0].mxu0
        %v2975 = vadd.f32 0.0, %v2974
        %v2976 = vpop.f32.mrb[0].mxu0
        %2977 = vmatprep.mubr.f32.mxu0 0.0
        %2978 = vmatmul.mubr.f32.gmra.mrb[0].mxu0 %v2778
        %v2979 = vpop.f32.mrb[0].mxu0
        %v2980 = vadd.f32 0.0, %v2979
        %v2981 = vpop.f32.mrb[0].mxu0
        %2982 = vmatprep.mubr.f32.mxu0 0.0
        %2983 = vmatmul.mubr.f32.gmra.mrb[0].mxu0 %v2781
        %v2984 = vpop.f32.mrb[0].mxu0
        %v2985 = vadd.f32 0.0, %v2984
        %v2986 = vpop.f32.mrb[0].mxu0
        %2987 = vmatprep.mubr.f32.mxu0 0.0
        %2988 = vmatmul.mubr.f32.gmra.mrb[0].mxu0 %v2784
        %v2989 = vpop.f32.mrb[0].mxu0
        %v2990 = vadd.f32 0.0, %v2989
        %v2991 = vpop.f32.mrb[0].mxu0
        %2992 = vmatprep.mubr.f32.mxu0 0.0
        %2993 = vmatmul.mubr.f32.gmra.mrb[0].mxu0 %v2787
        %v2994 = vpop.f32.mrb[0].mxu0
        %v2995 = vadd.f32 0.0, %v2994
        %v2996 = vpop.f32.mrb[0].mxu0
        %2997 = vmatprep.mubr.f32.mxu0 0.0
        %2998 = vmatmul.mubr.f32.gmra.mrb[0].mxu0 %v2790
        %v2999 = vpop.f32.mrb[0].mxu0
        %v3000 = vadd.f32 0.0, %v2999
        %v3001 = vpop.f32.mrb[0].mxu0
        %3002 = vmatprep.mubr.f32.mxu0 0.0
        %3003 = vmatmul.mubr.f32.gmra.mrb[0].mxu0 %v2793
        %v3004 = vpop.f32.mrb[0].mxu0
        %v3005 = vadd.f32 0.0, %v3004
        %v3006 = vpop.f32.mrb[0].mxu0
        %3007 = vmatprep.mubr.f32.mxu0 0.0
        %3008 = vmatmul.mubr.f32.gmra.mrb[0].mxu0 %v2796
        %v3009 = vpop.f32.mrb[0].mxu0
        %v3010 = vadd.f32 0.0, %v3009
        %v3011 = vpop.f32.mrb[0].mxu0
        %3012 = vmatprep.mubr.f32.mxu0 0.0
        %3013 = vmatmul.mubr.f32.gmra.mrb[0].mxu0 %v2799
        %v3014 = vpop.f32.mrb[0].mxu0
        %v3015 = vadd.f32 0.0, %v3014
        %v3016 = vpop.f32.mrb[0].mxu0
        %3017 = vmatprep.mubr.f32.mxu0 0.0
        %3018 = vmatmul.mubr.f32.gmra.mrb[0].mxu0 %v2802
        %v3019 = vpop.f32.mrb[0].mxu0
        %v3020 = vadd.f32 0.0, %v3019
        %v3021 = vpop.f32.mrb[0].mxu0
        %3022 = vmatprep.mubr.f32.mxu0 0.0
        %3023 = vmatmul.mubr.f32.gmra.mrb[0].mxu0 %v2805
        %v3024 = vpop.f32.mrb[0].mxu0
        %v3025 = vadd.f32 0.0, %v3024
        %v3026 = vpop.f32.mrb[0].mxu0
        %3027 = vmatprep.mubr.f32.mxu0 0.0
        %3028 = vmatmul.mubr.f32.gmra.mrb[0].mxu0 %v2808
        %v3029 = vpop.f32.mrb[0].mxu0
        %v3030 = vadd.f32 0.0, %v3029
        %v3031 = vpop.f32.mrb[0].mxu0
        %3032 = vmatprep.mubr.f32.mxu0 0.0
        %3033 = vmatmul.mubr.f32.gmra.mrb[0].mxu0 %v2811
        %v3034 = vpop.f32.mrb[0].mxu0
        %v3035 = vadd.f32 0.0, %v3034
        %v3036 = vpop.f32.mrb[0].mxu0
        %3037 = vdwg.mxu0
        %v3038 = vadd.f32 %v2649, %v2880
        %v3039 = vadd.f32 %v2650, %v2885
        %v3040 = vadd.f32 %v2651, %v2890
        %v3041 = vadd.f32 %v2652, %v2895
        %v3042 = vadd.f32 %v2653, %v2900
        %v3043 = vadd.f32 %v2654, %v2905
        %v3044 = vadd.f32 %v2655, %v2910
        %v3045 = vadd.f32 %v2656, %v2915
        %v3046 = vadd.f32 %v2657, %v2920
        %v3047 = vadd.f32 %v2658, %v2925
        %v3048 = vadd.f32 %v2659, %v2930
        %v3049 = vadd.f32 %v2660, %v2935
        %v3050 = vadd.f32 %v2661, %v2940
        %v3051 = vadd.f32 %v2662, %v2945
        %v3052 = vadd.f32 %v2663, %v2950
        %v3053 = vadd.f32 %v2664, %v2955
        %v3054 = vadd.f32 %v2665, %v2960
        %v3055 = vadd.f32 %v2666, %v2965
        %v3056 = vadd.f32 %v2667, %v2970
        %v3057 = vadd.f32 %v2668, %v2975
        %v3058 = vadd.f32 %v2669, %v2980
        %v3059 = vadd.f32 %v2670, %v2985
        %v3060 = vadd.f32 %v2671, %v2990
        %v3061 = vadd.f32 %v2672, %v2995
        %v3062 = vadd.f32 %v2673, %v3000
        %v3063 = vadd.f32 %v2674, %v3005
        %v3064 = vadd.f32 %v2675, %v3010
        %v3065 = vadd.f32 %v2676, %v3015
        %v3066 = vadd.f32 %v2677, %v3020
        %v3067 = vadd.f32 %v2678, %v3025
        %v3068 = vadd.f32 %v2679, %v3030
        %v3069 = vadd.f32 %v2680, %v3035
        %v3070 = vld [vmem:[%s2681 + $0x1] sm:$0xff]
        %v3071 = vld [vmem:[%s2681 + $0x9] sm:$0xff]
        %v3072 = vld [vmem:[%s2681 + $0x19] sm:$0xff]
        %v3073 = vld [vmem:[%s2681 + $0x21] sm:$0xff]
        %v3074 = vld [vmem:[%s2681 + $0x31] sm:$0xff]
        %v3075 = vld [vmem:[%s2681 + $0x39] sm:$0xff]
        %v3076 = vld [vmem:[%s2681 + $0x49] sm:$0xff]
        %v3077 = vld [vmem:[%s2681 + $0x51] sm:$0xff]
        %v3078 = vld [vmem:[%s2681 + $0x61] sm:$0xff]
        %v3079 = vld [vmem:[%s2681 + $0x69] sm:$0xff]
        %v3080 = vld [vmem:[%s2681 + $0x79] sm:$0xff]
        %v3081 = vld [vmem:[%s2681 + $0x81] sm:$0xff]
        %v3082 = vld [vmem:[%s2681 + $0x91] sm:$0xff]
        %v3083 = vld [vmem:[%s2681 + $0x99] sm:$0xff]
        %v3084 = vld [vmem:[%s2681 + $0xa9] sm:$0xff]
        %v3085 = vld [vmem:[%s2681 + $0xb1] sm:$0xff]
        %v3086 = vld [vmem:[%s2681 + $0xc1] sm:$0xff]
        %v3087 = vld [vmem:[%s2681 + $0xc9] sm:$0xff]
        %v3088 = vld [vmem:[%s2681 + $0xd9] sm:$0xff]
        %v3089 = vld [vmem:[%s2681 + $0xe1] sm:$0xff]
        %v3090 = vld [vmem:[%s2681 + $0xf1] sm:$0xff]
        %v3091 = vld [vmem:[%s2681 + $0xf9] sm:$0xff]
        %v3092 = vld [vmem:[%s2681 + $0x109] sm:$0xff]
        %v3093 = vld [vmem:[%s2681 + $0x111] sm:$0xff]
        %v3094 = vld [vmem:[%s2681 + $0x121] sm:$0xff]
        %v3095 = vld [vmem:[%s2681 + $0x129] sm:$0xff]
        %v3096 = vld [vmem:[%s2681 + $0x139] sm:$0xff]
        %v3097 = vld [vmem:[%s2681 + $0x141] sm:$0xff]
        %v3098 = vld [vmem:[%s2681 + $0x151] sm:$0xff]
        %v3099 = vld [vmem:[%s2681 + $0x159] sm:$0xff]
        %v3100 = vld [vmem:[%s2681 + $0x169] sm:$0xff]
        %v3101 = vld [vmem:[%s2681 + $0x171] sm:$0xff]
        %s3102 = scalar_lea.vmem [#allocation6], 112
        %v3103 = vld [vmem:[%s3102] sm:$0xff]
        %v3104 = vld [vmem:[%s3102 + $0x8] sm:$0xff]
        %v3106 = vsel %vm297, %v3070, 0
        %v3109 = vsel %vm297, %v3071, 0
        %v3112 = vsel %vm297, %v3072, 0
        %v3115 = vsel %vm297, %v3073, 0
        %v3118 = vsel %vm297, %v3074, 0
        %v3121 = vsel %vm297, %v3075, 0
        %v3124 = vsel %vm297, %v3076, 0
        %v3127 = vsel %vm297, %v3077, 0
        %v3130 = vsel %vm297, %v3078, 0
        %v3133 = vsel %vm297, %v3079, 0
        %v3136 = vsel %vm297, %v3080, 0
        %v3139 = vsel %vm297, %v3081, 0
        %v3142 = vsel %vm297, %v3082, 0
        %v3145 = vsel %vm297, %v3083, 0
        %v3148 = vsel %vm297, %v3084, 0
        %v3151 = vsel %vm297, %v3085, 0
        %v3154 = vsel %vm297, %v3086, 0
        %v3157 = vsel %vm297, %v3087, 0
        %v3160 = vsel %vm297, %v3088, 0
        %v3163 = vsel %vm297, %v3089, 0
        %v3166 = vsel %vm297, %v3090, 0
        %v3169 = vsel %vm297, %v3091, 0
        %v3172 = vsel %vm297, %v3092, 0
        %v3175 = vsel %vm297, %v3093, 0
        %v3178 = vsel %vm297, %v3094, 0
        %v3181 = vsel %vm297, %v3095, 0
        %v3184 = vsel %vm297, %v3096, 0
        %v3187 = vsel %vm297, %v3097, 0
        %v3190 = vsel %vm297, %v3098, 0
        %v3193 = vsel %vm297, %v3099, 0
        %v3196 = vsel %vm297, %v3100, 0
        %v3199 = vsel %vm297, %v3101, 0
        %3201 = vmatprep.subr.mxu0 0.0
        %3202 = vmatpush1.msra.mxu0 %v3103
        %3203 = vmatprep.subr.mxu0 0.0
        %3204 = vmatpush1.msra.mxu0 %v3104
        %3205 = vmatprep.subr.mxu0 0.0
        %3206 = vmatpush1.msra.mxu0 0.0
        %3207 = vmatprep.subr.mxu0 0.0
        %3208 = vmatpush1.msra.mxu0 0.0
        %3209 = vmatprep.subr.mxu0 0.0
        %3210 = vmatpush1.msra.mxu0 0.0
        %3211 = vmatprep.subr.mxu0 0.0
        %3212 = vmatpush1.msra.mxu0 0.0
        %3213 = vmatprep.subr.mxu0 0.0
        %3214 = vmatpush1.msra.mxu0 0.0
        %3215 = vmatprep.subr.mxu0 0.0
        %3216 = vmatpush1.msra.mxu0 0.0
        %3217 = vmatprep.subr.mxu0 0.0
        %3218 = vmatpush1.msra.mxu0 0.0
        %3219 = vmatprep.subr.mxu0 0.0
        %3220 = vmatpush1.msra.mxu0 0.0
        %3221 = vmatprep.subr.mxu0 0.0
        %3222 = vmatpush1.msra.mxu0 0.0
        %3223 = vmatprep.subr.mxu0 0.0
        %3224 = vmatpush1.msra.mxu0 0.0
        %3225 = vmatprep.subr.mxu0 0.0
        %3226 = vmatpush1.msra.mxu0 0.0
        %3227 = vmatprep.subr.mxu0 0.0
        %3228 = vmatpush1.msra.mxu0 0.0
        %3229 = vmatprep.subr.mxu0 0.0
        %3230 = vmatpush1.msra.mxu0 0.0
        %3231 = vmatprep.subr.mxu0 0.0
        %3232 = vmatpush1.msra.mxu0 0.0
        %3233 = vmatprep.subr.mxu0 0.0
        %3234 = vmatpush1.msra.mxu0 0.0
        %3235 = vmatprep.subr.mxu0 0.0
        %3236 = vmatpush1.msra.mxu0 0.0
        %3237 = vmatprep.subr.mxu0 0.0
        %3238 = vmatpush1.msra.mxu0 0.0
        %3239 = vmatprep.subr.mxu0 0.0
        %3240 = vmatpush1.msra.mxu0 0.0
        %3241 = vmatprep.subr.mxu0 0.0
        %3242 = vmatpush1.msra.mxu0 0.0
        %3243 = vmatprep.subr.mxu0 0.0
        %3244 = vmatpush1.msra.mxu0 0.0
        %3245 = vmatprep.subr.mxu0 0.0
        %3246 = vmatpush1.msra.mxu0 0.0
        %3247 = vmatprep.subr.mxu0 0.0
        %3248 = vmatpush1.msra.mxu0 0.0
        %3249 = vmatprep.subr.mxu0 0.0
        %3250 = vmatpush1.msra.mxu0 0.0
        %3251 = vmatprep.subr.mxu0 0.0
        %3252 = vmatpush1.msra.mxu0 0.0
        %3253 = vmatprep.subr.mxu0 0.0
        %3254 = vmatpush1.msra.mxu0 0.0
        %3255 = vmatprep.subr.mxu0 0.0
        %3256 = vmatpush1.msra.mxu0 0.0
        %3257 = vmatprep.subr.mxu0 0.0
        %3258 = vmatpush1.msra.mxu0 0.0
        %3259 = vmatprep.subr.mxu0 0.0
        %3260 = vmatpush1.msra.mxu0 0.0
        %3261 = vmatprep.subr.mxu0 0.0
        %3262 = vmatpush1.msra.mxu0 0.0
        %3263 = vmatprep.subr.mxu0 0.0
        %3264 = vmatpush1.msra.mxu0 0.0
        %3265 = vmatprep.mubr.f32.mxu0 0.0
        %3266 = vmatmul.mubr.f32.gmra.mrb[0].mxu0 %v3106
        %v3267 = vpop.f32.mrb[0].mxu0
        %v3268 = vadd.f32 0.0, %v3267
        %v3269 = vpop.f32.mrb[0].mxu0
        %3270 = vmatprep.mubr.f32.mxu0 0.0
        %3271 = vmatmul.mubr.f32.gmra.mrb[0].mxu0 %v3109
        %v3272 = vpop.f32.mrb[0].mxu0
        %v3273 = vadd.f32 0.0, %v3272
        %v3274 = vpop.f32.mrb[0].mxu0
        %3275 = vmatprep.mubr.f32.mxu0 0.0
        %3276 = vmatmul.mubr.f32.gmra.mrb[0].mxu0 %v3112
        %v3277 = vpop.f32.mrb[0].mxu0
        %v3278 = vadd.f32 0.0, %v3277
        %v3279 = vpop.f32.mrb[0].mxu0
        %3280 = vmatprep.mubr.f32.mxu0 0.0
        %3281 = vmatmul.mubr.f32.gmra.mrb[0].mxu0 %v3115
        %v3282 = vpop.f32.mrb[0].mxu0
        %v3283 = vadd.f32 0.0, %v3282
        %v3284 = vpop.f32.mrb[0].mxu0
        %3285 = vmatprep.mubr.f32.mxu0 0.0
        %3286 = vmatmul.mubr.f32.gmra.mrb[0].mxu0 %v3118
        %v3287 = vpop.f32.mrb[0].mxu0
        %v3288 = vadd.f32 0.0, %v3287
        %v3289 = vpop.f32.mrb[0].mxu0
        %3290 = vmatprep.mubr.f32.mxu0 0.0
        %3291 = vmatmul.mubr.f32.gmra.mrb[0].mxu0 %v3121
        %v3292 = vpop.f32.mrb[0].mxu0
        %v3293 = vadd.f32 0.0, %v3292
        %v3294 = vpop.f32.mrb[0].mxu0
        %3295 = vmatprep.mubr.f32.mxu0 0.0
        %3296 = vmatmul.mubr.f32.gmra.mrb[0].mxu0 %v3124
        %v3297 = vpop.f32.mrb[0].mxu0
        %v3298 = vadd.f32 0.0, %v3297
        %v3299 = vpop.f32.mrb[0].mxu0
        %3300 = vmatprep.mubr.f32.mxu0 0.0
        %3301 = vmatmul.mubr.f32.gmra.mrb[0].mxu0 %v3127
        %v3302 = vpop.f32.mrb[0].mxu0
        %v3303 = vadd.f32 0.0, %v3302
        %v3304 = vpop.f32.mrb[0].mxu0
        %3305 = vmatprep.mubr.f32.mxu0 0.0
        %3306 = vmatmul.mubr.f32.gmra.mrb[0].mxu0 %v3130
        %v3307 = vpop.f32.mrb[0].mxu0
        %v3308 = vadd.f32 0.0, %v3307
        %v3309 = vpop.f32.mrb[0].mxu0
        %3310 = vmatprep.mubr.f32.mxu0 0.0
        %3311 = vmatmul.mubr.f32.gmra.mrb[0].mxu0 %v3133
        %v3312 = vpop.f32.mrb[0].mxu0
        %v3313 = vadd.f32 0.0, %v3312
        %v3314 = vpop.f32.mrb[0].mxu0
        %3315 = vmatprep.mubr.f32.mxu0 0.0
        %3316 = vmatmul.mubr.f32.gmra.mrb[0].mxu0 %v3136
        %v3317 = vpop.f32.mrb[0].mxu0
        %v3318 = vadd.f32 0.0, %v3317
        %v3319 = vpop.f32.mrb[0].mxu0
        %3320 = vmatprep.mubr.f32.mxu0 0.0
        %3321 = vmatmul.mubr.f32.gmra.mrb[0].mxu0 %v3139
        %v3322 = vpop.f32.mrb[0].mxu0
        %v3323 = vadd.f32 0.0, %v3322
        %v3324 = vpop.f32.mrb[0].mxu0
        %3325 = vmatprep.mubr.f32.mxu0 0.0
        %3326 = vmatmul.mubr.f32.gmra.mrb[0].mxu0 %v3142
        %v3327 = vpop.f32.mrb[0].mxu0
        %v3328 = vadd.f32 0.0, %v3327
        %v3329 = vpop.f32.mrb[0].mxu0
        %3330 = vmatprep.mubr.f32.mxu0 0.0
        %3331 = vmatmul.mubr.f32.gmra.mrb[0].mxu0 %v3145
        %v3332 = vpop.f32.mrb[0].mxu0
        %v3333 = vadd.f32 0.0, %v3332
        %v3334 = vpop.f32.mrb[0].mxu0
        %3335 = vmatprep.mubr.f32.mxu0 0.0
        %3336 = vmatmul.mubr.f32.gmra.mrb[0].mxu0 %v3148
        %v3337 = vpop.f32.mrb[0].mxu0
        %v3338 = vadd.f32 0.0, %v3337
        %v3339 = vpop.f32.mrb[0].mxu0
        %3340 = vmatprep.mubr.f32.mxu0 0.0
        %3341 = vmatmul.mubr.f32.gmra.mrb[0].mxu0 %v3151
        %v3342 = vpop.f32.mrb[0].mxu0
        %v3343 = vadd.f32 0.0, %v3342
        %v3344 = vpop.f32.mrb[0].mxu0
        %3345 = vmatprep.mubr.f32.mxu0 0.0
        %3346 = vmatmul.mubr.f32.gmra.mrb[0].mxu0 %v3154
        %v3347 = vpop.f32.mrb[0].mxu0
        %v3348 = vadd.f32 0.0, %v3347
        %v3349 = vpop.f32.mrb[0].mxu0
        %3350 = vmatprep.mubr.f32.mxu0 0.0
        %3351 = vmatmul.mubr.f32.gmra.mrb[0].mxu0 %v3157
        %v3352 = vpop.f32.mrb[0].mxu0
        %v3353 = vadd.f32 0.0, %v3352
        %v3354 = vpop.f32.mrb[0].mxu0
        %3355 = vmatprep.mubr.f32.mxu0 0.0
        %3356 = vmatmul.mubr.f32.gmra.mrb[0].mxu0 %v3160
        %v3357 = vpop.f32.mrb[0].mxu0
        %v3358 = vadd.f32 0.0, %v3357
        %v3359 = vpop.f32.mrb[0].mxu0
        %3360 = vmatprep.mubr.f32.mxu0 0.0
        %3361 = vmatmul.mubr.f32.gmra.mrb[0].mxu0 %v3163
        %v3362 = vpop.f32.mrb[0].mxu0
        %v3363 = vadd.f32 0.0, %v3362
        %v3364 = vpop.f32.mrb[0].mxu0
        %3365 = vmatprep.mubr.f32.mxu0 0.0
        %3366 = vmatmul.mubr.f32.gmra.mrb[0].mxu0 %v3166
        %v3367 = vpop.f32.mrb[0].mxu0
        %v3368 = vadd.f32 0.0, %v3367
        %v3369 = vpop.f32.mrb[0].mxu0
        %3370 = vmatprep.mubr.f32.mxu0 0.0
        %3371 = vmatmul.mubr.f32.gmra.mrb[0].mxu0 %v3169
        %v3372 = vpop.f32.mrb[0].mxu0
        %v3373 = vadd.f32 0.0, %v3372
        %v3374 = vpop.f32.mrb[0].mxu0
        %3375 = vmatprep.mubr.f32.mxu0 0.0
        %3376 = vmatmul.mubr.f32.gmra.mrb[0].mxu0 %v3172
        %v3377 = vpop.f32.mrb[0].mxu0
        %v3378 = vadd.f32 0.0, %v3377
        %v3379 = vpop.f32.mrb[0].mxu0
        %3380 = vmatprep.mubr.f32.mxu0 0.0
        %3381 = vmatmul.mubr.f32.gmra.mrb[0].mxu0 %v3175
        %v3382 = vpop.f32.mrb[0].mxu0
        %v3383 = vadd.f32 0.0, %v3382
        %v3384 = vpop.f32.mrb[0].mxu0
        %3385 = vmatprep.mubr.f32.mxu0 0.0
        %3386 = vmatmul.mubr.f32.gmra.mrb[0].mxu0 %v3178
        %v3387 = vpop.f32.mrb[0].mxu0
        %v3388 = vadd.f32 0.0, %v3387
        %v3389 = vpop.f32.mrb[0].mxu0
        %3390 = vmatprep.mubr.f32.mxu0 0.0
        %3391 = vmatmul.mubr.f32.gmra.mrb[0].mxu0 %v3181
        %v3392 = vpop.f32.mrb[0].mxu0
        %v3393 = vadd.f32 0.0, %v3392
        %v3394 = vpop.f32.mrb[0].mxu0
        %3395 = vmatprep.mubr.f32.mxu0 0.0
        %3396 = vmatmul.mubr.f32.gmra.mrb[0].mxu0 %v3184
        %v3397 = vpop.f32.mrb[0].mxu0
        %v3398 = vadd.f32 0.0, %v3397
        %v3399 = vpop.f32.mrb[0].mxu0
        %3400 = vmatprep.mubr.f32.mxu0 0.0
        %3401 = vmatmul.mubr.f32.gmra.mrb[0].mxu0 %v3187
        %v3402 = vpop.f32.mrb[0].mxu0
        %v3403 = vadd.f32 0.0, %v3402
        %v3404 = vpop.f32.mrb[0].mxu0
        %3405 = vmatprep.mubr.f32.mxu0 0.0
        %3406 = vmatmul.mubr.f32.gmra.mrb[0].mxu0 %v3190
        %v3407 = vpop.f32.mrb[0].mxu0
        %v3408 = vadd.f32 0.0, %v3407
        %v3409 = vpop.f32.mrb[0].mxu0
        %3410 = vmatprep.mubr.f32.mxu0 0.0
        %3411 = vmatmul.mubr.f32.gmra.mrb[0].mxu0 %v3193
        %v3412 = vpop.f32.mrb[0].mxu0
        %v3413 = vadd.f32 0.0, %v3412
        %v3414 = vpop.f32.mrb[0].mxu0
        %3415 = vmatprep.mubr.f32.mxu0 0.0
        %3416 = vmatmul.mubr.f32.gmra.mrb[0].mxu0 %v3196
        %v3417 = vpop.f32.mrb[0].mxu0
        %v3418 = vadd.f32 0.0, %v3417
        %v3419 = vpop.f32.mrb[0].mxu0
        %3420 = vmatprep.mubr.f32.mxu0 0.0
        %3421 = vmatmul.mubr.f32.gmra.mrb[0].mxu0 %v3199
        %v3422 = vpop.f32.mrb[0].mxu0
        %v3423 = vadd.f32 0.0, %v3422
        %v3424 = vpop.f32.mrb[0].mxu0
        %3425 = vdwg.mxu0
        %v3426 = vadd.f32 %v3038, %v3268
        %v3427 = vadd.f32 %v3039, %v3273
        %v3428 = vadd.f32 %v3040, %v3278
        %v3429 = vadd.f32 %v3041, %v3283
        %v3430 = vadd.f32 %v3042, %v3288
        %v3431 = vadd.f32 %v3043, %v3293
        %v3432 = vadd.f32 %v3044, %v3298
        %v3433 = vadd.f32 %v3045, %v3303
        %v3434 = vadd.f32 %v3046, %v3308
        %v3435 = vadd.f32 %v3047, %v3313
        %v3436 = vadd.f32 %v3048, %v3318
        %v3437 = vadd.f32 %v3049, %v3323
        %v3438 = vadd.f32 %v3050, %v3328
        %v3439 = vadd.f32 %v3051, %v3333
        %v3440 = vadd.f32 %v3052, %v3338
        %v3441 = vadd.f32 %v3053, %v3343
        %v3442 = vadd.f32 %v3054, %v3348
        %v3443 = vadd.f32 %v3055, %v3353
        %v3444 = vadd.f32 %v3056, %v3358
        %v3445 = vadd.f32 %v3057, %v3363
        %v3446 = vadd.f32 %v3058, %v3368
        %v3447 = vadd.f32 %v3059, %v3373
        %v3448 = vadd.f32 %v3060, %v3378
        %v3449 = vadd.f32 %v3061, %v3383
        %v3450 = vadd.f32 %v3062, %v3388
        %v3451 = vadd.f32 %v3063, %v3393
        %v3452 = vadd.f32 %v3064, %v3398
        %v3453 = vadd.f32 %v3065, %v3403
        %v3454 = vadd.f32 %v3066, %v3408
        %v3455 = vadd.f32 %v3067, %v3413
        %v3456 = vadd.f32 %v3068, %v3418
        %v3457 = vadd.f32 %v3069, %v3423
        %v3458 = vld [vmem:[%s2681 + $0x2] sm:$0xff]
        %v3459 = vld [vmem:[%s2681 + $0xa] sm:$0xff]
        %v3460 = vld [vmem:[%s2681 + $0x1a] sm:$0xff]
        %v3461 = vld [vmem:[%s2681 + $0x22] sm:$0xff]
        %v3462 = vld [vmem:[%s2681 + $0x32] sm:$0xff]
        %v3463 = vld [vmem:[%s2681 + $0x3a] sm:$0xff]
        %v3464 = vld [vmem:[%s2681 + $0x4a] sm:$0xff]
        %v3465 = vld [vmem:[%s2681 + $0x52] sm:$0xff]
        %v3466 = vld [vmem:[%s2681 + $0x62] sm:$0xff]
        %v3467 = vld [vmem:[%s2681 + $0x6a] sm:$0xff]
        %v3468 = vld [vmem:[%s2681 + $0x7a] sm:$0xff]
        %v3469 = vld [vmem:[%s2681 + $0x82] sm:$0xff]
        %v3470 = vld [vmem:[%s2681 + $0x92] sm:$0xff]
        %v3471 = vld [vmem:[%s2681 + $0x9a] sm:$0xff]
        %v3472 = vld [vmem:[%s2681 + $0xaa] sm:$0xff]
        %v3473 = vld [vmem:[%s2681 + $0xb2] sm:$0xff]
        %v3474 = vld [vmem:[%s2681 + $0xc2] sm:$0xff]
        %v3475 = vld [vmem:[%s2681 + $0xca] sm:$0xff]
        %v3476 = vld [vmem:[%s2681 + $0xda] sm:$0xff]
        %v3477 = vld [vmem:[%s2681 + $0xe2] sm:$0xff]
        %v3478 = vld [vmem:[%s2681 + $0xf2] sm:$0xff]
        %v3479 = vld [vmem:[%s2681 + $0xfa] sm:$0xff]
        %v3480 = vld [vmem:[%s2681 + $0x10a] sm:$0xff]
        %v3481 = vld [vmem:[%s2681 + $0x112] sm:$0xff]
        %v3482 = vld [vmem:[%s2681 + $0x122] sm:$0xff]
        %v3483 = vld [vmem:[%s2681 + $0x12a] sm:$0xff]
        %v3484 = vld [vmem:[%s2681 + $0x13a] sm:$0xff]
        %v3485 = vld [vmem:[%s2681 + $0x142] sm:$0xff]
        %v3486 = vld [vmem:[%s2681 + $0x152] sm:$0xff]
        %v3487 = vld [vmem:[%s2681 + $0x15a] sm:$0xff]
        %v3488 = vld [vmem:[%s2681 + $0x16a] sm:$0xff]
        %v3489 = vld [vmem:[%s2681 + $0x172] sm:$0xff]
        %s3490 = scalar_lea.vmem [#allocation6], 128
        %v3491 = vld [vmem:[%s3490] sm:$0xff]
        %v3492 = vld [vmem:[%s3490 + $0x8] sm:$0xff]
        %v3494 = vsel %vm297, %v3458, 0
        %v3497 = vsel %vm297, %v3459, 0
        %v3500 = vsel %vm297, %v3460, 0
        %v3503 = vsel %vm297, %v3461, 0
        %v3506 = vsel %vm297, %v3462, 0
        %v3509 = vsel %vm297, %v3463, 0
        %v3512 = vsel %vm297, %v3464, 0
        %v3515 = vsel %vm297, %v3465, 0
        %v3518 = vsel %vm297, %v3466, 0
        %v3521 = vsel %vm297, %v3467, 0
        %v3524 = vsel %vm297, %v3468, 0
        %v3527 = vsel %vm297, %v3469, 0
        %v3530 = vsel %vm297, %v3470, 0
        %v3533 = vsel %vm297, %v3471, 0
        %v3536 = vsel %vm297, %v3472, 0
        %v3539 = vsel %vm297, %v3473, 0
        %v3542 = vsel %vm297, %v3474, 0
        %v3545 = vsel %vm297, %v3475, 0
        %v3548 = vsel %vm297, %v3476, 0
        %v3551 = vsel %vm297, %v3477, 0
        %v3554 = vsel %vm297, %v3478, 0
        %v3557 = vsel %vm297, %v3479, 0
        %v3560 = vsel %vm297, %v3480, 0
        %v3563 = vsel %vm297, %v3481, 0
        %v3566 = vsel %vm297, %v3482, 0
        %v3569 = vsel %vm297, %v3483, 0
        %v3572 = vsel %vm297, %v3484, 0
        %v3575 = vsel %vm297, %v3485, 0
        %v3578 = vsel %vm297, %v3486, 0
        %v3581 = vsel %vm297, %v3487, 0
        %v3584 = vsel %vm297, %v3488, 0
        %v3587 = vsel %vm297, %v3489, 0
        %3589 = vmatprep.subr.mxu0 0.0
        %3590 = vmatpush1.msra.mxu0 %v3491
        %3591 = vmatprep.subr.mxu0 0.0
        %3592 = vmatpush1.msra.mxu0 %v3492
        %3593 = vmatprep.subr.mxu0 0.0
        %3594 = vmatpush1.msra.mxu0 0.0
        %3595 = vmatprep.subr.mxu0 0.0
        %3596 = vmatpush1.msra.mxu0 0.0
        %3597 = vmatprep.subr.mxu0 0.0
        %3598 = vmatpush1.msra.mxu0 0.0
        %3599 = vmatprep.subr.mxu0 0.0
        %3600 = vmatpush1.msra.mxu0 0.0
        %3601 = vmatprep.subr.mxu0 0.0
        %3602 = vmatpush1.msra.mxu0 0.0
        %3603 = vmatprep.subr.mxu0 0.0
        %3604 = vmatpush1.msra.mxu0 0.0
        %3605 = vmatprep.subr.mxu0 0.0
        %3606 = vmatpush1.msra.mxu0 0.0
        %3607 = vmatprep.subr.mxu0 0.0
        %3608 = vmatpush1.msra.mxu0 0.0
        %3609 = vmatprep.subr.mxu0 0.0
        %3610 = vmatpush1.msra.mxu0 0.0
        %3611 = vmatprep.subr.mxu0 0.0
        %3612 = vmatpush1.msra.mxu0 0.0
        %3613 = vmatprep.subr.mxu0 0.0
        %3614 = vmatpush1.msra.mxu0 0.0
        %3615 = vmatprep.subr.mxu0 0.0
        %3616 = vmatpush1.msra.mxu0 0.0
        %3617 = vmatprep.subr.mxu0 0.0
        %3618 = vmatpush1.msra.mxu0 0.0
        %3619 = vmatprep.subr.mxu0 0.0
        %3620 = vmatpush1.msra.mxu0 0.0
        %3621 = vmatprep.subr.mxu0 0.0
        %3622 = vmatpush1.msra.mxu0 0.0
        %3623 = vmatprep.subr.mxu0 0.0
        %3624 = vmatpush1.msra.mxu0 0.0
        %3625 = vmatprep.subr.mxu0 0.0
        %3626 = vmatpush1.msra.mxu0 0.0
        %3627 = vmatprep.subr.mxu0 0.0
        %3628 = vmatpush1.msra.mxu0 0.0
        %3629 = vmatprep.subr.mxu0 0.0
        %3630 = vmatpush1.msra.mxu0 0.0
        %3631 = vmatprep.subr.mxu0 0.0
        %3632 = vmatpush1.msra.mxu0 0.0
        %3633 = vmatprep.subr.mxu0 0.0
        %3634 = vmatpush1.msra.mxu0 0.0
        %3635 = vmatprep.subr.mxu0 0.0
        %3636 = vmatpush1.msra.mxu0 0.0
        %3637 = vmatprep.subr.mxu0 0.0
        %3638 = vmatpush1.msra.mxu0 0.0
        %3639 = vmatprep.subr.mxu0 0.0
        %3640 = vmatpush1.msra.mxu0 0.0
        %3641 = vmatprep.subr.mxu0 0.0
        %3642 = vmatpush1.msra.mxu0 0.0
        %3643 = vmatprep.subr.mxu0 0.0
        %3644 = vmatpush1.msra.mxu0 0.0
        %3645 = vmatprep.subr.mxu0 0.0
        %3646 = vmatpush1.msra.mxu0 0.0
        %3647 = vmatprep.subr.mxu0 0.0
        %3648 = vmatpush1.msra.mxu0 0.0
        %3649 = vmatprep.subr.mxu0 0.0
        %3650 = vmatpush1.msra.mxu0 0.0
        %3651 = vmatprep.subr.mxu0 0.0
        %3652 = vmatpush1.msra.mxu0 0.0
        %3653 = vmatprep.mubr.f32.mxu0 0.0
        %3654 = vmatmul.mubr.f32.gmra.mrb[0].mxu0 %v3494
        %v3655 = vpop.f32.mrb[0].mxu0
        %v3656 = vadd.f32 0.0, %v3655
        %v3657 = vpop.f32.mrb[0].mxu0
        %3658 = vmatprep.mubr.f32.mxu0 0.0
        %3659 = vmatmul.mubr.f32.gmra.mrb[0].mxu0 %v3497
        %v3660 = vpop.f32.mrb[0].mxu0
        %v3661 = vadd.f32 0.0, %v3660
        %v3662 = vpop.f32.mrb[0].mxu0
        %3663 = vmatprep.mubr.f32.mxu0 0.0
        %3664 = vmatmul.mubr.f32.gmra.mrb[0].mxu0 %v3500
        %v3665 = vpop.f32.mrb[0].mxu0
        %v3666 = vadd.f32 0.0, %v3665
        %v3667 = vpop.f32.mrb[0].mxu0
        %3668 = vmatprep.mubr.f32.mxu0 0.0
        %3669 = vmatmul.mubr.f32.gmra.mrb[0].mxu0 %v3503
        %v3670 = vpop.f32.mrb[0].mxu0
        %v3671 = vadd.f32 0.0, %v3670
        %v3672 = vpop.f32.mrb[0].mxu0
        %3673 = vmatprep.mubr.f32.mxu0 0.0
        %3674 = vmatmul.mubr.f32.gmra.mrb[0].mxu0 %v3506
        %v3675 = vpop.f32.mrb[0].mxu0
        %v3676 = vadd.f32 0.0, %v3675
        %v3677 = vpop.f32.mrb[0].mxu0
        %3678 = vmatprep.mubr.f32.mxu0 0.0
        %3679 = vmatmul.mubr.f32.gmra.mrb[0].mxu0 %v3509
        %v3680 = vpop.f32.mrb[0].mxu0
        %v3681 = vadd.f32 0.0, %v3680
        %v3682 = vpop.f32.mrb[0].mxu0
        %3683 = vmatprep.mubr.f32.mxu0 0.0
        %3684 = vmatmul.mubr.f32.gmra.mrb[0].mxu0 %v3512
        %v3685 = vpop.f32.mrb[0].mxu0
        %v3686 = vadd.f32 0.0, %v3685
        %v3687 = vpop.f32.mrb[0].mxu0
        %3688 = vmatprep.mubr.f32.mxu0 0.0
        %3689 = vmatmul.mubr.f32.gmra.mrb[0].mxu0 %v3515
        %v3690 = vpop.f32.mrb[0].mxu0
        %v3691 = vadd.f32 0.0, %v3690
        %v3692 = vpop.f32.mrb[0].mxu0
        %3693 = vmatprep.mubr.f32.mxu0 0.0
        %3694 = vmatmul.mubr.f32.gmra.mrb[0].mxu0 %v3518
        %v3695 = vpop.f32.mrb[0].mxu0
        %v3696 = vadd.f32 0.0, %v3695
        %v3697 = vpop.f32.mrb[0].mxu0
        %3698 = vmatprep.mubr.f32.mxu0 0.0
        %3699 = vmatmul.mubr.f32.gmra.mrb[0].mxu0 %v3521
        %v3700 = vpop.f32.mrb[0].mxu0
        %v3701 = vadd.f32 0.0, %v3700
        %v3702 = vpop.f32.mrb[0].mxu0
        %3703 = vmatprep.mubr.f32.mxu0 0.0
        %3704 = vmatmul.mubr.f32.gmra.mrb[0].mxu0 %v3524
        %v3705 = vpop.f32.mrb[0].mxu0
        %v3706 = vadd.f32 0.0, %v3705
        %v3707 = vpop.f32.mrb[0].mxu0
        %3708 = vmatprep.mubr.f32.mxu0 0.0
        %3709 = vmatmul.mubr.f32.gmra.mrb[0].mxu0 %v3527
        %v3710 = vpop.f32.mrb[0].mxu0
        %v3711 = vadd.f32 0.0, %v3710
        %v3712 = vpop.f32.mrb[0].mxu0
        %3713 = vmatprep.mubr.f32.mxu0 0.0
        %3714 = vmatmul.mubr.f32.gmra.mrb[0].mxu0 %v3530
        %v3715 = vpop.f32.mrb[0].mxu0
        %v3716 = vadd.f32 0.0, %v3715
        %v3717 = vpop.f32.mrb[0].mxu0
        %3718 = vmatprep.mubr.f32.mxu0 0.0
        %3719 = vmatmul.mubr.f32.gmra.mrb[0].mxu0 %v3533
        %v3720 = vpop.f32.mrb[0].mxu0
        %v3721 = vadd.f32 0.0, %v3720
        %v3722 = vpop.f32.mrb[0].mxu0
        %3723 = vmatprep.mubr.f32.mxu0 0.0
        %3724 = vmatmul.mubr.f32.gmra.mrb[0].mxu0 %v3536
        %v3725 = vpop.f32.mrb[0].mxu0
        %v3726 = vadd.f32 0.0, %v3725
        %v3727 = vpop.f32.mrb[0].mxu0
        %3728 = vmatprep.mubr.f32.mxu0 0.0
        %3729 = vmatmul.mubr.f32.gmra.mrb[0].mxu0 %v3539
        %v3730 = vpop.f32.mrb[0].mxu0
        %v3731 = vadd.f32 0.0, %v3730
        %v3732 = vpop.f32.mrb[0].mxu0
        %3733 = vmatprep.mubr.f32.mxu0 0.0
        %3734 = vmatmul.mubr.f32.gmra.mrb[0].mxu0 %v3542
        %v3735 = vpop.f32.mrb[0].mxu0
        %v3736 = vadd.f32 0.0, %v3735
        %v3737 = vpop.f32.mrb[0].mxu0
        %3738 = vmatprep.mubr.f32.mxu0 0.0
        %3739 = vmatmul.mubr.f32.gmra.mrb[0].mxu0 %v3545
        %v3740 = vpop.f32.mrb[0].mxu0
        %v3741 = vadd.f32 0.0, %v3740
        %v3742 = vpop.f32.mrb[0].mxu0
        %3743 = vmatprep.mubr.f32.mxu0 0.0
        %3744 = vmatmul.mubr.f32.gmra.mrb[0].mxu0 %v3548
        %v3745 = vpop.f32.mrb[0].mxu0
        %v3746 = vadd.f32 0.0, %v3745
        %v3747 = vpop.f32.mrb[0].mxu0
        %3748 = vmatprep.mubr.f32.mxu0 0.0
        %3749 = vmatmul.mubr.f32.gmra.mrb[0].mxu0 %v3551
        %v3750 = vpop.f32.mrb[0].mxu0
        %v3751 = vadd.f32 0.0, %v3750
        %v3752 = vpop.f32.mrb[0].mxu0
        %3753 = vmatprep.mubr.f32.mxu0 0.0
        %3754 = vmatmul.mubr.f32.gmra.mrb[0].mxu0 %v3554
        %v3755 = vpop.f32.mrb[0].mxu0
        %v3756 = vadd.f32 0.0, %v3755
        %v3757 = vpop.f32.mrb[0].mxu0
        %3758 = vmatprep.mubr.f32.mxu0 0.0
        %3759 = vmatmul.mubr.f32.gmra.mrb[0].mxu0 %v3557
        %v3760 = vpop.f32.mrb[0].mxu0
        %v3761 = vadd.f32 0.0, %v3760
        %v3762 = vpop.f32.mrb[0].mxu0
        %3763 = vmatprep.mubr.f32.mxu0 0.0
        %3764 = vmatmul.mubr.f32.gmra.mrb[0].mxu0 %v3560
        %v3765 = vpop.f32.mrb[0].mxu0
        %v3766 = vadd.f32 0.0, %v3765
        %v3767 = vpop.f32.mrb[0].mxu0
        %3768 = vmatprep.mubr.f32.mxu0 0.0
        %3769 = vmatmul.mubr.f32.gmra.mrb[0].mxu0 %v3563
        %v3770 = vpop.f32.mrb[0].mxu0
        %v3771 = vadd.f32 0.0, %v3770
        %v3772 = vpop.f32.mrb[0].mxu0
        %3773 = vmatprep.mubr.f32.mxu0 0.0
        %3774 = vmatmul.mubr.f32.gmra.mrb[0].mxu0 %v3566
        %v3775 = vpop.f32.mrb[0].mxu0
        %v3776 = vadd.f32 0.0, %v3775
        %v3777 = vpop.f32.mrb[0].mxu0
        %3778 = vmatprep.mubr.f32.mxu0 0.0
        %3779 = vmatmul.mubr.f32.gmra.mrb[0].mxu0 %v3569
        %v3780 = vpop.f32.mrb[0].mxu0
        %v3781 = vadd.f32 0.0, %v3780
        %v3782 = vpop.f32.mrb[0].mxu0
        %3783 = vmatprep.mubr.f32.mxu0 0.0
        %3784 = vmatmul.mubr.f32.gmra.mrb[0].mxu0 %v3572
        %v3785 = vpop.f32.mrb[0].mxu0
        %v3786 = vadd.f32 0.0, %v3785
        %v3787 = vpop.f32.mrb[0].mxu0
        %3788 = vmatprep.mubr.f32.mxu0 0.0
        %3789 = vmatmul.mubr.f32.gmra.mrb[0].mxu0 %v3575
        %v3790 = vpop.f32.mrb[0].mxu0
        %v3791 = vadd.f32 0.0, %v3790
        %v3792 = vpop.f32.mrb[0].mxu0
        %3793 = vmatprep.mubr.f32.mxu0 0.0
        %3794 = vmatmul.mubr.f32.gmra.mrb[0].mxu0 %v3578
        %v3795 = vpop.f32.mrb[0].mxu0
        %v3796 = vadd.f32 0.0, %v3795
        %v3797 = vpop.f32.mrb[0].mxu0
        %3798 = vmatprep.mubr.f32.mxu0 0.0
        %3799 = vmatmul.mubr.f32.gmra.mrb[0].mxu0 %v3581
        %v3800 = vpop.f32.mrb[0].mxu0
        %v3801 = vadd.f32 0.0, %v3800
        %v3802 = vpop.f32.mrb[0].mxu0
        %3803 = vmatprep.mubr.f32.mxu0 0.0
        %3804 = vmatmul.mubr.f32.gmra.mrb[0].mxu0 %v3584
        %v3805 = vpop.f32.mrb[0].mxu0
        %v3806 = vadd.f32 0.0, %v3805
        %v3807 = vpop.f32.mrb[0].mxu0
        %3808 = vmatprep.mubr.f32.mxu0 0.0
        %3809 = vmatmul.mubr.f32.gmra.mrb[0].mxu0 %v3587
        %v3810 = vpop.f32.mrb[0].mxu0
        %v3811 = vadd.f32 0.0, %v3810
        %v3812 = vpop.f32.mrb[0].mxu0
        %3813 = vdwg.mxu0
        %v3814 = vadd.f32 %v3426, %v3656
        %v3815 = vadd.f32 %v3427, %v3661
        %v3816 = vadd.f32 %v3428, %v3666
        %v3817 = vadd.f32 %v3429, %v3671
        %v3818 = vadd.f32 %v3430, %v3676
        %v3819 = vadd.f32 %v3431, %v3681
        %v3820 = vadd.f32 %v3432, %v3686
        %v3821 = vadd.f32 %v3433, %v3691
        %v3822 = vadd.f32 %v3434, %v3696
        %v3823 = vadd.f32 %v3435, %v3701
        %v3824 = vadd.f32 %v3436, %v3706
        %v3825 = vadd.f32 %v3437, %v3711
        %v3826 = vadd.f32 %v3438, %v3716
        %v3827 = vadd.f32 %v3439, %v3721
        %v3828 = vadd.f32 %v3440, %v3726
        %v3829 = vadd.f32 %v3441, %v3731
        %v3830 = vadd.f32 %v3442, %v3736
        %v3831 = vadd.f32 %v3443, %v3741
        %v3832 = vadd.f32 %v3444, %v3746
        %v3833 = vadd.f32 %v3445, %v3751
        %v3834 = vadd.f32 %v3446, %v3756
        %v3835 = vadd.f32 %v3447, %v3761
        %v3836 = vadd.f32 %v3448, %v3766
        %v3837 = vadd.f32 %v3449, %v3771
        %v3838 = vadd.f32 %v3450, %v3776
        %v3839 = vadd.f32 %v3451, %v3781
        %v3840 = vadd.f32 %v3452, %v3786
        %v3841 = vadd.f32 %v3453, %v3791
        %v3842 = vadd.f32 %v3454, %v3796
        %v3843 = vadd.f32 %v3455, %v3801
        %v3844 = vadd.f32 %v3456, %v3806
        %v3845 = vadd.f32 %v3457, %v3811
        %v3846 = vld [vmem:[%s2] sm:$0x1]
        %v3848 = vlaneseq
        %v3849 = vshrl.u32 %v3848, 7
        %v3850 = vsub.s32 0, %v3849
        %v3851 = vrot.slane %v3846, %v3850
        %v3853 = vadd.f32 %v3814, %v3851
        %v3854 = vadd.f32 %v3815, %v3851
        %v3855 = vadd.f32 %v3816, %v3851
        %v3856 = vadd.f32 %v3817, %v3851
        %v3857 = vadd.f32 %v3818, %v3851
        %v3858 = vadd.f32 %v3819, %v3851
        %v3859 = vadd.f32 %v3820, %v3851
        %v3860 = vadd.f32 %v3821, %v3851
        %v3861 = vadd.f32 %v3822, %v3851
        %v3862 = vadd.f32 %v3823, %v3851
        %v3863 = vadd.f32 %v3824, %v3851
        %v3864 = vadd.f32 %v3825, %v3851
        %v3865 = vadd.f32 %v3826, %v3851
        %v3866 = vadd.f32 %v3827, %v3851
        %v3867 = vadd.f32 %v3828, %v3851
        %v3868 = vadd.f32 %v3829, %v3851
        %v3869 = vadd.f32 %v3830, %v3851
        %v3870 = vadd.f32 %v3831, %v3851
        %v3871 = vadd.f32 %v3832, %v3851
        %v3872 = vadd.f32 %v3833, %v3851
        %v3873 = vadd.f32 %v3834, %v3851
        %v3874 = vadd.f32 %v3835, %v3851
        %v3875 = vadd.f32 %v3836, %v3851
        %v3876 = vadd.f32 %v3837, %v3851
        %v3877 = vadd.f32 %v3838, %v3851
        %v3878 = vadd.f32 %v3839, %v3851
        %v3879 = vadd.f32 %v3840, %v3851
        %v3880 = vadd.f32 %v3841, %v3851
        %v3881 = vadd.f32 %v3842, %v3851
        %v3882 = vadd.f32 %v3843, %v3851
        %v3883 = vadd.f32 %v3844, %v3851
        %v3884 = vadd.f32 %v3845, %v3851
        %v3885 = vld [vmem:[%s5] sm:$0xff]
        %v3886 = vld [vmem:[%s5 + $0x8] sm:$0xff]
        %v3887 = vld [vmem:[%s3] sm:$0x1]
        %v3888 = vld [vmem:[#allocation8] sm:$0x1]
        %v3889 = vsel %vm297, %v3853, 0.0
        %v3890 = vsel %vm297, %v3854, 0.0
        %v3891 = vadd.f32 %v3889, %v3890
        %v3892 = vsel %vm297, %v3855, 0.0
        %v3893 = vadd.f32 %v3891, %v3892
        %v3894 = vsel %vm297, %v3856, 0.0
        %v3895 = vadd.f32 %v3893, %v3894
        %v3896 = vsel %vm297, %v3857, 0.0
        %v3897 = vadd.f32 %v3895, %v3896
        %v3898 = vsel %vm297, %v3858, 0.0
        %v3899 = vadd.f32 %v3897, %v3898
        %v3900 = vsel %vm297, %v3859, 0.0
        %v3901 = vadd.f32 %v3899, %v3900
        %v3902 = vsel %vm297, %v3860, 0.0
        %v3903 = vadd.f32 %v3901, %v3902
        %v3904 = vsel %vm297, %v3861, 0.0
        %v3905 = vadd.f32 %v3903, %v3904
        %v3906 = vsel %vm297, %v3862, 0.0
        %v3907 = vadd.f32 %v3905, %v3906
        %v3908 = vsel %vm297, %v3863, 0.0
        %v3909 = vadd.f32 %v3907, %v3908
        %v3910 = vsel %vm297, %v3864, 0.0
        %v3911 = vadd.f32 %v3909, %v3910
        %v3912 = vsel %vm297, %v3865, 0.0
        %v3913 = vadd.f32 %v3911, %v3912
        %v3914 = vsel %vm297, %v3866, 0.0
        %v3915 = vadd.f32 %v3913, %v3914
        %v3916 = vsel %vm297, %v3867, 0.0
        %v3917 = vadd.f32 %v3915, %v3916
        %v3918 = vsel %vm297, %v3868, 0.0
        %v3919 = vadd.f32 %v3917, %v3918
        %v3920 = vsel %vm297, %v3869, 0.0
        %v3921 = vadd.f32 %v3919, %v3920
        %v3922 = vsel %vm297, %v3870, 0.0
        %v3923 = vadd.f32 %v3921, %v3922
        %v3924 = vsel %vm297, %v3871, 0.0
        %v3925 = vadd.f32 %v3923, %v3924
        %v3926 = vsel %vm297, %v3872, 0.0
        %v3927 = vadd.f32 %v3925, %v3926
        %v3928 = vsel %vm297, %v3873, 0.0
        %v3929 = vadd.f32 %v3927, %v3928
        %v3930 = vsel %vm297, %v3874, 0.0
        %v3931 = vadd.f32 %v3929, %v3930
        %v3932 = vsel %vm297, %v3875, 0.0
        %v3933 = vadd.f32 %v3931, %v3932
        %v3934 = vsel %vm297, %v3876, 0.0
        %v3935 = vadd.f32 %v3933, %v3934
        %v3936 = vsel %vm297, %v3877, 0.0
        %v3937 = vadd.f32 %v3935, %v3936
        %v3938 = vsel %vm297, %v3878, 0.0
        %v3939 = vadd.f32 %v3937, %v3938
        %v3940 = vsel %vm297, %v3879, 0.0
        %v3941 = vadd.f32 %v3939, %v3940
        %v3942 = vsel %vm297, %v3880, 0.0
        %v3943 = vadd.f32 %v3941, %v3942
        %v3944 = vsel %vm297, %v3881, 0.0
        %v3945 = vadd.f32 %v3943, %v3944
        %v3946 = vsel %vm297, %v3882, 0.0
        %v3947 = vadd.f32 %v3945, %v3946
        %v3948 = vsel %vm297, %v3883, 0.0
        %v3949 = vadd.f32 %v3947, %v3948
        %v3950 = vsel %vm297, %v3884, 0.0
        %v3951 = vadd.f32 %v3949, %v3950
        %v3952 = vrot.slane %v3951, 4
        %v3953 = vadd.f32 %v3951, %v3952
        %v3954 = vrot.slane %v3953, 2
        %v3955 = vadd.f32 %v3953, %v3954
        %v3956 = vrot.slane %v3955, 1
        %v3957 = vadd.f32 %v3955, %v3956
        %v3958 = vmul.f32 %v3853, %v3853
        %v3959 = vmul.f32 %v3854, %v3854
        %v3960 = vmul.f32 %v3855, %v3855
        %v3961 = vmul.f32 %v3856, %v3856
        %v3962 = vmul.f32 %v3857, %v3857
        %v3963 = vmul.f32 %v3858, %v3858
        %v3964 = vmul.f32 %v3859, %v3859
        %v3965 = vmul.f32 %v3860, %v3860
        %v3966 = vmul.f32 %v3861, %v3861
        %v3967 = vmul.f32 %v3862, %v3862
        %v3968 = vmul.f32 %v3863, %v3863
        %v3969 = vmul.f32 %v3864, %v3864
        %v3970 = vmul.f32 %v3865, %v3865
        %v3971 = vmul.f32 %v3866, %v3866
        %v3972 = vmul.f32 %v3867, %v3867
        %v3973 = vmul.f32 %v3868, %v3868
        %v3974 = vmul.f32 %v3869, %v3869
        %v3975 = vmul.f32 %v3870, %v3870
        %v3976 = vmul.f32 %v3871, %v3871
        %v3977 = vmul.f32 %v3872, %v3872
        %v3978 = vmul.f32 %v3873, %v3873
        %v3979 = vmul.f32 %v3874, %v3874
        %v3980 = vmul.f32 %v3875, %v3875
        %v3981 = vmul.f32 %v3876, %v3876
        %v3982 = vmul.f32 %v3877, %v3877
        %v3983 = vmul.f32 %v3878, %v3878
        %v3984 = vmul.f32 %v3879, %v3879
        %v3985 = vmul.f32 %v3880, %v3880
        %v3986 = vmul.f32 %v3881, %v3881
        %v3987 = vmul.f32 %v3882, %v3882
        %v3988 = vmul.f32 %v3883, %v3883
        %v3989 = vmul.f32 %v3884, %v3884
        %v3990 = vsel %vm297, %v3958, 0.0
        %v3991 = vsel %vm297, %v3959, 0.0
        %v3992 = vadd.f32 %v3990, %v3991
        %v3993 = vsel %vm297, %v3960, 0.0
        %v3994 = vadd.f32 %v3992, %v3993
        %v3995 = vsel %vm297, %v3961, 0.0
        %v3996 = vadd.f32 %v3994, %v3995
        %v3997 = vsel %vm297, %v3962, 0.0
        %v3998 = vadd.f32 %v3996, %v3997
        %v3999 = vsel %vm297, %v3963, 0.0
        %v4000 = vadd.f32 %v3998, %v3999
        %v4001 = vsel %vm297, %v3964, 0.0
        %v4002 = vadd.f32 %v4000, %v4001
        %v4003 = vsel %vm297, %v3965, 0.0
        %v4004 = vadd.f32 %v4002, %v4003
        %v4005 = vsel %vm297, %v3966, 0.0
        %v4006 = vadd.f32 %v4004, %v4005
        %v4007 = vsel %vm297, %v3967, 0.0
        %v4008 = vadd.f32 %v4006, %v4007
        %v4009 = vsel %vm297, %v3968, 0.0
        %v4010 = vadd.f32 %v4008, %v4009
        %v4011 = vsel %vm297, %v3969, 0.0
        %v4012 = vadd.f32 %v4010, %v4011
        %v4013 = vsel %vm297, %v3970, 0.0
        %v4014 = vadd.f32 %v4012, %v4013
        %v4015 = vsel %vm297, %v3971, 0.0
        %v4016 = vadd.f32 %v4014, %v4015
        %v4017 = vsel %vm297, %v3972, 0.0
        %v4018 = vadd.f32 %v4016, %v4017
        %v4019 = vsel %vm297, %v3973, 0.0
        %v4020 = vadd.f32 %v4018, %v4019
        %v4021 = vsel %vm297, %v3974, 0.0
        %v4022 = vadd.f32 %v4020, %v4021
        %v4023 = vsel %vm297, %v3975, 0.0
        %v4024 = vadd.f32 %v4022, %v4023
        %v4025 = vsel %vm297, %v3976, 0.0
        %v4026 = vadd.f32 %v4024, %v4025
        %v4027 = vsel %vm297, %v3977, 0.0
        %v4028 = vadd.f32 %v4026, %v4027
        %v4029 = vsel %vm297, %v3978, 0.0
        %v4030 = vadd.f32 %v4028, %v4029
        %v4031 = vsel %vm297, %v3979, 0.0
        %v4032 = vadd.f32 %v4030, %v4031
        %v4033 = vsel %vm297, %v3980, 0.0
        %v4034 = vadd.f32 %v4032, %v4033
        %v4035 = vsel %vm297, %v3981, 0.0
        %v4036 = vadd.f32 %v4034, %v4035
        %v4037 = vsel %vm297, %v3982, 0.0
        %v4038 = vadd.f32 %v4036, %v4037
        %v4039 = vsel %vm297, %v3983, 0.0
        %v4040 = vadd.f32 %v4038, %v4039
        %v4041 = vsel %vm297, %v3984, 0.0
        %v4042 = vadd.f32 %v4040, %v4041
        %v4043 = vsel %vm297, %v3985, 0.0
        %v4044 = vadd.f32 %v4042, %v4043
        %v4045 = vsel %vm297, %v3986, 0.0
        %v4046 = vadd.f32 %v4044, %v4045
        %v4047 = vsel %vm297, %v3987, 0.0
        %v4048 = vadd.f32 %v4046, %v4047
        %v4049 = vsel %vm297, %v3988, 0.0
        %v4050 = vadd.f32 %v4048, %v4049
        %v4051 = vsel %vm297, %v3989, 0.0
        %v4052 = vadd.f32 %v4050, %v4051
        %v4053 = vrot.slane %v4052, 4
        %v4054 = vadd.f32 %v4052, %v4053
        %v4055 = vrot.slane %v4054, 2
        %v4056 = vadd.f32 %v4054, %v4055
        %v4057 = vrot.slane %v4056, 1
        %v4058 = vadd.f32 %v4056, %v4057
        %v4060 = vsel %vm297, %v3957, 0
        %4062 = vmatprep.subr.mxu0 0.0
        %4063 = vmatpush1.msra.mxu0 %v3885
        %4064 = vmatprep.subr.mxu0 0.0
        %4065 = vmatpush1.msra.mxu0 %v3886
        %4066 = vmatprep.subr.mxu0 0.0
        %4067 = vmatpush1.msra.mxu0 0.0
        %4068 = vmatprep.subr.mxu0 0.0
        %4069 = vmatpush1.msra.mxu0 0.0
        %4070 = vmatprep.subr.mxu0 0.0
        %4071 = vmatpush1.msra.mxu0 0.0
        %4072 = vmatprep.subr.mxu0 0.0
        %4073 = vmatpush1.msra.mxu0 0.0
        %4074 = vmatprep.subr.mxu0 0.0
        %4075 = vmatpush1.msra.mxu0 0.0
        %4076 = vmatprep.subr.mxu0 0.0
        %4077 = vmatpush1.msra.mxu0 0.0
        %4078 = vmatprep.subr.mxu0 0.0
        %4079 = vmatpush1.msra.mxu0 0.0
        %4080 = vmatprep.subr.mxu0 0.0
        %4081 = vmatpush1.msra.mxu0 0.0
        %4082 = vmatprep.subr.mxu0 0.0
        %4083 = vmatpush1.msra.mxu0 0.0
        %4084 = vmatprep.subr.mxu0 0.0
        %4085 = vmatpush1.msra.mxu0 0.0
        %4086 = vmatprep.subr.mxu0 0.0
        %4087 = vmatpush1.msra.mxu0 0.0
        %4088 = vmatprep.subr.mxu0 0.0
        %4089 = vmatpush1.msra.mxu0 0.0
        %4090 = vmatprep.subr.mxu0 0.0
        %4091 = vmatpush1.msra.mxu0 0.0
        %4092 = vmatprep.subr.mxu0 0.0
        %4093 = vmatpush1.msra.mxu0 0.0
        %4094 = vmatprep.subr.mxu0 0.0
        %4095 = vmatpush1.msra.mxu0 0.0
        %4096 = vmatprep.subr.mxu0 0.0
        %4097 = vmatpush1.msra.mxu0 0.0
        %4098 = vmatprep.subr.mxu0 0.0
        %4099 = vmatpush1.msra.mxu0 0.0
        %4100 = vmatprep.subr.mxu0 0.0
        %4101 = vmatpush1.msra.mxu0 0.0
        %4102 = vmatprep.subr.mxu0 0.0
        %4103 = vmatpush1.msra.mxu0 0.0
        %4104 = vmatprep.subr.mxu0 0.0
        %4105 = vmatpush1.msra.mxu0 0.0
        %4106 = vmatprep.subr.mxu0 0.0
        %4107 = vmatpush1.msra.mxu0 0.0
        %4108 = vmatprep.subr.mxu0 0.0
        %4109 = vmatpush1.msra.mxu0 0.0
        %4110 = vmatprep.subr.mxu0 0.0
        %4111 = vmatpush1.msra.mxu0 0.0
        %4112 = vmatprep.subr.mxu0 0.0
        %4113 = vmatpush1.msra.mxu0 0.0
        %4114 = vmatprep.subr.mxu0 0.0
        %4115 = vmatpush1.msra.mxu0 0.0
        %4116 = vmatprep.subr.mxu0 0.0
        %4117 = vmatpush1.msra.mxu0 0.0
        %4118 = vmatprep.subr.mxu0 0.0
        %4119 = vmatpush1.msra.mxu0 0.0
        %4120 = vmatprep.subr.mxu0 0.0
        %4121 = vmatpush1.msra.mxu0 0.0
        %4122 = vmatprep.subr.mxu0 0.0
        %4123 = vmatpush1.msra.mxu0 0.0
        %4124 = vmatprep.subr.mxu0 0.0
        %4125 = vmatpush1.msra.mxu0 0.0
        %4126 = vmatprep.mubr.f32.mxu0 0.0
        %4127 = vmatmul.mubr.f32.gmra.mrb[0].mxu0 %v4060
        %v4128 = vpop.f32.mrb[0].mxu0
        %v4129 = vadd.f32 0.0, %v4128
        %v4130 = vpop.f32.mrb[0].mxu0
        %4131 = vdwg.mxu0
        %v4132 = vmul.f32 %v4129, 0.00390625
        %v4134 = vsel %vm297, %v4058, 0
        %4136 = vmatprep.subr.mxu0 0.0
        %4137 = vmatpush1.msra.mxu0 %v3885
        %4138 = vmatprep.subr.mxu0 0.0
        %4139 = vmatpush1.msra.mxu0 %v3886
        %4140 = vmatprep.subr.mxu0 0.0
        %4141 = vmatpush1.msra.mxu0 0.0
        %4142 = vmatprep.subr.mxu0 0.0
        %4143 = vmatpush1.msra.mxu0 0.0
        %4144 = vmatprep.subr.mxu0 0.0
        %4145 = vmatpush1.msra.mxu0 0.0
        %4146 = vmatprep.subr.mxu0 0.0
        %4147 = vmatpush1.msra.mxu0 0.0
        %4148 = vmatprep.subr.mxu0 0.0
        %4149 = vmatpush1.msra.mxu0 0.0
        %4150 = vmatprep.subr.mxu0 0.0
        %4151 = vmatpush1.msra.mxu0 0.0
        %4152 = vmatprep.subr.mxu0 0.0
        %4153 = vmatpush1.msra.mxu0 0.0
        %4154 = vmatprep.subr.mxu0 0.0
        %4155 = vmatpush1.msra.mxu0 0.0
        %4156 = vmatprep.subr.mxu0 0.0
        %4157 = vmatpush1.msra.mxu0 0.0
        %4158 = vmatprep.subr.mxu0 0.0
        %4159 = vmatpush1.msra.mxu0 0.0
        %4160 = vmatprep.subr.mxu0 0.0
        %4161 = vmatpush1.msra.mxu0 0.0
        %4162 = vmatprep.subr.mxu0 0.0
        %4163 = vmatpush1.msra.mxu0 0.0
        %4164 = vmatprep.subr.mxu0 0.0
        %4165 = vmatpush1.msra.mxu0 0.0
        %4166 = vmatprep.subr.mxu0 0.0
        %4167 = vmatpush1.msra.mxu0 0.0
        %4168 = vmatprep.subr.mxu0 0.0
        %4169 = vmatpush1.msra.mxu0 0.0
        %4170 = vmatprep.subr.mxu0 0.0
        %4171 = vmatpush1.msra.mxu0 0.0
        %4172 = vmatprep.subr.mxu0 0.0
        %4173 = vmatpush1.msra.mxu0 0.0
        %4174 = vmatprep.subr.mxu0 0.0
        %4175 = vmatpush1.msra.mxu0 0.0
        %4176 = vmatprep.subr.mxu0 0.0
        %4177 = vmatpush1.msra.mxu0 0.0
        %4178 = vmatprep.subr.mxu0 0.0
        %4179 = vmatpush1.msra.mxu0 0.0
        %4180 = vmatprep.subr.mxu0 0.0
        %4181 = vmatpush1.msra.mxu0 0.0
        %4182 = vmatprep.subr.mxu0 0.0
        %4183 = vmatpush1.msra.mxu0 0.0
        %4184 = vmatprep.subr.mxu0 0.0
        %4185 = vmatpush1.msra.mxu0 0.0
        %4186 = vmatprep.subr.mxu0 0.0
        %4187 = vmatpush1.msra.mxu0 0.0
        %4188 = vmatprep.subr.mxu0 0.0
        %4189 = vmatpush1.msra.mxu0 0.0
        %4190 = vmatprep.subr.mxu0 0.0
        %4191 = vmatpush1.msra.mxu0 0.0
        %4192 = vmatprep.subr.mxu0 0.0
        %4193 = vmatpush1.msra.mxu0 0.0
        %4194 = vmatprep.subr.mxu0 0.0
        %4195 = vmatpush1.msra.mxu0 0.0
        %4196 = vmatprep.subr.mxu0 0.0
        %4197 = vmatpush1.msra.mxu0 0.0
        %4198 = vmatprep.subr.mxu0 0.0
        %4199 = vmatpush1.msra.mxu0 0.0
        %4200 = vmatprep.mubr.f32.mxu0 0.0
        %4201 = vmatmul.mubr.f32.gmra.mrb[0].mxu0 %v4134
        %v4202 = vpop.f32.mrb[0].mxu0
        %v4203 = vadd.f32 0.0, %v4202
        %v4204 = vpop.f32.mrb[0].mxu0
        %4205 = vdwg.mxu0
        %v4206 = vmul.f32 %v4203, 0.00390625
        %v4207 = vmul.f32 %v4132, %v4132
        %v4208 = vsub.f32 %v4206, %v4207
        %v4209 = vlaneseq
        %v4210 = vshrl.u32 %v4209, 7
        %v4211 = vsub.s32 0, %v4210
        %v4212 = vrot.slane %v4132, %v4211
        %v4213 = vsub.f32 %v3853, %v4212
        %v4214 = vsub.f32 %v3854, %v4212
        %v4215 = vsub.f32 %v3855, %v4212
        %v4216 = vsub.f32 %v3856, %v4212
        %v4217 = vsub.f32 %v3857, %v4212
        %v4218 = vsub.f32 %v3858, %v4212
        %v4219 = vsub.f32 %v3859, %v4212
        %v4220 = vsub.f32 %v3860, %v4212
        %v4221 = vsub.f32 %v3861, %v4212
        %v4222 = vsub.f32 %v3862, %v4212
        %v4223 = vsub.f32 %v3863, %v4212
        %v4224 = vsub.f32 %v3864, %v4212
        %v4225 = vsub.f32 %v3865, %v4212
        %v4226 = vsub.f32 %v3866, %v4212
        %v4227 = vsub.f32 %v3867, %v4212
        %v4228 = vsub.f32 %v3868, %v4212
        %v4229 = vsub.f32 %v3869, %v4212
        %v4230 = vsub.f32 %v3870, %v4212
        %v4231 = vsub.f32 %v3871, %v4212
        %v4232 = vsub.f32 %v3872, %v4212
        %v4233 = vsub.f32 %v3873, %v4212
        %v4234 = vsub.f32 %v3874, %v4212
        %v4235 = vsub.f32 %v3875, %v4212
        %v4236 = vsub.f32 %v3876, %v4212
        %v4237 = vsub.f32 %v3877, %v4212
        %v4238 = vsub.f32 %v3878, %v4212
        %v4239 = vsub.f32 %v3879, %v4212
        %v4240 = vsub.f32 %v3880, %v4212
        %v4241 = vsub.f32 %v3881, %v4212
        %v4242 = vsub.f32 %v3882, %v4212
        %v4243 = vsub.f32 %v3883, %v4212
        %v4244 = vsub.f32 %v3884, %v4212
        %v4245 = vadd.f32 %v4208, 1e-05
        %v4246 = vrsqrt.pop %v4245
        %v4247 = vlaneseq
        %v4248 = vshrl.u32 %v4247, 7
        %v4249 = vsub.s32 0, %v4248
        %v4250 = vrot.slane %v4246, %v4249
        %v4251 = vmul.f32 %v4213, %v4250
        %v4252 = vmul.f32 %v4214, %v4250
        %v4253 = vmul.f32 %v4215, %v4250
        %v4254 = vmul.f32 %v4216, %v4250
        %v4255 = vmul.f32 %v4217, %v4250
        %v4256 = vmul.f32 %v4218, %v4250
        %v4257 = vmul.f32 %v4219, %v4250
        %v4258 = vmul.f32 %v4220, %v4250
        %v4259 = vmul.f32 %v4221, %v4250
        %v4260 = vmul.f32 %v4222, %v4250
        %v4261 = vmul.f32 %v4223, %v4250
        %v4262 = vmul.f32 %v4224, %v4250
        %v4263 = vmul.f32 %v4225, %v4250
        %v4264 = vmul.f32 %v4226, %v4250
        %v4265 = vmul.f32 %v4227, %v4250
        %v4266 = vmul.f32 %v4228, %v4250
        %v4267 = vmul.f32 %v4229, %v4250
        %v4268 = vmul.f32 %v4230, %v4250
        %v4269 = vmul.f32 %v4231, %v4250
        %v4270 = vmul.f32 %v4232, %v4250
        %v4271 = vmul.f32 %v4233, %v4250
        %v4272 = vmul.f32 %v4234, %v4250
        %v4273 = vmul.f32 %v4235, %v4250
        %v4274 = vmul.f32 %v4236, %v4250
        %v4275 = vmul.f32 %v4237, %v4250
        %v4276 = vmul.f32 %v4238, %v4250
        %v4277 = vmul.f32 %v4239, %v4250
        %v4278 = vmul.f32 %v4240, %v4250
        %v4279 = vmul.f32 %v4241, %v4250
        %v4280 = vmul.f32 %v4242, %v4250
        %v4281 = vmul.f32 %v4243, %v4250
        %v4282 = vmul.f32 %v4244, %v4250
        %v4284 = vlaneseq
        %v4285 = vshrl.u32 %v4284, 7
        %v4286 = vsub.s32 0, %v4285
        %v4287 = vrot.slane %v3887, %v4286
        %v4289 = vmul.f32 %v4251, %v4287
        %v4290 = vmul.f32 %v4252, %v4287
        %v4291 = vmul.f32 %v4253, %v4287
        %v4292 = vmul.f32 %v4254, %v4287
        %v4293 = vmul.f32 %v4255, %v4287
        %v4294 = vmul.f32 %v4256, %v4287
        %v4295 = vmul.f32 %v4257, %v4287
        %v4296 = vmul.f32 %v4258, %v4287
        %v4297 = vmul.f32 %v4259, %v4287
        %v4298 = vmul.f32 %v4260, %v4287
        %v4299 = vmul.f32 %v4261, %v4287
        %v4300 = vmul.f32 %v4262, %v4287
        %v4301 = vmul.f32 %v4263, %v4287
        %v4302 = vmul.f32 %v4264, %v4287
        %v4303 = vmul.f32 %v4265, %v4287
        %v4304 = vmul.f32 %v4266, %v4287
        %v4305 = vmul.f32 %v4267, %v4287
        %v4306 = vmul.f32 %v4268, %v4287
        %v4307 = vmul.f32 %v4269, %v4287
        %v4308 = vmul.f32 %v4270, %v4287
        %v4309 = vmul.f32 %v4271, %v4287
        %v4310 = vmul.f32 %v4272, %v4287
        %v4311 = vmul.f32 %v4273, %v4287
        %v4312 = vmul.f32 %v4274, %v4287
        %v4313 = vmul.f32 %v4275, %v4287
        %v4314 = vmul.f32 %v4276, %v4287
        %v4315 = vmul.f32 %v4277, %v4287
        %v4316 = vmul.f32 %v4278, %v4287
        %v4317 = vmul.f32 %v4279, %v4287
        %v4318 = vmul.f32 %v4280, %v4287
        %v4319 = vmul.f32 %v4281, %v4287
        %v4320 = vmul.f32 %v4282, %v4287
        %v4322 = vlaneseq
        %v4323 = vshrl.u32 %v4322, 7
        %v4324 = vsub.s32 0, %v4323
        %v4325 = vrot.slane %v3888, %v4324
        %v4327 = vadd.f32 %v4289, %v4325
        %v4328 = vadd.f32 %v4290, %v4325
        %v4329 = vadd.f32 %v4291, %v4325
        %v4330 = vadd.f32 %v4292, %v4325
        %v4331 = vadd.f32 %v4293, %v4325
        %v4332 = vadd.f32 %v4294, %v4325
        %v4333 = vadd.f32 %v4295, %v4325
        %v4334 = vadd.f32 %v4296, %v4325
        %v4335 = vadd.f32 %v4297, %v4325
        %v4336 = vadd.f32 %v4298, %v4325
        %v4337 = vadd.f32 %v4299, %v4325
        %v4338 = vadd.f32 %v4300, %v4325
        %v4339 = vadd.f32 %v4301, %v4325
        %v4340 = vadd.f32 %v4302, %v4325
        %v4341 = vadd.f32 %v4303, %v4325
        %v4342 = vadd.f32 %v4304, %v4325
        %v4343 = vadd.f32 %v4305, %v4325
        %v4344 = vadd.f32 %v4306, %v4325
        %v4345 = vadd.f32 %v4307, %v4325
        %v4346 = vadd.f32 %v4308, %v4325
        %v4347 = vadd.f32 %v4309, %v4325
        %v4348 = vadd.f32 %v4310, %v4325
        %v4349 = vadd.f32 %v4311, %v4325
        %v4350 = vadd.f32 %v4312, %v4325
        %v4351 = vadd.f32 %v4313, %v4325
        %v4352 = vadd.f32 %v4314, %v4325
        %v4353 = vadd.f32 %v4315, %v4325
        %v4354 = vadd.f32 %v4316, %v4325
        %v4355 = vadd.f32 %v4317, %v4325
        %v4356 = vadd.f32 %v4318, %v4325
        %v4357 = vadd.f32 %v4319, %v4325
        %v4358 = vadd.f32 %v4320, %v4325
        %4359 = vst.msk [vmem:[%s296] sm:$0xff] %vm297, %v4327
        %4360 = vst.msk [vmem:[%s296 + $0x8] sm:$0xff] %vm297, %v4328
        %4361 = vst.msk [vmem:[%s296 + $0x10] sm:$0xff] %vm297, %v4329
        %4362 = vst.msk [vmem:[%s296 + $0x18] sm:$0xff] %vm297, %v4330
        %4363 = vst.msk [vmem:[%s296 + $0x20] sm:$0xff] %vm297, %v4331
        %4364 = vst.msk [vmem:[%s296 + $0x28] sm:$0xff] %vm297, %v4332
        %4365 = vst.msk [vmem:[%s296 + $0x30] sm:$0xff] %vm297, %v4333
        %4366 = vst.msk [vmem:[%s296 + $0x38] sm:$0xff] %vm297, %v4334
        %4367 = vst.msk [vmem:[%s296 + $0x40] sm:$0xff] %vm297, %v4335
        %4368 = vst.msk [vmem:[%s296 + $0x48] sm:$0xff] %vm297, %v4336
        %4369 = vst.msk [vmem:[%s296 + $0x50] sm:$0xff] %vm297, %v4337
        %4370 = vst.msk [vmem:[%s296 + $0x58] sm:$0xff] %vm297, %v4338
        %4371 = vst.msk [vmem:[%s296 + $0x60] sm:$0xff] %vm297, %v4339
        %4372 = vst.msk [vmem:[%s296 + $0x68] sm:$0xff] %vm297, %v4340
        %4373 = vst.msk [vmem:[%s296 + $0x70] sm:$0xff] %vm297, %v4341
        %4374 = vst.msk [vmem:[%s296 + $0x78] sm:$0xff] %vm297, %v4342
        %4375 = vst.msk [vmem:[%s296 + $0x80] sm:$0xff] %vm297, %v4343
        %4376 = vst.msk [vmem:[%s296 + $0x88] sm:$0xff] %vm297, %v4344
        %4377 = vst.msk [vmem:[%s296 + $0x90] sm:$0xff] %vm297, %v4345
        %4378 = vst.msk [vmem:[%s296 + $0x98] sm:$0xff] %vm297, %v4346
        %4379 = vst.msk [vmem:[%s296 + $0xa0] sm:$0xff] %vm297, %v4347
        %4380 = vst.msk [vmem:[%s296 + $0xa8] sm:$0xff] %vm297, %v4348
        %4381 = vst.msk [vmem:[%s296 + $0xb0] sm:$0xff] %vm297, %v4349
        %4382 = vst.msk [vmem:[%s296 + $0xb8] sm:$0xff] %vm297, %v4350
        %4383 = vst.msk [vmem:[%s296 + $0xc0] sm:$0xff] %vm297, %v4351
        %4384 = vst.msk [vmem:[%s296 + $0xc8] sm:$0xff] %vm297, %v4352
        %4385 = vst.msk [vmem:[%s296 + $0xd0] sm:$0xff] %vm297, %v4353
        %4386 = vst.msk [vmem:[%s296 + $0xd8] sm:$0xff] %vm297, %v4354
        %4387 = vst.msk [vmem:[%s296 + $0xe0] sm:$0xff] %vm297, %v4355
        %4388 = vst.msk [vmem:[%s296 + $0xe8] sm:$0xff] %vm297, %v4356
        %4389 = vst.msk [vmem:[%s296 + $0xf0] sm:$0xff] %vm297, %v4357
        %4390 = vst.msk [vmem:[%s296 + $0xf8] sm:$0xff] %vm297, %v4358
        %s4391 = sand.u32 %s163, 1
        %s4392 = scalar_lea.sflag [#allocation5], %s4391
        %s4393 = sand.u32 %s163, 1
        %s4394 = smul.addr %s4393, 256
        %s4395 = scalar_lea.vmem [#allocation9], %s4394
        // Predicated region
        $region57: #{tpu_custom_call.1} parent=43 // pred_check
          %p4396 = pneg %p173
        $region58: #{tpu_custom_call.1} parent=43 // pred_check_branch
          %4398 = sbr.rel (%p4396) target = $region60
        $region59: #{tpu_custom_call.1} parent=43 // pred_region
          %s4400 = ssub.s32 4096, 4096
          %4401 = vsyncadd %s4392, %s4400
          %s4402 = smul.addr %s24, 32
          %s4403 = smul.addr %s4402, 128
          %s4404 = scalar_lea.hbm %s6, %s4403
          %s4405 = sshll.u32 %s4395, 4
          %s4406 = int_to_ptr.vmem [resolvable:$true] %s4405
          %4411 = dma.vmem_to_hbm [thread:$0]  %s4406, 4096, %s4404, %s4392, 128, 128, 8
        $region60: #{tpu_custom_call.1} parent=43 // pred_fallthru
          _
      $region44: #{tpu_custom_call.1} parent=5 // pred_fallthru
        _
      %p4412 = scmp.le.s32.totalorder 2, %s19
      // Predicated region
      $region61: #{tpu_custom_call.1} parent=5 // pred_check
        %p4413 = pneg %p4412
      $region62: #{tpu_custom_call.1} parent=5 // pred_check_branch
        %4415 = sbr.rel (%p4413) target = $region64
      $region63: #{tpu_custom_call.1} parent=5 // pred_region
        %s4416 = ssub.s32 %s19, 2
        // Predicated region
        $region65: #{tpu_custom_call.1} parent=63 // pred_check
          %p4417 = pneg %p179
        $region66: #{tpu_custom_call.1} parent=63 // pred_check_branch
          %4419 = sbr.rel (%p4417) target = $region68
        $region67: #{tpu_custom_call.1} parent=63 // pred_region
          %s4420 = sand.u32 %s164, 1
          %s4421 = scalar_lea.sflag [#allocation5], %s4420
          %s4422 = sand.u32 %s164, 1
          %s4423 = smul.addr %s4422, 256
          %s4424 = scalar_lea.vmem [#allocation9], %s4423
          %4425 = dma.done %s4421, 4096
        $region68: #{tpu_custom_call.1} parent=63 // pred_fallthru
          _
      $region64: #{tpu_custom_call.1} parent=5 // pred_fallthru
        _
    $region6: #{tpu_custom_call.1} parent=1 // loop_footer
      %s23 = sadd.s32 1, %s19
    $region7: #{tpu_custom_call.1} parent=1 // loop_footer_branch
      %18 = sbr.rel target = $region3
    $region8: #{tpu_custom_call.1} parent=1 // loop_exit
      _
    %4426 = vsyncpa [#allocation4], 1
    %s4427 = scalar_lea.sflag [#allocation4], 1
    %4428 = vsyncpa %s4427, 1
    %4429 = vsyncpa [#allocation7], 1
    %4430 = vsyncpa [#allocation5], 1
    %s4431 = scalar_lea.sflag [#allocation5], 1
    %4432 = vsyncpa %s4431, 1

</llo_original>
